<compile_context>
chip_gen: v7x
topology: tpu7x:2x2x1
jax: 0.10.0
libtpu: 0.0.40
codegen_flags: <defaults>
</compile_context>

<pallas_src>
import math
import numpy as np
import jax
import jax.numpy as jnp
from jax.experimental import pallas as pl
from jax.experimental.pallas import tpu as pltpu

BANDWIDTH = 8   # small bandwidth (original module uses 85); must be divisible by 8
BATCH = 2


def _round_up(x, m):
    return ((x + m - 1) // m) * m


# ----------------------------------------------------------------------------
# setup-time math helpers (numpy, float64)
# ----------------------------------------------------------------------------
def _fact(n):
    return math.factorial(n)


def wigner_d_matrix(l, beta):
    """Wigner small-d matrix d^l_{a,b}(beta), indexed [a + l, b + l]."""
    d = np.zeros((2 * l + 1, 2 * l + 1), dtype=np.float64)
    cb = math.cos(beta / 2.0)
    sb = math.sin(beta / 2.0)
    for a in range(-l, l + 1):
        for b in range(-l, l + 1):
            pref = math.sqrt(_fact(l + b) * _fact(l - b) * _fact(l + a) * _fact(l - a))
            s_min = max(0, b - a)
            s_max = min(l + b, l - a)
            val = 0.0
            for s in range(s_min, s_max + 1):
                num = (-1.0) ** (a - b + s)
                den = _fact(l + b - s) * _fact(s) * _fact(a - b + s) * _fact(l - a - s)
                val += (num / den) * cb ** (2 * l + b - a - 2 * s) * sb ** (a - b + 2 * s)
            d[a + l, b + l] = pref * val
    return d


def beta_grid(b):
    j = np.arange(2 * b)
    return np.pi * (2 * j + 1) / (4 * b)


def dh_quadrature_weights(b):
    """Driscoll-Healy quadrature weights for the 2b latitudes beta_j."""
    betas = beta_grid(b)
    k = np.arange(b)
    s = np.sum(np.sin((2 * k[None, :] + 1) * betas[:, None]) / (2 * k[None, :] + 1), axis=1)
    return (2.0 / b) * np.sin(betas) * s


def analysis_matrix_so3(b_in, b_out):
    betas = beta_grid(b_in)
    w = dh_quadrature_weights(b_in)
    Lm = 2 * b_out - 1
    DA = np.zeros((b_out, 2 * b_in, Lm, Lm), dtype=np.float64)
    for l in range(b_out):
        lo, hi = b_out - 1 - l, b_out - 1 + l + 1
        for j, bt in enumerate(betas):
            DA[l, j, lo:hi, lo:hi] = w[j] * wigner_d_matrix(l, bt)
    return DA.astype(np.float32)


def analysis_matrix_s2(b_in, b_out):
    betas = beta_grid(b_in)
    w = dh_quadrature_weights(b_in)
    Lm = 2 * b_out - 1
    DA = np.zeros((b_out, 2 * b_in, Lm), dtype=np.float64)
    for l in range(b_out):
        lo, hi = b_out - 1 - l, b_out - 1 + l + 1
        for j, bt in enumerate(betas):
            DA[l, j, lo:hi] = w[j] * wigner_d_matrix(l, bt)[:, l]   # d^l_{m,0}
    return DA.astype(np.float32)


def synthesis_matrix_so3(b_out):
    betas = beta_grid(b_out)
    Lm = 2 * b_out - 1
    DS = np.zeros((b_out, 2 * b_out, Lm, Lm), dtype=np.float64)
    for l in range(b_out):
        lo, hi = b_out - 1 - l, b_out - 1 + l + 1
        for j, bt in enumerate(betas):
            DS[l, j, lo:hi, lo:hi] = ((2 * l + 1) / 2.0) * wigner_d_matrix(l, bt)
    return DS.astype(np.float32)


# ----------------------------------------------------------------------------
# grids (as in s2cnn)
# ----------------------------------------------------------------------------
def s2_near_identity_grid(max_beta, n_alpha, n_beta):
    beta = np.arange(1, n_beta + 1) * max_beta / n_beta
    alpha = np.linspace(0, 2 * np.pi, n_alpha, endpoint=False)
    B, A = np.meshgrid(beta, alpha, indexing="ij")
    return np.stack([B.ravel(), A.ravel()], axis=1)            # (n, 2) (beta, alpha)


def so3_near_identity_grid(max_beta, n_alpha, n_beta, max_gamma, n_gamma):
    beta = np.arange(1, n_beta + 1) * max_beta / n_beta
    alpha = np.linspace(0, 2 * np.pi, n_alpha, endpoint=False)
    pre_gamma = np.linspace(-max_gamma, max_gamma, n_gamma)
    B, A, preC = np.meshgrid(beta, alpha, pre_gamma, indexing="ij")
    C = preC - A
    return np.stack([B.ravel(), A.ravel(), C.ravel()], axis=1)  # (n, 3) (beta, alpha, gamma)


# ----------------------------------------------------------------------------
# kernel-parameter -> spectral filter  (s2_rft / so3_rft analogue, setup time)
# ----------------------------------------------------------------------------
def s2_kernel_spectrum(kparam, b_out, grid):
    fi, fo, ng = kparam.shape
    Lm = 2 * b_out - 1
    psi = np.zeros((b_out, Lm, fi, fo), dtype=np.complex128)
    for l in range(b_out):
        for g in range(ng):
            bt, al = grid[g]
            dl = wigner_d_matrix(l, bt)[:, l]
            for ni, n in enumerate(range(-l, l + 1)):
                psi[l, n + b_out - 1] += kparam[:, :, g] * dl[ni] * np.exp(1j * n * al)
    return np.conj(psi)   # conj folded in for correlation


def so3_kernel_spectrum(kparam, b_out, grid):
    fi, fo, ng = kparam.shape
    Lm = 2 * b_out - 1
    psi = np.zeros((b_out, Lm, Lm, fi, fo), dtype=np.complex128)
    for l in range(b_out):
        for g in range(ng):
            bt, al, ga = grid[g]
            dl = wigner_d_matrix(l, bt)
            for ki, k in enumerate(range(-l, l + 1)):
                for ni, n in enumerate(range(-l, l + 1)):
                    psi[l, k + b_out - 1, n + b_out - 1] += (
                        kparam[:, :, g] * dl[ki, ni] * np.exp(1j * (k * al + n * ga))
                    )
    return np.conj(psi)


def pack_complex_weight(W):
    """Complex W [nl, K, N] -> real 2x2 block [[Wr, Wi], [-Wi, Wr]] zero-padded to
    [nl, Kp, Np] with Kp = round_up(2K, 128), Np = round_up(2N, 128) (lane-dense)."""
    nl, K, N = W.shape
    Kp = _round_up(2 * K, 128)
    Np = _round_up(2 * N, 128)
    Wr = np.real(W).astype(np.float32)
    Wi = np.imag(W).astype(np.float32)
    P = np.zeros((nl, Kp, Np), np.float32)
    P[:, :K, :N] = Wr
    P[:, :K, N:2 * N] = Wi
    P[:, K:2 * K, :N] = -Wi
    P[:, K:2 * K, N:2 * N] = Wr
    return P, K, N, Kp, Np


# ----------------------------------------------------------------------------
# Pallas kernels (hot path)
# ----------------------------------------------------------------------------
def _spec_mm_kernel(x_ref, w_ref, z_ref):
    # single fused real/imag matmul: [Mp, Kp] @ [Kp, Np] on the MXU, f32 accumulation
    z_ref[0] = jnp.dot(x_ref[0], w_ref[0], preferred_element_type=jnp.float32)


def fused_complex_matmul(X2, W2):
    """Per-degree fused complex matmul. X2: [nl, Mp, Kp] bf16 (=[Xr|Xi] padded),
    W2: [nl, Kp, Np] bf16 (packed 2x2 real-complex block). Returns [nl, Mp, Np] f32."""
    nl, Mp, Kp = X2.shape
    Np = W2.shape[-1]
    return pl.pallas_call(
        _spec_mm_kernel,
        out_shape=jax.ShapeDtypeStruct((nl, Mp, Np), jnp.float32),
        grid=(nl,),
        in_specs=[pl.BlockSpec((1, Mp, Kp), lambda l: (l, 0, 0)),
                  pl.BlockSpec((1, Kp, Np), lambda l: (l, 0, 0))],
        out_specs=pl.BlockSpec((1, Mp, Np), lambda l: (l, 0, 0)),
        compiler_params=pltpu.CompilerParams(
            dimension_semantics=("parallel",)),   # v7x: shard degrees across the 2 TCs
    )(X2, W2)


def _bias_relu_kernel(x_ref, b_ref, o_ref):
    o_ref[...] = jnp.maximum(x_ref[...] + b_ref[...][:, :, None], 0.0)


def _pick_g_tile(G, cap=2048):
    if G <= cap:
        return G
    t = cap - (cap % 128)
    while t >= 128:
        if G % t == 0:
            return t
        t -= 128
    return G


def bias_relu(x, bias):
    """Bias + ReLU, tiled over the (lane) spatial axis in lane-dense chunks."""
    B, C, G = x.shape
    Gt = _pick_g_tile(G)
    return pl.pallas_call(
        _bias_relu_kernel,
        out_shape=jax.ShapeDtypeStruct((B, C, G), jnp.float32),
        grid=(G // Gt,),
        in_specs=[pl.BlockSpec((B, C, Gt), lambda g: (0, 0, g)),
                  pl.BlockSpec((1, C), lambda g: (0, 0))],
        out_specs=pl.BlockSpec((B, C, Gt), lambda g: (0, 0, g)),
        compiler_params=pltpu.CompilerParams(
            dimension_semantics=("parallel",)),
    )(x, bias)


def _head_kernel(x_ref, w_ref, sc_ref, sh_ref, lw_ref, lb_ref, o_ref):
    x = x_ref[...]                                    # [B, G, C]   (C lane-dense)
    w = w_ref[...]                                    # [1, G, 1]   quadrature weights
    feat = jnp.sum(x * w, axis=1)                     # so3_integrate -> [B, C]
    feat = feat * sc_ref[...] + sh_ref[...]           # BatchNorm1d (eval)
    o_ref[...] = jnp.sum(feat * lw_ref[...], axis=-1, keepdims=True) + lb_ref[...]


def head(x_bgc, w_full, bn_scale, bn_shift, lin_w, lin_b):
    B, G, C = x_bgc.shape
    return pl.pallas_call(
        _head_kernel,
        out_shape=jax.ShapeDtypeStruct((B, 1), jnp.float32),
        grid=(1,),
        in_specs=[pl.BlockSpec((B, G, C), lambda i: (0, 0, 0)),
                  pl.BlockSpec((1, G, 1), lambda i: (0, 0, 0)),
                  pl.BlockSpec((1, C), lambda i: (0, 0)),
                  pl.BlockSpec((1, C), lambda i: (0, 0)),
                  pl.BlockSpec((1, C), lambda i: (0, 0)),
                  pl.BlockSpec((1, 1), lambda i: (0, 0))],
        out_specs=pl.BlockSpec((B, 1), lambda i: (0, 0)),
    )(x_bgc, w_full, bn_scale, bn_shift, lin_w, lin_b)


# ----------------------------------------------------------------------------
# glue: spherical / SO(3) Fourier analysis + synthesis (FFT + Wigner contraction)
# ----------------------------------------------------------------------------
def s2_analysis(x, b_out, DA2):
    # x: [B, C, 2b_in(beta), 2b_in(alpha)]
    n_alpha = x.shape[-1]
    xft = jnp.fft.ifft(x, axis=-1)                                  # e^{+i m alpha}, mean
    freqs = np.arange(-(b_out - 1), b_out) % n_alpha
    xsel = xft[..., freqs]                                          # [B, C, 2b_in, Lm]
    return jnp.einsum("ljm,bcjm->lbmc", DA2, xsel)                  # [l, B, Lm, C] complex


def so3_analysis(x, b_out, DA):
    # x: [B, C, 2b_in(beta), 2b_in(alpha), 2b_in(gamma)]
    n_alpha = x.shape[-1]
    xft = jnp.fft.ifft2(x, axes=(-2, -1))
    freqs = np.arange(-(b_out - 1), b_out) % n_alpha
    xsel = xft[..., freqs, :][..., freqs]                           # [B, C, 2b_in, Lm, Lm]
    return jnp.einsum("ljmn,bcjmn->lbmnc", DA, xsel)                # [l, B, Lm, Lm, C] complex


def so3_synthesis(Z, b_out, DS):
    # Z: [l, B, Lm(m), Lm(n), fo] complex -> spatial [B, fo, 2b, 2b, 2b] real
    Fb = jnp.einsum("ljmn,lbmnf->bfjmn", DS, Z)                     # [B, fo, 2b, Lm, Lm]
    two_b = 2 * b_out
    freqs = np.arange(-(b_out - 1), b_out) % two_b
    buf = jnp.zeros(Fb.shape[:3] + (two_b, two_b), dtype=Fb.dtype)
    buf = buf.at[..., freqs[:, None], freqs[None, :]].set(Fb)
    out = jnp.fft.fft2(buf, axes=(-2, -1))                          # e^{-i m alpha - i n gamma}
    return jnp.real(out).astype(jnp.float32)


# ----------------------------------------------------------------------------
# layer forward passes
# ----------------------------------------------------------------------------
def spectral_conv(F4, layer):
    """F4: [nl, B, Lm, K] complex -> Z: [nl, B, Lm, Lm, f_out] complex via one
    fused bf16 MXU matmul per degree (batch folded into the M rows)."""
    nl, B, Lm, K = F4.shape
    N, Kp, Np = layer["N"], layer["Kp"], layer["Np"]
    fo = layer["f_out"]
    Bm = B * Lm
    Mp = _round_up(Bm, 8)
    X = F4.reshape(nl, Bm, K)
    X2 = jnp.concatenate([jnp.real(X).astype(jnp.float32),
                          jnp.imag(X).astype(jnp.float32)], axis=-1)   # [nl, Bm, 2K]
    X2 = jnp.pad(X2, ((0, 0), (0, Mp - Bm), (0, Kp - 2 * K)))
    Z = fused_complex_matmul(X2.astype(jnp.bfloat16), layer["W2"])     # [nl, Mp, Np] f32
    Zr = Z[:, :Bm, :N]
    Zi = Z[:, :Bm, N:2 * N]
    return jax.lax.complex(Zr, Zi).reshape(nl, B, Lm, Lm, fo)


def s2_conv_layer(x, layer):
    b_out, fo = layer["b_out"], layer["f_out"]
    F = s2_analysis(x, b_out, layer["DA"])                          # [l, B, Lm, C]
    Z = spectral_conv(F, layer)
    y = so3_synthesis(Z, b_out, layer["DS"])
    B = y.shape[0]
    two_b = 2 * b_out
    yf = bias_relu(y.reshape(B, fo, two_b ** 3), layer["bias"])
    return yf.reshape(B, fo, two_b, two_b, two_b)


def so3_conv_layer(x, layer):
    b_out, fo = layer["b_out"], layer["f_out"]
    Lm = 2 * b_out - 1
    F = so3_analysis(x, b_out, layer["DA"])                         # [l, B, Lm, Lm, C]
    nl, B, _, _, C = F.shape
    F4 = F.reshape(nl, B, Lm, Lm * C)
    Z = spectral_conv(F4, layer)
    y = so3_synthesis(Z, b_out, layer["DS"])
    two_b = 2 * b_out
    yf = bias_relu(y.reshape(B, fo, two_b ** 3), layer["bias"])
    return yf.reshape(B, fo, two_b, two_b, two_b)


# ----------------------------------------------------------------------------
# model construction (deterministic parameter init)
# ----------------------------------------------------------------------------
def build_model(bandwidth, key):
    b = bandwidth
    grid_s2 = s2_near_identity_grid(np.pi / 16, 6, 1)
    grid_so3_1 = so3_near_identity_grid(np.pi / 16, 6, 1, 2 * np.pi, 6)
    grid_so3_2 = so3_near_identity_grid(np.pi / 8, 6, 1, 2 * np.pi, 6)
    grid_so3_3 = so3_near_identity_grid(np.pi / 4, 6, 1, 2 * np.pi, 6)
    grid_so3_4 = so3_near_identity_grid(np.pi / 2, 6, 1, 2 * np.pi, 6)

    cfg = [
        ("s2", 3, 16, b, b, grid_s2),
        ("so3", 16, 32, b, b // 2, grid_so3_1),
        ("so3", 32, 32, b // 2, b // 2, grid_so3_2),
        ("so3", 32, 64, b // 2, b // 4, grid_so3_2),
        ("so3", 64, 64, b // 4, b // 4, grid_so3_3),
        ("so3", 64, 64, b // 4, b // 8, grid_so3_3),
        ("so3", 64, 128, b // 8, b // 8, grid_so3_4),
    ]

    layers = []
    for (kind, fi, fo, b_in, b_out, grid) in cfg:
        key, sub = jax.random.split(key)
        ng = grid.shape[0]
        kparam = np.asarray(
            jax.random.uniform(sub, (fi, fo, ng), minval=-1.0, maxval=1.0),
            dtype=np.float64)
        Lm = 2 * b_out - 1
        if kind == "s2":
            scaling = 1.0 / math.sqrt(ng * fi * (b_out ** 4.0) / (b_in ** 2.0))
            psi = s2_kernel_spectrum(kparam * scaling, b_out, grid)     # [l, n, fi, fo]
            W = psi.transpose(0, 2, 1, 3).reshape(b_out, fi, Lm * fo)
            DA = analysis_matrix_s2(b_in, b_out)
        else:
            scaling = 1.0 / math.sqrt(ng * fi * (b_out ** 3.0) / (b_in ** 3.0))
            psi = so3_kernel_spectrum(kparam * scaling, b_out, grid)    # [l, k, n, fi, fo]
            W = psi.transpose(0, 1, 3, 2, 4).reshape(b_out, Lm * fi, Lm * fo)
            DA = analysis_matrix_so3(b_in, b_out)
        DS = synthesis_matrix_so3(b_out)
        W2, K, N, Kp, Np = pack_complex_weight(W)       # padded real 2x2 block, setup time
        layers.append(dict(
            kind=kind, f_in=fi, f_out=fo, b_in=b_in, b_out=b_out,
            W2=jnp.asarray(W2, jnp.bfloat16),           # bf16 weights for full MXU rate
            N=N, Kp=Kp, Np=Np,
            DA=jnp.asarray(DA), DS=jnp.asarray(DS),
            bias=jnp.zeros((1, fo), jnp.float32),       # nn.Parameter zeros in the module
        ))

    # head: so3_integrate + BatchNorm1d(128) + Linear(128, 1)
    b_last = cfg[-1][4]
    two_b = 2 * b_last
    w_beta = dh_quadrature_weights(b_last) / (two_b * two_b)
    w_full = np.repeat(w_beta, two_b * two_b).reshape(1, two_b ** 3, 1)  # [1, G, 1]
    key, k1, k2 = jax.random.split(key, 3)
    bound = 1.0 / math.sqrt(128.0)
    lin_w = jax.random.uniform(k1, (1, 128), minval=-bound, maxval=bound)
    lin_b = jax.random.uniform(k2, (1, 1), minval=-bound, maxval=bound)
    eps = 1e-5
    head_params = dict(
        w_full=jnp.asarray(w_full, jnp.float32),
        bn_scale=jnp.full((1, 128), 1.0 / math.sqrt(1.0 + eps), jnp.float32),
        bn_shift=jnp.zeros((1, 128), jnp.float32),
        lin_w=jnp.asarray(lin_w, jnp.float32),
        lin_b=jnp.asarray(lin_b, jnp.float32),
    )
    return layers, head_params


def forward(x, layers, head_params):
    for layer in layers:
        if layer["kind"] == "s2":
            x = s2_conv_layer(x, layer)
        else:
            x = so3_conv_layer(x, layer)
    B, C = x.shape[0], x.shape[1]
    # lane-dense head layout: [B, G, C] with C=128 on the lane axis
    x_bgc = jnp.transpose(x.reshape(B, C, -1), (0, 2, 1))
    return head(x_bgc, head_params["w_full"], head_params["bn_scale"],
                head_params["bn_shift"], head_params["lin_w"], head_params["lin_b"])


if __name__ == "__main__":
    key = jax.random.PRNGKey(0)
    key, pkey, xkey = jax.random.split(key, 3)
    layers, head_params = build_model(BANDWIDTH, pkey)
    # input: [batch, 3, 2*bandwidth (beta), 2*bandwidth (alpha)]  (NCHW)
    x = jax.random.normal(xkey, (BATCH, 3, 2 * BANDWIDTH, 2 * BANDWIDTH), dtype=jnp.float32)
    fwd = jax.jit(lambda xx: forward(xx, layers, head_params))
    y = fwd(x)
    y = jax.block_until_ready(y)
    assert y.shape == (BATCH, 1) and bool(jnp.all(jnp.isfinite(y)))
    print("KERNEL_OK")
</pallas_src>

<mosaic_0001>
module attributes {stable_mosaic.version = 11 : i64} {
  func.func @_spec_mm_kernel(%arg0: i32, %arg1: memref<1x32x128xbf16, #tpu.memory_space<vmem>>, %arg2: memref<1x128x512xbf16, #tpu.memory_space<vmem>>, %arg3: memref<1x32x512xf32, #tpu.memory_space<vmem>>) attributes {dimension_semantics = [#tpu.dimension_semantics<parallel>], iteration_bounds = array<i64: 8>, scalar_prefetch = 0 : i64, scratch_operands = 0 : i64, tpu.core_type = #tpu.core_type<tc>, window_params = [{transform_indices = @transform_0, window_bounds = array<i64: 1, 32, 128>}, {transform_indices = @transform_1, window_bounds = array<i64: 1, 128, 512>}, {transform_indices = @transform_2, window_bounds = array<i64: 1, 32, 512>}]} {
    %c0 = arith.constant 0 : index
    %c0_0 = arith.constant 0 : index
    %c0_1 = arith.constant 0 : index
    %0 = vector.load %arg1[%c0, %c0_0, %c0_1] : memref<1x32x128xbf16, #tpu.memory_space<vmem>>, vector<1x32x128xbf16>
    %1 = vector.shape_cast %0 : vector<1x32x128xbf16> to vector<32x128xbf16>
    %c0_2 = arith.constant 0 : index
    %c0_3 = arith.constant 0 : index
    %c0_4 = arith.constant 0 : index
    %2 = vector.load %arg2[%c0_2, %c0_3, %c0_4] : memref<1x128x512xbf16, #tpu.memory_space<vmem>>, vector<1x128x512xbf16>
    %3 = vector.shape_cast %2 : vector<1x128x512xbf16> to vector<128x512xbf16>
    %cst = arith.constant dense<0.000000e+00> : vector<32x512xf32>
    %4 = tpu.matmul %1, %3, %cst {dimension_numbers = #tpu.dot_dimension_numbers<[1], [0], [0], [1], [0, 0, 1, 1], [], []>} : vector<32x128xbf16>, vector<128x512xbf16>, vector<32x512xf32> -> vector<32x512xf32>
    %c0_5 = arith.constant 0 : index
    %c0_6 = arith.constant 0 : index
    %c0_7 = arith.constant 0 : index
    %5 = vector.load %arg3[%c0_5, %c0_6, %c0_7] : memref<1x32x512xf32, #tpu.memory_space<vmem>>, vector<1x32x512xf32>
    %6 = vector.shape_cast %5 : vector<1x32x512xf32> to vector<32x512xf32>
    %7 = vector.shape_cast %4 : vector<32x512xf32> to vector<1x32x512xf32>
    tpu.vector_store %arg3[%c0_5, %c0_6, %c0_7], %7 {strides = array<i32>} : memref<1x32x512xf32, #tpu.memory_space<vmem>>, vector<1x32x512xf32>,
    return
  }
  func.func @transform_0(%arg0: i32) -> (i32, i32, i32) {
    %c0_i32 = arith.constant 0 : i32
    %c0_i32_0 = arith.constant 0 : i32
    %c0_i32_1 = arith.constant 0 : i32
    return %arg0, %c0_i32, %c0_i32_0 : i32, i32, i32
  }
  func.func @transform_1(%arg0: i32) -> (i32, i32, i32) {
    %c0_i32 = arith.constant 0 : i32
    %c0_i32_0 = arith.constant 0 : i32
    %c0_i32_1 = arith.constant 0 : i32
    return %arg0, %c0_i32, %c0_i32_0 : i32, i32, i32
  }
  func.func @transform_2(%arg0: i32) -> (i32, i32, i32) {
    %c0_i32 = arith.constant 0 : i32
    %c0_i32_0 = arith.constant 0 : i32
    %c0_i32_1 = arith.constant 0 : i32
    return %arg0, %c0_i32, %c0_i32_0 : i32, i32, i32
  }
}

module attributes {stable_mosaic.version = 11 : i64} {
  func.func @_bias_relu_kernel(%arg0: i32, %arg1: memref<2x16x2048xf32, #tpu.memory_space<vmem>>, %arg2: memref<1x16xf32, #tpu.memory_space<vmem>>, %arg3: memref<2x16x2048xf32, #tpu.memory_space<vmem>>) attributes {dimension_semantics = [#tpu.dimension_semantics<parallel>], iteration_bounds = array<i64: 2>, scalar_prefetch = 0 : i64, scratch_operands = 0 : i64, tpu.core_type = #tpu.core_type<tc>, window_params = [{transform_indices = @transform_0, window_bounds = array<i64: 2, 16, 2048>}, {pipeline_mode = #tpu.pipeline_mode<synchronous>, transform_indices = @transform_1, window_bounds = array<i64: 1, 16>}, {transform_indices = @transform_2, window_bounds = array<i64: 2, 16, 2048>}]} {
    %c0 = arith.constant 0 : index
    %c0_0 = arith.constant 0 : index
    %c0_1 = arith.constant 0 : index
    %0 = vector.load %arg1[%c0, %c0_0, %c0_1] : memref<2x16x2048xf32, #tpu.memory_space<vmem>>, vector<2x16x2048xf32>
    %c0_2 = arith.constant 0 : index
    %c0_3 = arith.constant 0 : index
    %1 = vector.load %arg2[%c0_2, %c0_3] : memref<1x16xf32, #tpu.memory_space<vmem>>, vector<1x16xf32>
    %2 = vector.shape_cast %1 : vector<1x16xf32> to vector<1x16x1xf32>
    %3 = vector.broadcast %2 : vector<1x16x1xf32> to vector<2x16x2048xf32>
    %4 = arith.addf %0, %3 : vector<2x16x2048xf32>
    %cst = arith.constant 0.000000e+00 : f32
    %5 = vector.broadcast %cst : f32 to vector<2x16x2048xf32>
    %6 = arith.maximumf %4, %5 : vector<2x16x2048xf32>
    %c0_4 = arith.constant 0 : index
    %c0_5 = arith.constant 0 : index
    %c0_6 = arith.constant 0 : index
    %7 = vector.load %arg3[%c0_4, %c0_5, %c0_6] : memref<2x16x2048xf32, #tpu.memory_space<vmem>>, vector<2x16x2048xf32>
    tpu.vector_store %arg3[%c0_4, %c0_5, %c0_6], %6 {strides = array<i32>} : memref<2x16x2048xf32, #tpu.memory_space<vmem>>, vector<2x16x2048xf32>,
    return
  }
  func.func @transform_0(%arg0: i32) -> (i32, i32, i32) {
    %c0_i32 = arith.constant 0 : i32
    %c0_i32_0 = arith.constant 0 : i32
    %c0_i32_1 = arith.constant 0 : i32
    return %c0_i32, %c0_i32_0, %arg0 : i32, i32, i32
  }
  func.func @transform_1(%arg0: i32) -> (i32, i32) {
    %c0_i32 = arith.constant 0 : i32
    %c0_i32_0 = arith.constant 0 : i32
    %c0_i32_1 = arith.constant 0 : i32
    return %c0_i32, %c0_i32_0 : i32, i32
  }
  func.func @transform_2(%arg0: i32) -> (i32, i32, i32) {
    %c0_i32 = arith.constant 0 : i32
    %c0_i32_0 = arith.constant 0 : i32
    %c0_i32_1 = arith.constant 0 : i32
    return %c0_i32, %c0_i32_0, %arg0 : i32, i32, i32
  }
}

module attributes {stable_mosaic.version = 11 : i64} {
  func.func @_spec_mm_kernel(%arg0: i32, %arg1: memref<1x16x256xbf16, #tpu.memory_space<vmem>>, %arg2: memref<1x256x512xbf16, #tpu.memory_space<vmem>>, %arg3: memref<1x16x512xf32, #tpu.memory_space<vmem>>) attributes {dimension_semantics = [#tpu.dimension_semantics<parallel>], iteration_bounds = array<i64: 4>, scalar_prefetch = 0 : i64, scratch_operands = 0 : i64, tpu.core_type = #tpu.core_type<tc>, window_params = [{transform_indices = @transform_0, window_bounds = array<i64: 1, 16, 256>}, {transform_indices = @transform_1, window_bounds = array<i64: 1, 256, 512>}, {transform_indices = @transform_2, window_bounds = array<i64: 1, 16, 512>}]} {
    %c0 = arith.constant 0 : index
    %c0_0 = arith.constant 0 : index
    %c0_1 = arith.constant 0 : index
    %0 = vector.load %arg1[%c0, %c0_0, %c0_1] : memref<1x16x256xbf16, #tpu.memory_space<vmem>>, vector<1x16x256xbf16>
    %1 = vector.shape_cast %0 : vector<1x16x256xbf16> to vector<16x256xbf16>
    %c0_2 = arith.constant 0 : index
    %c0_3 = arith.constant 0 : index
    %c0_4 = arith.constant 0 : index
    %2 = vector.load %arg2[%c0_2, %c0_3, %c0_4] : memref<1x256x512xbf16, #tpu.memory_space<vmem>>, vector<1x256x512xbf16>
    %3 = vector.shape_cast %2 : vector<1x256x512xbf16> to vector<256x512xbf16>
    %cst = arith.constant dense<0.000000e+00> : vector<16x512xf32>
    %4 = tpu.matmul %1, %3, %cst {dimension_numbers = #tpu.dot_dimension_numbers<[1], [0], [0], [1], [0, 0, 1, 1], [], []>} : vector<16x256xbf16>, vector<256x512xbf16>, vector<16x512xf32> -> vector<16x512xf32>
    %c0_5 = arith.constant 0 : index
    %c0_6 = arith.constant 0 : index
    %c0_7 = arith.constant 0 : index
    %5 = vector.load %arg3[%c0_5, %c0_6, %c0_7] : memref<1x16x512xf32, #tpu.memory_space<vmem>>, vector<1x16x512xf32>
    %6 = vector.shape_cast %5 : vector<1x16x512xf32> to vector<16x512xf32>
    %7 = vector.shape_cast %4 : vector<16x512xf32> to vector<1x16x512xf32>
    tpu.vector_store %arg3[%c0_5, %c0_6, %c0_7], %7 {strides = array<i32>} : memref<1x16x512xf32, #tpu.memory_space<vmem>>, vector<1x16x512xf32>,
    return
  }
  func.func @transform_0(%arg0: i32) -> (i32, i32, i32) {
    %c0_i32 = arith.constant 0 : i32
    %c0_i32_0 = arith.constant 0 : i32
    %c0_i32_1 = arith.constant 0 : i32
    return %arg0, %c0_i32, %c0_i32_0 : i32, i32, i32
  }
  func.func @transform_1(%arg0: i32) -> (i32, i32, i32) {
    %c0_i32 = arith.constant 0 : i32
    %c0_i32_0 = arith.constant 0 : i32
    %c0_i32_1 = arith.constant 0 : i32
    return %arg0, %c0_i32, %c0_i32_0 : i32, i32, i32
  }
  func.func @transform_2(%arg0: i32) -> (i32, i32, i32) {
    %c0_i32 = arith.constant 0 : i32
    %c0_i32_0 = arith.constant 0 : i32
    %c0_i32_1 = arith.constant 0 : i32
    return %arg0, %c0_i32, %c0_i32_0 : i32, i32, i32
  }
}

module attributes {stable_mosaic.version = 11 : i64} {
  func.func @_bias_relu_kernel(%arg0: i32, %arg1: memref<2x32x512xf32, #tpu.memory_space<vmem>>, %arg2: memref<1x32xf32, #tpu.memory_space<vmem>>, %arg3: memref<2x32x512xf32, #tpu.memory_space<vmem>>) attributes {dimension_semantics = [#tpu.dimension_semantics<parallel>], iteration_bounds = array<i64: 1>, scalar_prefetch = 0 : i64, scratch_operands = 0 : i64, tpu.core_type = #tpu.core_type<tc>, window_params = [{transform_indices = @transform_0, window_bounds = array<i64: 2, 32, 512>}, {pipeline_mode = #tpu.pipeline_mode<synchronous>, transform_indices = @transform_1, window_bounds = array<i64: 1, 32>}, {transform_indices = @transform_2, window_bounds = array<i64: 2, 32, 512>}]} {
    %c0 = arith.constant 0 : index
    %c0_0 = arith.constant 0 : index
    %c0_1 = arith.constant 0 : index
    %0 = vector.load %arg1[%c0, %c0_0, %c0_1] : memref<2x32x512xf32, #tpu.memory_space<vmem>>, vector<2x32x512xf32>
    %c0_2 = arith.constant 0 : index
    %c0_3 = arith.constant 0 : index
    %1 = vector.load %arg2[%c0_2, %c0_3] : memref<1x32xf32, #tpu.memory_space<vmem>>, vector<1x32xf32>
    %2 = vector.shape_cast %1 : vector<1x32xf32> to vector<1x32x1xf32>
    %3 = vector.broadcast %2 : vector<1x32x1xf32> to vector<2x32x512xf32>
    %4 = arith.addf %0, %3 : vector<2x32x512xf32>
    %cst = arith.constant 0.000000e+00 : f32
    %5 = vector.broadcast %cst : f32 to vector<2x32x512xf32>
    %6 = arith.maximumf %4, %5 : vector<2x32x512xf32>
    %c0_4 = arith.constant 0 : index
    %c0_5 = arith.constant 0 : index
    %c0_6 = arith.constant 0 : index
    %7 = vector.load %arg3[%c0_4, %c0_5, %c0_6] : memref<2x32x512xf32, #tpu.memory_space<vmem>>, vector<2x32x512xf32>
    tpu.vector_store %arg3[%c0_4, %c0_5, %c0_6], %6 {strides = array<i32>} : memref<2x32x512xf32, #tpu.memory_space<vmem>>, vector<2x32x512xf32>,
    return
  }
  func.func @transform_0(%arg0: i32) -> (i32, i32, i32) {
    %c0_i32 = arith.constant 0 : i32
    %c0_i32_0 = arith.constant 0 : i32
    %c0_i32_1 = arith.constant 0 : i32
    return %c0_i32, %c0_i32_0, %arg0 : i32, i32, i32
  }
  func.func @transform_1(%arg0: i32) -> (i32, i32) {
    %c0_i32 = arith.constant 0 : i32
    %c0_i32_0 = arith.constant 0 : i32
    %c0_i32_1 = arith.constant 0 : i32
    return %c0_i32, %c0_i32_0 : i32, i32
  }
  func.func @transform_2(%arg0: i32) -> (i32, i32, i32) {
    %c0_i32 = arith.constant 0 : i32
    %c0_i32_0 = arith.constant 0 : i32
    %c0_i32_1 = arith.constant 0 : i32
    return %c0_i32, %c0_i32_0, %arg0 : i32, i32, i32
  }
}

module attributes {stable_mosaic.version = 11 : i64} {
  func.func @_spec_mm_kernel(%arg0: i32, %arg1: memref<1x16x512xbf16, #tpu.memory_space<vmem>>, %arg2: memref<1x512x512xbf16, #tpu.memory_space<vmem>>, %arg3: memref<1x16x512xf32, #tpu.memory_space<vmem>>) attributes {dimension_semantics = [#tpu.dimension_semantics<parallel>], iteration_bounds = array<i64: 4>, scalar_prefetch = 0 : i64, scratch_operands = 0 : i64, tpu.core_type = #tpu.core_type<tc>, window_params = [{transform_indices = @transform_0, window_bounds = array<i64: 1, 16, 512>}, {transform_indices = @transform_1, window_bounds = array<i64: 1, 512, 512>}, {transform_indices = @transform_2, window_bounds = array<i64: 1, 16, 512>}]} {
    %c0 = arith.constant 0 : index
    %c0_0 = arith.constant 0 : index
    %c0_1 = arith.constant 0 : index
    %0 = vector.load %arg1[%c0, %c0_0, %c0_1] : memref<1x16x512xbf16, #tpu.memory_space<vmem>>, vector<1x16x512xbf16>
    %1 = vector.shape_cast %0 : vector<1x16x512xbf16> to vector<16x512xbf16>
    %c0_2 = arith.constant 0 : index
    %c0_3 = arith.constant 0 : index
    %c0_4 = arith.constant 0 : index
    %2 = vector.load %arg2[%c0_2, %c0_3, %c0_4] : memref<1x512x512xbf16, #tpu.memory_space<vmem>>, vector<1x512x512xbf16>
    %3 = vector.shape_cast %2 : vector<1x512x512xbf16> to vector<512x512xbf16>
    %cst = arith.constant dense<0.000000e+00> : vector<16x512xf32>
    %4 = tpu.matmul %1, %3, %cst {dimension_numbers = #tpu.dot_dimension_numbers<[1], [0], [0], [1], [0, 0, 1, 1], [], []>} : vector<16x512xbf16>, vector<512x512xbf16>, vector<16x512xf32> -> vector<16x512xf32>
    %c0_5 = arith.constant 0 : index
    %c0_6 = arith.constant 0 : index
    %c0_7 = arith.constant 0 : index
    %5 = vector.load %arg3[%c0_5, %c0_6, %c0_7] : memref<1x16x512xf32, #tpu.memory_space<vmem>>, vector<1x16x512xf32>
    %6 = vector.shape_cast %5 : vector<1x16x512xf32> to vector<16x512xf32>
    %7 = vector.shape_cast %4 : vector<16x512xf32> to vector<1x16x512xf32>
    tpu.vector_store %arg3[%c0_5, %c0_6, %c0_7], %7 {strides = array<i32>} : memref<1x16x512xf32, #tpu.memory_space<vmem>>, vector<1x16x512xf32>,
    return
  }
  func.func @transform_0(%arg0: i32) -> (i32, i32, i32) {
    %c0_i32 = arith.constant 0 : i32
    %c0_i32_0 = arith.constant 0 : i32
    %c0_i32_1 = arith.constant 0 : i32
    return %arg0, %c0_i32, %c0_i32_0 : i32, i32, i32
  }
  func.func @transform_1(%arg0: i32) -> (i32, i32, i32) {
    %c0_i32 = arith.constant 0 : i32
    %c0_i32_0 = arith.constant 0 : i32
    %c0_i32_1 = arith.constant 0 : i32
    return %arg0, %c0_i32, %c0_i32_0 : i32, i32, i32
  }
  func.func @transform_2(%arg0: i32) -> (i32, i32, i32) {
    %c0_i32 = arith.constant 0 : i32
    %c0_i32_0 = arith.constant 0 : i32
    %c0_i32_1 = arith.constant 0 : i32
    return %arg0, %c0_i32, %c0_i32_0 : i32, i32, i32
  }
}

module attributes {stable_mosaic.version = 11 : i64} {
  func.func @_spec_mm_kernel(%arg0: i32, %arg1: memref<1x8x256xbf16, #tpu.memory_space<vmem>>, %arg2: memref<1x256x384xbf16, #tpu.memory_space<vmem>>, %arg3: memref<1x8x384xf32, #tpu.memory_space<vmem>>) attributes {dimension_semantics = [#tpu.dimension_semantics<parallel>], iteration_bounds = array<i64: 2>, scalar_prefetch = 0 : i64, scratch_operands = 0 : i64, tpu.core_type = #tpu.core_type<tc>, window_params = [{transform_indices = @transform_0, window_bounds = array<i64: 1, 8, 256>}, {transform_indices = @transform_1, window_bounds = array<i64: 1, 256, 384>}, {transform_indices = @transform_2, window_bounds = array<i64: 1, 8, 384>}]} {
    %c0 = arith.constant 0 : index
    %c0_0 = arith.constant 0 : index
    %c0_1 = arith.constant 0 : index
    %0 = vector.load %arg1[%c0, %c0_0, %c0_1] : memref<1x8x256xbf16, #tpu.memory_space<vmem>>, vector<1x8x256xbf16>
    %1 = vector.shape_cast %0 : vector<1x8x256xbf16> to vector<8x256xbf16>
    %c0_2 = arith.constant 0 : index
    %c0_3 = arith.constant 0 : index
    %c0_4 = arith.constant 0 : index
    %2 = vector.load %arg2[%c0_2, %c0_3, %c0_4] : memref<1x256x384xbf16, #tpu.memory_space<vmem>>, vector<1x256x384xbf16>
    %3 = vector.shape_cast %2 : vector<1x256x384xbf16> to vector<256x384xbf16>
    %cst = arith.constant dense<0.000000e+00> : vector<8x384xf32>
    %4 = tpu.matmul %1, %3, %cst {dimension_numbers = #tpu.dot_dimension_numbers<[1], [0], [0], [1], [0, 0, 1, 1], [], []>} : vector<8x256xbf16>, vector<256x384xbf16>, vector<8x384xf32> -> vector<8x384xf32>
    %c0_5 = arith.constant 0 : index
    %c0_6 = arith.constant 0 : index
    %c0_7 = arith.constant 0 : index
    %5 = vector.load %arg3[%c0_5, %c0_6, %c0_7] : memref<1x8x384xf32, #tpu.memory_space<vmem>>, vector<1x8x384xf32>
    %6 = vector.shape_cast %5 : vector<1x8x384xf32> to vector<8x384xf32>
    %7 = vector.shape_cast %4 : vector<8x384xf32> to vector<1x8x384xf32>
    tpu.vector_store %arg3[%c0_5, %c0_6, %c0_7], %7 {strides = array<i32>} : memref<1x8x384xf32, #tpu.memory_space<vmem>>, vector<1x8x384xf32>,
    return
  }
  func.func @transform_0(%arg0: i32) -> (i32, i32, i32) {
    %c0_i32 = arith.constant 0 : i32
    %c0_i32_0 = arith.constant 0 : i32
    %c0_i32_1 = arith.constant 0 : i32
    return %arg0, %c0_i32, %c0_i32_0 : i32, i32, i32
  }
  func.func @transform_1(%arg0: i32) -> (i32, i32, i32) {
    %c0_i32 = arith.constant 0 : i32
    %c0_i32_0 = arith.constant 0 : i32
    %c0_i32_1 = arith.constant 0 : i32
    return %arg0, %c0_i32, %c0_i32_0 : i32, i32, i32
  }
  func.func @transform_2(%arg0: i32) -> (i32, i32, i32) {
    %c0_i32 = arith.constant 0 : i32
    %c0_i32_0 = arith.constant 0 : i32
    %c0_i32_1 = arith.constant 0 : i32
    return %arg0, %c0_i32, %c0_i32_0 : i32, i32, i32
  }
}

module attributes {stable_mosaic.version = 11 : i64} {
  func.func @_bias_relu_kernel(%arg0: i32, %arg1: memref<2x64x64xf32, #tpu.memory_space<vmem>>, %arg2: memref<1x64xf32, #tpu.memory_space<vmem>>, %arg3: memref<2x64x64xf32, #tpu.memory_space<vmem>>) attributes {dimension_semantics = [#tpu.dimension_semantics<parallel>], iteration_bounds = array<i64: 1>, scalar_prefetch = 0 : i64, scratch_operands = 0 : i64, tpu.core_type = #tpu.core_type<tc>, window_params = [{transform_indices = @transform_0, window_bounds = array<i64: 2, 64, 64>}, {pipeline_mode = #tpu.pipeline_mode<synchronous>, transform_indices = @transform_1, window_bounds = array<i64: 1, 64>}, {transform_indices = @transform_2, window_bounds = array<i64: 2, 64, 64>}]} {
    %c0 = arith.constant 0 : index
    %c0_0 = arith.constant 0 : index
    %c0_1 = arith.constant 0 : index
    %0 = vector.load %arg1[%c0, %c0_0, %c0_1] : memref<2x64x64xf32, #tpu.memory_space<vmem>>, vector<2x64x64xf32>
    %c0_2 = arith.constant 0 : index
    %c0_3 = arith.constant 0 : index
    %1 = vector.load %arg2[%c0_2, %c0_3] : memref<1x64xf32, #tpu.memory_space<vmem>>, vector<1x64xf32>
    %2 = vector.shape_cast %1 : vector<1x64xf32> to vector<1x64x1xf32>
    %3 = vector.broadcast %2 : vector<1x64x1xf32> to vector<2x64x64xf32>
    %4 = arith.addf %0, %3 : vector<2x64x64xf32>
    %cst = arith.constant 0.000000e+00 : f32
    %5 = vector.broadcast %cst : f32 to vector<2x64x64xf32>
    %6 = arith.maximumf %4, %5 : vector<2x64x64xf32>
    %c0_4 = arith.constant 0 : index
    %c0_5 = arith.constant 0 : index
    %c0_6 = arith.constant 0 : index
    %7 = vector.load %arg3[%c0_4, %c0_5, %c0_6] : memref<2x64x64xf32, #tpu.memory_space<vmem>>, vector<2x64x64xf32>
    tpu.vector_store %arg3[%c0_4, %c0_5, %c0_6], %6 {strides = array<i32>} : memref<2x64x64xf32, #tpu.memory_space<vmem>>, vector<2x64x64xf32>,
    return
  }
  func.func @transform_0(%arg0: i32) -> (i32, i32, i32) {
    %c0_i32 = arith.constant 0 : i32
    %c0_i32_0 = arith.constant 0 : i32
    %c0_i32_1 = arith.constant 0 : i32
    return %c0_i32, %c0_i32_0, %arg0 : i32, i32, i32
  }
  func.func @transform_1(%arg0: i32) -> (i32, i32) {
    %c0_i32 = arith.constant 0 : i32
    %c0_i32_0 = arith.constant 0 : i32
    %c0_i32_1 = arith.constant 0 : i32
    return %c0_i32, %c0_i32_0 : i32, i32
  }
  func.func @transform_2(%arg0: i32) -> (i32, i32, i32) {
    %c0_i32 = arith.constant 0 : i32
    %c0_i32_0 = arith.constant 0 : i32
    %c0_i32_1 = arith.constant 0 : i32
    return %c0_i32, %c0_i32_0, %arg0 : i32, i32, i32
  }
}

module attributes {stable_mosaic.version = 11 : i64} {
  func.func @_spec_mm_kernel(%arg0: i32, %arg1: memref<1x8x384xbf16, #tpu.memory_space<vmem>>, %arg2: memref<1x384x384xbf16, #tpu.memory_space<vmem>>, %arg3: memref<1x8x384xf32, #tpu.memory_space<vmem>>) attributes {dimension_semantics = [#tpu.dimension_semantics<parallel>], iteration_bounds = array<i64: 2>, scalar_prefetch = 0 : i64, scratch_operands = 0 : i64, tpu.core_type = #tpu.core_type<tc>, window_params = [{transform_indices = @transform_0, window_bounds = array<i64: 1, 8, 384>}, {transform_indices = @transform_1, window_bounds = array<i64: 1, 384, 384>}, {transform_indices = @transform_2, window_bounds = array<i64: 1, 8, 384>}]} {
    %c0 = arith.constant 0 : index
    %c0_0 = arith.constant 0 : index
    %c0_1 = arith.constant 0 : index
    %0 = vector.load %arg1[%c0, %c0_0, %c0_1] : memref<1x8x384xbf16, #tpu.memory_space<vmem>>, vector<1x8x384xbf16>
    %1 = vector.shape_cast %0 : vector<1x8x384xbf16> to vector<8x384xbf16>
    %c0_2 = arith.constant 0 : index
    %c0_3 = arith.constant 0 : index
    %c0_4 = arith.constant 0 : index
    %2 = vector.load %arg2[%c0_2, %c0_3, %c0_4] : memref<1x384x384xbf16, #tpu.memory_space<vmem>>, vector<1x384x384xbf16>
    %3 = vector.shape_cast %2 : vector<1x384x384xbf16> to vector<384x384xbf16>
    %cst = arith.constant dense<0.000000e+00> : vector<8x384xf32>
    %4 = tpu.matmul %1, %3, %cst {dimension_numbers = #tpu.dot_dimension_numbers<[1], [0], [0], [1], [0, 0, 1, 1], [], []>} : vector<8x384xbf16>, vector<384x384xbf16>, vector<8x384xf32> -> vector<8x384xf32>
    %c0_5 = arith.constant 0 : index
    %c0_6 = arith.constant 0 : index
    %c0_7 = arith.constant 0 : index
    %5 = vector.load %arg3[%c0_5, %c0_6, %c0_7] : memref<1x8x384xf32, #tpu.memory_space<vmem>>, vector<1x8x384xf32>
    %6 = vector.shape_cast %5 : vector<1x8x384xf32> to vector<8x384xf32>
    %7 = vector.shape_cast %4 : vector<8x384xf32> to vector<1x8x384xf32>
    tpu.vector_store %arg3[%c0_5, %c0_6, %c0_7], %7 {strides = array<i32>} : memref<1x8x384xf32, #tpu.memory_space<vmem>>, vector<1x8x384xf32>,
    return
  }
  func.func @transform_0(%arg0: i32) -> (i32, i32, i32) {
    %c0_i32 = arith.constant 0 : i32
    %c0_i32_0 = arith.constant 0 : i32
    %c0_i32_1 = arith.constant 0 : i32
    return %arg0, %c0_i32, %c0_i32_0 : i32, i32, i32
  }
  func.func @transform_1(%arg0: i32) -> (i32, i32, i32) {
    %c0_i32 = arith.constant 0 : i32
    %c0_i32_0 = arith.constant 0 : i32
    %c0_i32_1 = arith.constant 0 : i32
    return %arg0, %c0_i32, %c0_i32_0 : i32, i32, i32
  }
  func.func @transform_2(%arg0: i32) -> (i32, i32, i32) {
    %c0_i32 = arith.constant 0 : i32
    %c0_i32_0 = arith.constant 0 : i32
    %c0_i32_1 = arith.constant 0 : i32
    return %arg0, %c0_i32, %c0_i32_0 : i32, i32, i32
  }
}

module attributes {stable_mosaic.version = 11 : i64} {
  func.func @_spec_mm_kernel(%arg0: i32, %arg1: memref<1x8x128xbf16, #tpu.memory_space<vmem>>, %arg2: memref<1x128x128xbf16, #tpu.memory_space<vmem>>, %arg3: memref<1x8x128xf32, #tpu.memory_space<vmem>>) attributes {dimension_semantics = [#tpu.dimension_semantics<parallel>], iteration_bounds = array<i64: 1>, scalar_prefetch = 0 : i64, scratch_operands = 0 : i64, tpu.core_type = #tpu.core_type<tc>, window_params = [{transform_indices = @transform_0, window_bounds = array<i64: 1, 8, 128>}, {transform_indices = @transform_1, window_bounds = array<i64: 1, 128, 128>}, {transform_indices = @transform_2, window_bounds = array<i64: 1, 8, 128>}]} {
    %c0 = arith.constant 0 : index
    %c0_0 = arith.constant 0 : index
    %c0_1 = arith.constant 0 : index
    %0 = vector.load %arg1[%c0, %c0_0, %c0_1] : memref<1x8x128xbf16, #tpu.memory_space<vmem>>, vector<1x8x128xbf16>
    %1 = vector.shape_cast %0 : vector<1x8x128xbf16> to vector<8x128xbf16>
    %c0_2 = arith.constant 0 : index
    %c0_3 = arith.constant 0 : index
    %c0_4 = arith.constant 0 : index
    %2 = vector.load %arg2[%c0_2, %c0_3, %c0_4] : memref<1x128x128xbf16, #tpu.memory_space<vmem>>, vector<1x128x128xbf16>
    %3 = vector.shape_cast %2 : vector<1x128x128xbf16> to vector<128x128xbf16>
    %cst = arith.constant dense<0.000000e+00> : vector<8x128xf32>
    %4 = tpu.matmul %1, %3, %cst {dimension_numbers = #tpu.dot_dimension_numbers<[1], [0], [0], [1], [0, 0, 1, 1], [], []>} : vector<8x128xbf16>, vector<128x128xbf16>, vector<8x128xf32> -> vector<8x128xf32>
    %c0_5 = arith.constant 0 : index
    %c0_6 = arith.constant 0 : index
    %c0_7 = arith.constant 0 : index
    %5 = vector.load %arg3[%c0_5, %c0_6, %c0_7] : memref<1x8x128xf32, #tpu.memory_space<vmem>>, vector<1x8x128xf32>
    %6 = vector.shape_cast %5 : vector<1x8x128xf32> to vector<8x128xf32>
    %7 = vector.shape_cast %4 : vector<8x128xf32> to vector<1x8x128xf32>
    tpu.vector_store %arg3[%c0_5, %c0_6, %c0_7], %7 {strides = array<i32>} : memref<1x8x128xf32, #tpu.memory_space<vmem>>, vector<1x8x128xf32>,
    return
  }
  func.func @transform_0(%arg0: i32) -> (i32, i32, i32) {
    %c0_i32 = arith.constant 0 : i32
    %c0_i32_0 = arith.constant 0 : i32
    %c0_i32_1 = arith.constant 0 : i32
    return %arg0, %c0_i32, %c0_i32_0 : i32, i32, i32
  }
  func.func @transform_1(%arg0: i32) -> (i32, i32, i32) {
    %c0_i32 = arith.constant 0 : i32
    %c0_i32_0 = arith.constant 0 : i32
    %c0_i32_1 = arith.constant 0 : i32
    return %arg0, %c0_i32, %c0_i32_0 : i32, i32, i32
  }
  func.func @transform_2(%arg0: i32) -> (i32, i32, i32) {
    %c0_i32 = arith.constant 0 : i32
    %c0_i32_0 = arith.constant 0 : i32
    %c0_i32_1 = arith.constant 0 : i32
    return %arg0, %c0_i32, %c0_i32_0 : i32, i32, i32
  }
}

module attributes {stable_mosaic.version = 11 : i64} {
  func.func @_bias_relu_kernel(%arg0: i32, %arg1: memref<2x64x8xf32, #tpu.memory_space<vmem>>, %arg2: memref<1x64xf32, #tpu.memory_space<vmem>>, %arg3: memref<2x64x8xf32, #tpu.memory_space<vmem>>) attributes {dimension_semantics = [#tpu.dimension_semantics<parallel>], iteration_bounds = array<i64: 1>, scalar_prefetch = 0 : i64, scratch_operands = 0 : i64, tpu.core_type = #tpu.core_type<tc>, window_params = [{transform_indices = @transform_0, window_bounds = array<i64: 2, 64, 8>}, {pipeline_mode = #tpu.pipeline_mode<synchronous>, transform_indices = @transform_1, window_bounds = array<i64: 1, 64>}, {transform_indices = @transform_2, window_bounds = array<i64: 2, 64, 8>}]} {
    %c0 = arith.constant 0 : index
    %c0_0 = arith.constant 0 : index
    %c0_1 = arith.constant 0 : index
    %0 = vector.load %arg1[%c0, %c0_0, %c0_1] : memref<2x64x8xf32, #tpu.memory_space<vmem>>, vector<2x64x8xf32>
    %c0_2 = arith.constant 0 : index
    %c0_3 = arith.constant 0 : index
    %1 = vector.load %arg2[%c0_2, %c0_3] : memref<1x64xf32, #tpu.memory_space<vmem>>, vector<1x64xf32>
    %2 = vector.shape_cast %1 : vector<1x64xf32> to vector<1x64x1xf32>
    %3 = vector.broadcast %2 : vector<1x64x1xf32> to vector<2x64x8xf32>
    %4 = arith.addf %0, %3 : vector<2x64x8xf32>
    %cst = arith.constant 0.000000e+00 : f32
    %5 = vector.broadcast %cst : f32 to vector<2x64x8xf32>
    %6 = arith.maximumf %4, %5 : vector<2x64x8xf32>
    %c0_4 = arith.constant 0 : index
    %c0_5 = arith.constant 0 : index
    %c0_6 = arith.constant 0 : index
    %7 = vector.load %arg3[%c0_4, %c0_5, %c0_6] : memref<2x64x8xf32, #tpu.memory_space<vmem>>, vector<2x64x8xf32>
    tpu.vector_store %arg3[%c0_4, %c0_5, %c0_6], %6 {strides = array<i32>} : memref<2x64x8xf32, #tpu.memory_space<vmem>>, vector<2x64x8xf32>,
    return
  }
  func.func @transform_0(%arg0: i32) -> (i32, i32, i32) {
    %c0_i32 = arith.constant 0 : i32
    %c0_i32_0 = arith.constant 0 : i32
    %c0_i32_1 = arith.constant 0 : i32
    return %c0_i32, %c0_i32_0, %arg0 : i32, i32, i32
  }
  func.func @transform_1(%arg0: i32) -> (i32, i32) {
    %c0_i32 = arith.constant 0 : i32
    %c0_i32_0 = arith.constant 0 : i32
    %c0_i32_1 = arith.constant 0 : i32
    return %c0_i32, %c0_i32_0 : i32, i32
  }
  func.func @transform_2(%arg0: i32) -> (i32, i32, i32) {
    %c0_i32 = arith.constant 0 : i32
    %c0_i32_0 = arith.constant 0 : i32
    %c0_i32_1 = arith.constant 0 : i32
    return %c0_i32, %c0_i32_0, %arg0 : i32, i32, i32
  }
}

module attributes {stable_mosaic.version = 11 : i64} {
  func.func @_spec_mm_kernel(%arg0: i32, %arg1: memref<1x8x128xbf16, #tpu.memory_space<vmem>>, %arg2: memref<1x128x256xbf16, #tpu.memory_space<vmem>>, %arg3: memref<1x8x256xf32, #tpu.memory_space<vmem>>) attributes {dimension_semantics = [#tpu.dimension_semantics<parallel>], iteration_bounds = array<i64: 1>, scalar_prefetch = 0 : i64, scratch_operands = 0 : i64, tpu.core_type = #tpu.core_type<tc>, window_params = [{transform_indices = @transform_0, window_bounds = array<i64: 1, 8, 128>}, {transform_indices = @transform_1, window_bounds = array<i64: 1, 128, 256>}, {transform_indices = @transform_2, window_bounds = array<i64: 1, 8, 256>}]} {
    %c0 = arith.constant 0 : index
    %c0_0 = arith.constant 0 : index
    %c0_1 = arith.constant 0 : index
    %0 = vector.load %arg1[%c0, %c0_0, %c0_1] : memref<1x8x128xbf16, #tpu.memory_space<vmem>>, vector<1x8x128xbf16>
    %1 = vector.shape_cast %0 : vector<1x8x128xbf16> to vector<8x128xbf16>
    %c0_2 = arith.constant 0 : index
    %c0_3 = arith.constant 0 : index
    %c0_4 = arith.constant 0 : index
    %2 = vector.load %arg2[%c0_2, %c0_3, %c0_4] : memref<1x128x256xbf16, #tpu.memory_space<vmem>>, vector<1x128x256xbf16>
    %3 = vector.shape_cast %2 : vector<1x128x256xbf16> to vector<128x256xbf16>
    %cst = arith.constant dense<0.000000e+00> : vector<8x256xf32>
    %4 = tpu.matmul %1, %3, %cst {dimension_numbers = #tpu.dot_dimension_numbers<[1], [0], [0], [1], [0, 0, 1, 1], [], []>} : vector<8x128xbf16>, vector<128x256xbf16>, vector<8x256xf32> -> vector<8x256xf32>
    %c0_5 = arith.constant 0 : index
    %c0_6 = arith.constant 0 : index
    %c0_7 = arith.constant 0 : index
    %5 = vector.load %arg3[%c0_5, %c0_6, %c0_7] : memref<1x8x256xf32, #tpu.memory_space<vmem>>, vector<1x8x256xf32>
    %6 = vector.shape_cast %5 : vector<1x8x256xf32> to vector<8x256xf32>
    %7 = vector.shape_cast %4 : vector<8x256xf32> to vector<1x8x256xf32>
    tpu.vector_store %arg3[%c0_5, %c0_6, %c0_7], %7 {strides = array<i32>} : memref<1x8x256xf32, #tpu.memory_space<vmem>>, vector<1x8x256xf32>,
    return
  }
  func.func @transform_0(%arg0: i32) -> (i32, i32, i32) {
    %c0_i32 = arith.constant 0 : i32
    %c0_i32_0 = arith.constant 0 : i32
    %c0_i32_1 = arith.constant 0 : i32
    return %arg0, %c0_i32, %c0_i32_0 : i32, i32, i32
  }
  func.func @transform_1(%arg0: i32) -> (i32, i32, i32) {
    %c0_i32 = arith.constant 0 : i32
    %c0_i32_0 = arith.constant 0 : i32
    %c0_i32_1 = arith.constant 0 : i32
    return %arg0, %c0_i32, %c0_i32_0 : i32, i32, i32
  }
  func.func @transform_2(%arg0: i32) -> (i32, i32, i32) {
    %c0_i32 = arith.constant 0 : i32
    %c0_i32_0 = arith.constant 0 : i32
    %c0_i32_1 = arith.constant 0 : i32
    return %arg0, %c0_i32, %c0_i32_0 : i32, i32, i32
  }
}

module attributes {stable_mosaic.version = 11 : i64} {
  func.func @_head_kernel(%arg0: i32, %arg1: memref<2x8x128xf32, #tpu.memory_space<vmem>>, %arg2: memref<1x8x1xf32, #tpu.memory_space<vmem>>, %arg3: memref<1x128xf32, #tpu.memory_space<vmem>>, %arg4: memref<1x128xf32, #tpu.memory_space<vmem>>, %arg5: memref<1x128xf32, #tpu.memory_space<vmem>>, %arg6: memref<1x1xf32, #tpu.memory_space<vmem>>, %arg7: memref<2x1xf32, #tpu.memory_space<vmem>>) attributes {dimension_semantics = [#tpu.dimension_semantics<arbitrary>], iteration_bounds = array<i64: 1>, scalar_prefetch = 0 : i64, scratch_operands = 0 : i64, tpu.core_type = #tpu.core_type<tc>, window_params = [{pipeline_mode = #tpu.pipeline_mode<synchronous>, transform_indices = @transform_0, window_bounds = array<i64: 2, 8, 128>}, {pipeline_mode = #tpu.pipeline_mode<synchronous>, transform_indices = @transform_1, window_bounds = array<i64: 1, 8, 1>}, {pipeline_mode = #tpu.pipeline_mode<synchronous>, transform_indices = @transform_2, window_bounds = array<i64: 1, 128>}, {pipeline_mode = #tpu.pipeline_mode<synchronous>, transform_indices = @transform_3, window_bounds = array<i64: 1, 128>}, {pipeline_mode = #tpu.pipeline_mode<synchronous>, transform_indices = @transform_4, window_bounds = array<i64: 1, 128>}, {pipeline_mode = #tpu.pipeline_mode<synchronous>, transform_indices = @transform_5, window_bounds = array<i64: 1, 1>}, {pipeline_mode = #tpu.pipeline_mode<synchronous>, transform_indices = @transform_6, window_bounds = array<i64: 2, 1>}]} {
    %c0 = arith.constant 0 : index
    %c0_0 = arith.constant 0 : index
    %c0_1 = arith.constant 0 : index
    %0 = vector.load %arg1[%c0, %c0_0, %c0_1] : memref<2x8x128xf32, #tpu.memory_space<vmem>>, vector<2x8x128xf32>
    %c0_2 = arith.constant 0 : index
    %c0_3 = arith.constant 0 : index
    %c0_4 = arith.constant 0 : index
    %1 = vector.load %arg2[%c0_2, %c0_3, %c0_4] : memref<1x8x1xf32, #tpu.memory_space<vmem>>, vector<1x8x1xf32>
    %2 = vector.broadcast %1 : vector<1x8x1xf32> to vector<2x8x128xf32>
    %3 = arith.mulf %0, %2 : vector<2x8x128xf32>
    %cst = arith.constant dense<0.000000e+00> : vector<2x128xf32>
    %4 = vector.multi_reduction <add>, %3, %cst [1] : vector<2x8x128xf32> to vector<2x128xf32>
    %c0_5 = arith.constant 0 : index
    %c0_6 = arith.constant 0 : index
    %5 = vector.load %arg3[%c0_5, %c0_6] : memref<1x128xf32, #tpu.memory_space<vmem>>, vector<1x128xf32>
    %6 = vector.broadcast %5 : vector<1x128xf32> to vector<2x128xf32>
    %7 = arith.mulf %4, %6 : vector<2x128xf32>
    %c0_7 = arith.constant 0 : index
    %c0_8 = arith.constant 0 : index
    %8 = vector.load %arg4[%c0_7, %c0_8] : memref<1x128xf32, #tpu.memory_space<vmem>>, vector<1x128xf32>
    %9 = vector.broadcast %8 : vector<1x128xf32> to vector<2x128xf32>
    %10 = arith.addf %7, %9 : vector<2x128xf32>
    %c0_9 = arith.constant 0 : index
    %c0_10 = arith.constant 0 : index
    %11 = vector.load %arg5[%c0_9, %c0_10] : memref<1x128xf32, #tpu.memory_space<vmem>>, vector<1x128xf32>
    %12 = vector.broadcast %11 : vector<1x128xf32> to vector<2x128xf32>
    %13 = arith.mulf %10, %12 : vector<2x128xf32>
    %cst_11 = arith.constant dense<0.000000e+00> : vector<2xf32>
    %14 = vector.multi_reduction <add>, %13, %cst_11 [1] : vector<2x128xf32> to vector<2xf32>
    %15 = vector.shape_cast %14 : vector<2xf32> to vector<2x1xf32>
    %c0_12 = arith.constant 0 : index
    %c0_13 = arith.constant 0 : index
    %16 = vector.load %arg6[%c0_12, %c0_13] : memref<1x1xf32, #tpu.memory_space<vmem>>, vector<1x1xf32>
    %17 = vector.broadcast %16 : vector<1x1xf32> to vector<2x1xf32>
    %18 = arith.addf %15, %17 : vector<2x1xf32>
    %c0_14 = arith.constant 0 : index
    %c0_15 = arith.constant 0 : index
    %19 = vector.load %arg7[%c0_14, %c0_15] : memref<2x1xf32, #tpu.memory_space<vmem>>, vector<2x1xf32>
    tpu.vector_store %arg7[%c0_14, %c0_15], %18 {strides = array<i32>} : memref<2x1xf32, #tpu.memory_space<vmem>>, vector<2x1xf32>,
    return
  }
  func.func @transform_0(%arg0: i32) -> (i32, i32, i32) {
    %c0_i32 = arith.constant 0 : i32
    %c0_i32_0 = arith.constant 0 : i32
    %c0_i32_1 = arith.constant 0 : i32
    %c0_i32_2 = arith.constant 0 : i32
    return %c0_i32, %c0_i32_0, %c0_i32_1 : i32, i32, i32
  }
  func.func @transform_1(%arg0: i32) -> (i32, i32, i32) {
    %c0_i32 = arith.constant 0 : i32
    %c0_i32_0 = arith.constant 0 : i32
    %c0_i32_1 = arith.constant 0 : i32
    %c0_i32_2 = arith.constant 0 : i32
    return %c0_i32, %c0_i32_0, %c0_i32_1 : i32, i32, i32
  }
  func.func @transform_2(%arg0: i32) -> (i32, i32) {
    %c0_i32 = arith.constant 0 : i32
    %c0_i32_0 = arith.constant 0 : i32
    %c0_i32_1 = arith.constant 0 : i32
    return %c0_i32, %c0_i32_0 : i32, i32
  }
  func.func @transform_3(%arg0: i32) -> (i32, i32) {
    %c0_i32 = arith.constant 0 : i32
    %c0_i32_0 = arith.constant 0 : i32
    %c0_i32_1 = arith.constant 0 : i32
    return %c0_i32, %c0_i32_0 : i32, i32
  }
  func.func @transform_4(%arg0: i32) -> (i32, i32) {
    %c0_i32 = arith.constant 0 : i32
    %c0_i32_0 = arith.constant 0 : i32
    %c0_i32_1 = arith.constant 0 : i32
    return %c0_i32, %c0_i32_0 : i32, i32
  }
  func.func @transform_5(%arg0: i32) -> (i32, i32) {
    %c0_i32 = arith.constant 0 : i32
    %c0_i32_0 = arith.constant 0 : i32
    %c0_i32_1 = arith.constant 0 : i32
    return %c0_i32, %c0_i32_0 : i32, i32
  }
  func.func @transform_6(%arg0: i32) -> (i32, i32) {
    %c0_i32 = arith.constant 0 : i32
    %c0_i32_0 = arith.constant 0 : i32
    %c0_i32_1 = arith.constant 0 : i32
    return %c0_i32, %c0_i32_0 : i32, i32
  }
}

module attributes {stable_mosaic.version = 11 : i64} {
  func.func @_bias_relu_kernel(%arg0: i32, %arg1: memref<2x128x8xf32, #tpu.memory_space<vmem>>, %arg2: memref<1x128xf32, #tpu.memory_space<vmem>>, %arg3: memref<2x128x8xf32, #tpu.memory_space<vmem>>) attributes {dimension_semantics = [#tpu.dimension_semantics<parallel>], iteration_bounds = array<i64: 1>, scalar_prefetch = 0 : i64, scratch_operands = 0 : i64, tpu.core_type = #tpu.core_type<tc>, window_params = [{transform_indices = @transform_0, window_bounds = array<i64: 2, 128, 8>}, {pipeline_mode = #tpu.pipeline_mode<synchronous>, transform_indices = @transform_1, window_bounds = array<i64: 1, 128>}, {transform_indices = @transform_2, window_bounds = array<i64: 2, 128, 8>}]} {
    %c0 = arith.constant 0 : index
    %c0_0 = arith.constant 0 : index
    %c0_1 = arith.constant 0 : index
    %0 = vector.load %arg1[%c0, %c0_0, %c0_1] : memref<2x128x8xf32, #tpu.memory_space<vmem>>, vector<2x128x8xf32>
    %c0_2 = arith.constant 0 : index
    %c0_3 = arith.constant 0 : index
    %1 = vector.load %arg2[%c0_2, %c0_3] : memref<1x128xf32, #tpu.memory_space<vmem>>, vector<1x128xf32>
    %2 = vector.shape_cast %1 : vector<1x128xf32> to vector<1x128x1xf32>
    %3 = vector.broadcast %2 : vector<1x128x1xf32> to vector<2x128x8xf32>
    %4 = arith.addf %0, %3 : vector<2x128x8xf32>
    %cst = arith.constant 0.000000e+00 : f32
    %5 = vector.broadcast %cst : f32 to vector<2x128x8xf32>
    %6 = arith.maximumf %4, %5 : vector<2x128x8xf32>
    %c0_4 = arith.constant 0 : index
    %c0_5 = arith.constant 0 : index
    %c0_6 = arith.constant 0 : index
    %7 = vector.load %arg3[%c0_4, %c0_5, %c0_6] : memref<2x128x8xf32, #tpu.memory_space<vmem>>, vector<2x128x8xf32>
    tpu.vector_store %arg3[%c0_4, %c0_5, %c0_6], %6 {strides = array<i32>} : memref<2x128x8xf32, #tpu.memory_space<vmem>>, vector<2x128x8xf32>,
    return
  }
  func.func @transform_0(%arg0: i32) -> (i32, i32, i32) {
    %c0_i32 = arith.constant 0 : i32
    %c0_i32_0 = arith.constant 0 : i32
    %c0_i32_1 = arith.constant 0 : i32
    return %c0_i32, %c0_i32_0, %arg0 : i32, i32, i32
  }
  func.func @transform_1(%arg0: i32) -> (i32, i32) {
    %c0_i32 = arith.constant 0 : i32
    %c0_i32_0 = arith.constant 0 : i32
    %c0_i32_1 = arith.constant 0 : i32
    return %c0_i32, %c0_i32_0 : i32, i32
  }
  func.func @transform_2(%arg0: i32) -> (i32, i32, i32) {
    %c0_i32 = arith.constant 0 : i32
    %c0_i32_0 = arith.constant 0 : i32
    %c0_i32_1 = arith.constant 0 : i32
    return %c0_i32, %c0_i32_0, %arg0 : i32, i32, i32
  }
}

</mosaic_0001>

<llo_original>
// kernel: _lambda_.15
$region0: #{_lambda_.15}
  #allocation0 [shape = 'u32[]', space=smem, size = 0x4, offset = 0x4, fixed_abs, tag = 'smem constant byte address 0x4 - core index']
  #allocation1 [shape = 'u32[144,128]{1,0:T(1,128)}', space=vmem, size = 0x12000, scoped, tag = 'internal scratch']
  %s0 = inlined_call_operand.vmem [shape: bf16[8,32,128], index: 0, kind: input, shape index: {}]
  %s1 = inlined_call_operand.vmem [shape: bf16[8,128,512], index: 1, kind: input, shape index: {}]
  %s2 = inlined_call_operand.vmem [shape: f32[8,32,512], index: 2, kind: output, shape index: {}]
  %s3 = sld [smem:[#allocation0]]
  $region41: #{_lambda_.15} parent=0
    _
  %s5 = ssub.s32 1, %s3
  %s6 = scalar_select 0, %s5, %s3
  loop: start=0, step=1, limit=10
  $region2: #{_lambda_.15} parent=0 // loop_pre_header
    _
  $region3: #{_lambda_.15} parent=0 // loop_header
    %s8 = sphi 0, %s12
    %p9 = scmp.ge.s32.totalorder %s8, 10
    %s18 = sphi 0, %s20
    %s21 = sphi 0, %s18
    %s22 = sphi 0, %s21
    %s38 = sphi 0, %s22
    %s44 = sphi 0, %s46
    %s47 = sphi 0, %s44
    %s48 = sphi 0, %s47
    %s64 = sphi 0, %s48
    %s70 = sphi 0, %s72
    %s73 = sphi 0, %s70
    %s74 = sphi 0, %s73
    %s90 = sphi 0, %s74
  $region4: #{_lambda_.15} parent=0 // loop_header_branch
    %11 = sbr.rel (%p9) target = $region8
  $region5: #{_lambda_.15} parent=0 // loop_body
    %s13 = ssub.s32 %s8, 1
    %s14 = ssub.s32 %s8, 2
    %s15 = sadd.s32 %s8, 1
    %s16 = ssub.s32 %s8, %s15
    %p17 = scmp.eq.s32.totalorder %s16, 0
    %s19 = sadd.s32 %s18, 1
    %s20 = scalar_select %p17, %s18, %s19
    %p23 = pneg %p17
    %p24 = scmp.eq.s32.totalorder %s8, 7
    %p25 = por %p23, %p24
    %p26 = scmp.ne.s32.totalorder %s18, %s21
    %p27 = scmp.eq.s32.totalorder %s8, 0
    %p28 = por %p26, %p27
    %p29 = scmp.ne.s32.totalorder %s18, %s21
    %p30 = scmp.eq.s32.totalorder %s13, 7
    %p31 = por %p29, %p30
    %p32 = scmp.ne.s32.totalorder %s21, %s22
    %p33 = scmp.eq.s32.totalorder %s13, 0
    %p34 = por %p32, %p33
    %p35 = scmp.ne.s32.totalorder %s21, %s22
    %p36 = scmp.eq.s32.totalorder %s14, 7
    %p37 = por %p35, %p36
    %p39 = scmp.ne.s32.totalorder %s22, %s38
    %p40 = scmp.eq.s32.totalorder %s14, 0
    %p41 = por %p39, %p40
    %s42 = ssub.s32 %s8, %s15
    %p43 = scmp.eq.s32.totalorder %s42, 0
    %s45 = sadd.s32 %s44, 1
    %s46 = scalar_select %p43, %s44, %s45
    %p49 = pneg %p43
    %p50 = scmp.eq.s32.totalorder %s8, 7
    %p51 = por %p49, %p50
    %p52 = scmp.ne.s32.totalorder %s44, %s47
    %p53 = scmp.eq.s32.totalorder %s8, 0
    %p54 = por %p52, %p53
    %p55 = scmp.ne.s32.totalorder %s44, %s47
    %p56 = scmp.eq.s32.totalorder %s13, 7
    %p57 = por %p55, %p56
    %p58 = scmp.ne.s32.totalorder %s47, %s48
    %p59 = scmp.eq.s32.totalorder %s13, 0
    %p60 = por %p58, %p59
    %p61 = scmp.ne.s32.totalorder %s47, %s48
    %p62 = scmp.eq.s32.totalorder %s14, 7
    %p63 = por %p61, %p62
    %p65 = scmp.ne.s32.totalorder %s48, %s64
    %p66 = scmp.eq.s32.totalorder %s14, 0
    %p67 = por %p65, %p66
    %s68 = ssub.s32 %s8, %s15
    %p69 = scmp.eq.s32.totalorder %s68, 0
    %s71 = sadd.s32 %s70, 1
    %s72 = scalar_select %p69, %s70, %s71
    %p75 = pneg %p69
    %p76 = scmp.eq.s32.totalorder %s8, 7
    %p77 = por %p75, %p76
    %p78 = scmp.ne.s32.totalorder %s70, %s73
    %p79 = scmp.eq.s32.totalorder %s8, 0
    %p80 = por %p78, %p79
    %p81 = scmp.ne.s32.totalorder %s70, %s73
    %p82 = scmp.eq.s32.totalorder %s13, 7
    %p83 = por %p81, %p82
    %p84 = scmp.ne.s32.totalorder %s73, %s74
    %p85 = scmp.eq.s32.totalorder %s13, 0
    %p86 = por %p84, %p85
    %p87 = scmp.ne.s32.totalorder %s73, %s74
    %p88 = scmp.eq.s32.totalorder %s14, 7
    %p89 = por %p87, %p88
    %p91 = scmp.ne.s32.totalorder %s74, %s90
    %p92 = scmp.eq.s32.totalorder %s14, 0
    %p93 = por %p91, %p92
    %p94 = scmp.le.s32.totalorder 1, %s8
    %p95 = scmp.lt.s32.totalorder %s8, 9
    %p96 = pnand %p94, %p95
    %p97 = pneg %p96
    // Predicated region
    $region9: #{_lambda_.15} parent=5 // pred_check
      _
    $region10: #{_lambda_.15} parent=5 // pred_check_branch
      %99 = sbr.rel (%p96) target = $region12
    $region11: #{_lambda_.15} parent=5 // pred_region
      %s100 = ssub.s32 %s8, 1
    $region12: #{_lambda_.15} parent=5 // pred_fallthru
      _
    %p101 = scmp.lt.s32.totalorder %s8, 8
    // Predicated region
    $region13: #{_lambda_.15} parent=5 // pred_check
      %p102 = pneg %p101
    $region14: #{_lambda_.15} parent=5 // pred_check_branch
      %104 = sbr.rel (%p102) target = $region16
    $region15: #{_lambda_.15} parent=5 // pred_region
      // Predicated region
      $region17: #{_lambda_.15} parent=15 // pred_check
        %p105 = pneg %p28
      $region18: #{_lambda_.15} parent=15 // pred_check_branch
        %107 = sbr.rel (%p105) target = $region20
      $region19: #{_lambda_.15} parent=15 // pred_region
        %p108 = scmp.lt.s32.totalorder %s8, 7
        %s109 = scalar_select %p108, %s8, 7
        %s110 = smul.addr %s109, 4
        %s111 = smul.addr %s110, 4
        %s112 = scalar_lea.vmem %s0, %s111
      $region20: #{_lambda_.15} parent=15 // pred_fallthru
        _
      // Predicated region
      $region21: #{_lambda_.15} parent=15 // pred_check
        %p113 = pneg %p54
      $region22: #{_lambda_.15} parent=15 // pred_check_branch
        %115 = sbr.rel (%p113) target = $region24
      $region23: #{_lambda_.15} parent=15 // pred_region
        %p116 = scmp.lt.s32.totalorder %s8, 7
        %s117 = scalar_select %p116, %s8, 7
        %s118 = smul.addr %s117, 64
        %s119 = smul.addr %s118, 4
        %s120 = scalar_lea.vmem %s1, %s119
      $region24: #{_lambda_.15} parent=15 // pred_fallthru
        _
    $region16: #{_lambda_.15} parent=5 // pred_fallthru
      _
    %p121 = scmp.le.s32.totalorder 1, %s8
    %p122 = scmp.lt.s32.totalorder %s8, 9
    %p123 = pnand %p121, %p122
    %p124 = pneg %p123
    // Predicated region
    $region25: #{_lambda_.15} parent=5 // pred_check
      _
    $region26: #{_lambda_.15} parent=5 // pred_check_branch
      %126 = sbr.rel (%p123) target = $region28
    $region27: #{_lambda_.15} parent=5 // pred_region
      %s127 = ssub.s32 %s8, 1
      %p128 = scmp.lt.s32.totalorder %s13, 7
      %s129 = scalar_select %p128, %s13, 7
      %s130 = smul.addr %s129, 4
      %s131 = smul.addr %s130, 4
      %s132 = scalar_lea.vmem %s0, %s131
      %p133 = pneg %p34
      %p134 = pneg %p31
      %p135 = scmp.lt.s32.totalorder %s13, 7
      %s136 = scalar_select %p135, %s13, 7
      %s137 = smul.addr %s136, 64
      %s138 = smul.addr %s137, 4
      %s139 = scalar_lea.vmem %s1, %s138
      %p140 = pneg %p60
      %p141 = pneg %p57
      %p142 = pneg %p86
      %p143 = pneg %p83
      %p144 = scmp.lt.s32.totalorder %s13, 7
      %s145 = scalar_select %p144, %s13, 7
      %s146 = smul.addr %s145, 16
      %s147 = smul.addr %s146, 8
      %s148 = scalar_lea.vmem %s2, %s147
      %p149 = scmp.lt.s32.totalorder %s13, 7
      %s150 = scalar_select %p149, %s13, 7
      %s151 = smul.addr %s150, 4
      %s152 = smul.addr %s151, 4
      %s153 = scalar_lea.vmem %s0, %s152
      %p154 = scmp.lt.s32.totalorder %s13, 7
      %s155 = scalar_select %p154, %s13, 7
      %s156 = smul.addr %s155, 64
      %s157 = smul.addr %s156, 4
      %s158 = scalar_lea.vmem %s1, %s157
      %p159 = scmp.lt.s32.totalorder %s13, 7
      %s160 = scalar_select %p159, %s13, 7
      %s161 = smul.addr %s160, 16
      %s162 = smul.addr %s161, 8
      %s163 = scalar_lea.vmem %s2, %s162
      %v165 = vld [vmem:[%s153] sm:$0xf]
      %v166 = vld [vmem:[%s153 + $0x4] sm:$0xf]
      %v167 = vld [vmem:[%s153 + $0x8] sm:$0xf]
      %v168 = vld [vmem:[%s153 + $0xc] sm:$0xf]
      %v169 = vld [vmem:[%s158] sm:$0xff]
      %v170 = vld [vmem:[%s158 + $0x8] sm:$0xff]
      %v171 = vld [vmem:[%s158 + $0x10] sm:$0xff]
      %v172 = vld [vmem:[%s158 + $0x18] sm:$0xff]
      %v173 = vld [vmem:[%s158 + $0x20] sm:$0xff]
      %v174 = vld [vmem:[%s158 + $0x28] sm:$0xff]
      %v175 = vld [vmem:[%s158 + $0x30] sm:$0xff]
      %v176 = vld [vmem:[%s158 + $0x38] sm:$0xff]
      %v177 = vld [vmem:[%s158 + $0x40] sm:$0xff]
      %v178 = vld [vmem:[%s158 + $0x48] sm:$0xff]
      %v179 = vld [vmem:[%s158 + $0x50] sm:$0xff]
      %v180 = vld [vmem:[%s158 + $0x58] sm:$0xff]
      %v181 = vld [vmem:[%s158 + $0x60] sm:$0xff]
      %v182 = vld [vmem:[%s158 + $0x68] sm:$0xff]
      %v183 = vld [vmem:[%s158 + $0x70] sm:$0xff]
      %v184 = vld [vmem:[%s158 + $0x78] sm:$0xff]
      %v185 = vld [vmem:[%s158 + $0x80] sm:$0xff]
      %v186 = vld [vmem:[%s158 + $0x88] sm:$0xff]
      %v187 = vld [vmem:[%s158 + $0x90] sm:$0xff]
      %v188 = vld [vmem:[%s158 + $0x98] sm:$0xff]
      %v189 = vld [vmem:[%s158 + $0xa0] sm:$0xff]
      %v190 = vld [vmem:[%s158 + $0xa8] sm:$0xff]
      %v191 = vld [vmem:[%s158 + $0xb0] sm:$0xff]
      %v192 = vld [vmem:[%s158 + $0xb8] sm:$0xff]
      %v193 = vld [vmem:[%s158 + $0xc0] sm:$0xff]
      %v194 = vld [vmem:[%s158 + $0xc8] sm:$0xff]
      %v195 = vld [vmem:[%s158 + $0xd0] sm:$0xff]
      %v196 = vld [vmem:[%s158 + $0xd8] sm:$0xff]
      %v197 = vld [vmem:[%s158 + $0xe0] sm:$0xff]
      %v198 = vld [vmem:[%s158 + $0xe8] sm:$0xff]
      %v199 = vld [vmem:[%s158 + $0xf0] sm:$0xff]
      %v200 = vld [vmem:[%s158 + $0xf8] sm:$0xff]
      %v205 = vunpack.c.l.b16 %v165
      %v206 = vunpack.c.l.b16 %v166
      %v207 = vunpack.c.l.b16 %v167
      %v208 = vunpack.c.l.b16 %v168
      %v209 = vpack.c.b16 %v206, %v205
      %v210 = vpack.c.b16 %v208, %v207
      %v245 = vunpack.c.l.b16 %v169
      %v246 = vunpack.c.h.b16 %v169
      %v247 = vunpack.c.l.b16 %v170
      %v248 = vunpack.c.h.b16 %v170
      %v249 = vunpack.c.l.b16 %v171
      %v250 = vunpack.c.h.b16 %v171
      %v251 = vunpack.c.l.b16 %v172
      %v252 = vunpack.c.h.b16 %v172
      %v253 = vunpack.c.l.b16 %v173
      %v254 = vunpack.c.h.b16 %v173
      %v255 = vunpack.c.l.b16 %v174
      %v256 = vunpack.c.h.b16 %v174
      %v257 = vunpack.c.l.b16 %v175
      %v258 = vunpack.c.h.b16 %v175
      %v259 = vunpack.c.l.b16 %v176
      %v260 = vunpack.c.h.b16 %v176
      %v261 = vunpack.c.l.b16 %v177
      %v262 = vunpack.c.h.b16 %v177
      %v263 = vunpack.c.l.b16 %v178
      %v264 = vunpack.c.h.b16 %v178
      %v265 = vunpack.c.l.b16 %v179
      %v266 = vunpack.c.h.b16 %v179
      %v267 = vunpack.c.l.b16 %v180
      %v268 = vunpack.c.h.b16 %v180
      %v269 = vunpack.c.l.b16 %v181
      %v270 = vunpack.c.h.b16 %v181
      %v271 = vunpack.c.l.b16 %v182
      %v272 = vunpack.c.h.b16 %v182
      %v273 = vunpack.c.l.b16 %v183
      %v274 = vunpack.c.h.b16 %v183
      %v275 = vunpack.c.l.b16 %v184
      %v276 = vunpack.c.h.b16 %v184
      %v277 = vunpack.c.l.b16 %v185
      %v278 = vunpack.c.h.b16 %v185
      %v279 = vunpack.c.l.b16 %v186
      %v280 = vunpack.c.h.b16 %v186
      %v281 = vunpack.c.l.b16 %v187
      %v282 = vunpack.c.h.b16 %v187
      %v283 = vunpack.c.l.b16 %v188
      %v284 = vunpack.c.h.b16 %v188
      %v285 = vunpack.c.l.b16 %v189
      %v286 = vunpack.c.h.b16 %v189
      %v287 = vunpack.c.l.b16 %v190
      %v288 = vunpack.c.h.b16 %v190
      %v289 = vunpack.c.l.b16 %v191
      %v290 = vunpack.c.h.b16 %v191
      %v291 = vunpack.c.l.b16 %v192
      %v292 = vunpack.c.h.b16 %v192
      %v293 = vunpack.c.l.b16 %v193
      %v294 = vunpack.c.h.b16 %v193
      %v295 = vunpack.c.l.b16 %v194
      %v296 = vunpack.c.h.b16 %v194
      %v297 = vunpack.c.l.b16 %v195
      %v298 = vunpack.c.h.b16 %v195
      %v299 = vunpack.c.l.b16 %v196
      %v300 = vunpack.c.h.b16 %v196
      %v301 = vunpack.c.l.b16 %v197
      %v302 = vunpack.c.h.b16 %v197
      %v303 = vunpack.c.l.b16 %v198
      %v304 = vunpack.c.h.b16 %v198
      %v305 = vunpack.c.l.b16 %v199
      %v306 = vunpack.c.h.b16 %v199
      %v307 = vunpack.c.l.b16 %v200
      %v308 = vunpack.c.h.b16 %v200
      %v309 = vpack.c.b16 %v249, %v245
      %v310 = vpack.c.b16 %v250, %v246
      %v311 = vpack.c.b16 %v251, %v247
      %v312 = vpack.c.b16 %v252, %v248
      %v313 = vpack.c.b16 %v257, %v253
      %v314 = vpack.c.b16 %v258, %v254
      %v315 = vpack.c.b16 %v259, %v255
      %v316 = vpack.c.b16 %v260, %v256
      %v317 = vpack.c.b16 %v265, %v261
      %v318 = vpack.c.b16 %v266, %v262
      %v319 = vpack.c.b16 %v267, %v263
      %v320 = vpack.c.b16 %v268, %v264
      %v321 = vpack.c.b16 %v273, %v269
      %v322 = vpack.c.b16 %v274, %v270
      %v323 = vpack.c.b16 %v275, %v271
      %v324 = vpack.c.b16 %v276, %v272
      %v325 = vpack.c.b16 %v281, %v277
      %v326 = vpack.c.b16 %v282, %v278
      %v327 = vpack.c.b16 %v283, %v279
      %v328 = vpack.c.b16 %v284, %v280
      %v329 = vpack.c.b16 %v289, %v285
      %v330 = vpack.c.b16 %v290, %v286
      %v331 = vpack.c.b16 %v291, %v287
      %v332 = vpack.c.b16 %v292, %v288
      %v333 = vpack.c.b16 %v297, %v293
      %v334 = vpack.c.b16 %v298, %v294
      %v335 = vpack.c.b16 %v299, %v295
      %v336 = vpack.c.b16 %v300, %v296
      %v337 = vpack.c.b16 %v305, %v301
      %v338 = vpack.c.b16 %v306, %v302
      %v339 = vpack.c.b16 %v307, %v303
      %v340 = vpack.c.b16 %v308, %v304
      %373 = vmatprep.subr.bf16.mxu0 %v310
      %374 = vmatpush1.bf16.msra.mxu0 %v309
      %375 = vmatprep.subr.bf16.mxu0 %v314
      %376 = vmatpush1.bf16.msra.mxu0 %v313
      %377 = vmatprep.subr.bf16.mxu0 %v318
      %378 = vmatpush1.bf16.msra.mxu0 %v317
      %379 = vmatprep.subr.bf16.mxu0 %v322
      %380 = vmatpush1.bf16.msra.mxu0 %v321
      %381 = vmatprep.subr.bf16.mxu0 %v326
      %382 = vmatpush1.bf16.msra.mxu0 %v325
      %383 = vmatprep.subr.bf16.mxu0 %v330
      %384 = vmatpush1.bf16.msra.mxu0 %v329
      %385 = vmatprep.subr.bf16.mxu0 %v334
      %386 = vmatpush1.bf16.msra.mxu0 %v333
      %387 = vmatprep.subr.bf16.mxu0 %v338
      %388 = vmatpush1.bf16.msra.mxu0 %v337
      %389 = vmatprep.subr.bf16.mxu0 0
      %390 = vmatpush1.bf16.msra.mxu0 0
      %391 = vmatprep.subr.bf16.mxu0 0
      %392 = vmatpush1.bf16.msra.mxu0 0
      %393 = vmatprep.subr.bf16.mxu0 0
      %394 = vmatpush1.bf16.msra.mxu0 0
      %395 = vmatprep.subr.bf16.mxu0 0
      %396 = vmatpush1.bf16.msra.mxu0 0
      %397 = vmatprep.subr.bf16.mxu0 0
      %398 = vmatpush1.bf16.msra.mxu0 0
      %399 = vmatprep.subr.bf16.mxu0 0
      %400 = vmatpush1.bf16.msra.mxu0 0
      %401 = vmatprep.subr.bf16.mxu0 0
      %402 = vmatpush1.bf16.msra.mxu0 0
      %403 = vmatprep.subr.bf16.mxu0 0
      %404 = vmatpush1.bf16.msra.mxu0 0
      %405 = vmatprep.mubr.bf16.mxu0 0
      %406 = vmatmul.mubr.bf16.gmra.mrb[0].mxu0 %v209
      %v407 = vpop.f32.mrb[0].mxu0
      %v408 = vadd.f32 0.0, %v407
      %v409 = vpop.f32.mrb[0].mxu0
      %v410 = vadd.f32 0.0, %v409
      %v411 = vpop.f32.mrb[0].mxu0
      %v412 = vadd.f32 0.0, %v411
      %v413 = vpop.f32.mrb[0].mxu0
      %v414 = vadd.f32 0.0, %v413
      %415 = vmatprep.mubr.bf16.mxu0 0
      %416 = vmatmul.mubr.bf16.gmra.mrb[0].mxu0 %v210
      %v417 = vpop.f32.mrb[0].mxu0
      %v418 = vadd.f32 0.0, %v417
      %v419 = vpop.f32.mrb[0].mxu0
      %v420 = vadd.f32 0.0, %v419
      %v421 = vpop.f32.mrb[0].mxu0
      %v422 = vadd.f32 0.0, %v421
      %v423 = vpop.f32.mrb[0].mxu0
      %v424 = vadd.f32 0.0, %v423
      %425 = vdwg.mxu0
      %426 = vmatprep.subr.bf16.mxu0 %v312
      %427 = vmatpush1.bf16.msra.mxu0 %v311
      %428 = vmatprep.subr.bf16.mxu0 %v316
      %429 = vmatpush1.bf16.msra.mxu0 %v315
      %430 = vmatprep.subr.bf16.mxu0 %v320
      %431 = vmatpush1.bf16.msra.mxu0 %v319
      %432 = vmatprep.subr.bf16.mxu0 %v324
      %433 = vmatpush1.bf16.msra.mxu0 %v323
      %434 = vmatprep.subr.bf16.mxu0 %v328
      %435 = vmatpush1.bf16.msra.mxu0 %v327
      %436 = vmatprep.subr.bf16.mxu0 %v332
      %437 = vmatpush1.bf16.msra.mxu0 %v331
      %438 = vmatprep.subr.bf16.mxu0 %v336
      %439 = vmatpush1.bf16.msra.mxu0 %v335
      %440 = vmatprep.subr.bf16.mxu0 %v340
      %441 = vmatpush1.bf16.msra.mxu0 %v339
      %442 = vmatprep.subr.bf16.mxu0 0
      %443 = vmatpush1.bf16.msra.mxu0 0
      %444 = vmatprep.subr.bf16.mxu0 0
      %445 = vmatpush1.bf16.msra.mxu0 0
      %446 = vmatprep.subr.bf16.mxu0 0
      %447 = vmatpush1.bf16.msra.mxu0 0
      %448 = vmatprep.subr.bf16.mxu0 0
      %449 = vmatpush1.bf16.msra.mxu0 0
      %450 = vmatprep.subr.bf16.mxu0 0
      %451 = vmatpush1.bf16.msra.mxu0 0
      %452 = vmatprep.subr.bf16.mxu0 0
      %453 = vmatpush1.bf16.msra.mxu0 0
      %454 = vmatprep.subr.bf16.mxu0 0
      %455 = vmatpush1.bf16.msra.mxu0 0
      %456 = vmatprep.subr.bf16.mxu0 0
      %457 = vmatpush1.bf16.msra.mxu0 0
      %458 = vmatprep.mubr.bf16.mxu0 0
      %459 = vmatmul.mubr.bf16.gmra.mrb[0].mxu0 %v209
      %v460 = vpop.f32.mrb[0].mxu0
      %v461 = vadd.f32 0.0, %v460
      %v462 = vpop.f32.mrb[0].mxu0
      %v463 = vadd.f32 0.0, %v462
      %v464 = vpop.f32.mrb[0].mxu0
      %v465 = vadd.f32 0.0, %v464
      %v466 = vpop.f32.mrb[0].mxu0
      %v467 = vadd.f32 0.0, %v466
      %468 = vmatprep.mubr.bf16.mxu0 0
      %469 = vmatmul.mubr.bf16.gmra.mrb[0].mxu0 %v210
      %v470 = vpop.f32.mrb[0].mxu0
      %v471 = vadd.f32 0.0, %v470
      %v472 = vpop.f32.mrb[0].mxu0
      %v473 = vadd.f32 0.0, %v472
      %v474 = vpop.f32.mrb[0].mxu0
      %v475 = vadd.f32 0.0, %v474
      %v476 = vpop.f32.mrb[0].mxu0
      %v477 = vadd.f32 0.0, %v476
      %478 = vdwg.mxu0
      %479 = vst [vmem:[%s163] sm:$0xff] %v408
      %480 = vst [vmem:[%s163 + $0x8] sm:$0xff] %v410
      %481 = vst [vmem:[%s163 + $0x10] sm:$0xff] %v461
      %482 = vst [vmem:[%s163 + $0x18] sm:$0xff] %v463
      %483 = vst [vmem:[%s163 + $0x20] sm:$0xff] %v412
      %484 = vst [vmem:[%s163 + $0x28] sm:$0xff] %v414
      %485 = vst [vmem:[%s163 + $0x30] sm:$0xff] %v465
      %486 = vst [vmem:[%s163 + $0x38] sm:$0xff] %v467
      %487 = vst [vmem:[%s163 + $0x40] sm:$0xff] %v418
      %488 = vst [vmem:[%s163 + $0x48] sm:$0xff] %v420
      %489 = vst [vmem:[%s163 + $0x50] sm:$0xff] %v471
      %490 = vst [vmem:[%s163 + $0x58] sm:$0xff] %v473
      %491 = vst [vmem:[%s163 + $0x60] sm:$0xff] %v422
      %492 = vst [vmem:[%s163 + $0x68] sm:$0xff] %v424
      %493 = vst [vmem:[%s163 + $0x70] sm:$0xff] %v475
      %494 = vst [vmem:[%s163 + $0x78] sm:$0xff] %v477
      %p495 = scmp.lt.s32.totalorder %s13, 7
      %s496 = scalar_select %p495, %s13, 7
      %s497 = smul.addr %s496, 16
      %s498 = smul.addr %s497, 8
      %s499 = scalar_lea.vmem %s2, %s498
      // Predicated region
      $region29: #{_lambda_.15} parent=27 // pred_check
        %p500 = pneg %p83
      $region30: #{_lambda_.15} parent=27 // pred_check_branch
        %502 = sbr.rel (%p500) target = $region32
      $region31: #{_lambda_.15} parent=27 // pred_region
        _
      $region32: #{_lambda_.15} parent=27 // pred_fallthru
        _
    $region28: #{_lambda_.15} parent=5 // pred_fallthru
      _
    %p503 = scmp.le.s32.totalorder 2, %s8
    // Predicated region
    $region33: #{_lambda_.15} parent=5 // pred_check
      %p504 = pneg %p503
    $region34: #{_lambda_.15} parent=5 // pred_check_branch
      %506 = sbr.rel (%p504) target = $region36
    $region35: #{_lambda_.15} parent=5 // pred_region
      %s507 = ssub.s32 %s8, 2
      // Predicated region
      $region37: #{_lambda_.15} parent=35 // pred_check
        %p508 = pneg %p89
      $region38: #{_lambda_.15} parent=35 // pred_check_branch
        %510 = sbr.rel (%p508) target = $region40
      $region39: #{_lambda_.15} parent=35 // pred_region
        %p511 = scmp.lt.s32.totalorder %s14, 7
        %s512 = scalar_select %p511, %s14, 7
        %s513 = smul.addr %s512, 16
        %s514 = smul.addr %s513, 8
        %s515 = scalar_lea.vmem %s2, %s514
      $region40: #{_lambda_.15} parent=35 // pred_fallthru
        _
    $region36: #{_lambda_.15} parent=5 // pred_fallthru
      _
  $region6: #{_lambda_.15} parent=0 // loop_footer
    %s12 = sadd.s32 1, %s8
  $region7: #{_lambda_.15} parent=0 // loop_footer_branch
    %7 = sbr.rel target = $region3
  $region8: #{_lambda_.15} parent=0 // loop_exit
    _

// kernel: _lambda_.16
$region0: #{_lambda_.16}
  #allocation0 [shape = 'u32[]', space=smem, size = 0x4, offset = 0x4, fixed_abs, tag = 'smem constant byte address 0x4 - core index']
  #allocation1 [shape = 'u32[144,128]{1,0:T(1,128)}', space=vmem, size = 0x12000, scoped, tag = 'internal scratch']
  %s0 = inlined_call_operand.vmem [shape: f32[2,16,4096], index: 0, kind: input, shape index: {}]
  %s1 = inlined_call_operand.vmem [shape: f32[1,16], index: 1, kind: input, shape index: {}]
  %s2 = inlined_call_operand.vmem [shape: f32[2,16,4096], index: 2, kind: output, shape index: {}]
  %s3 = sld [smem:[#allocation0]]
  $region83: #{_lambda_.16} parent=0
    _
  %s5 = ssub.s32 1, %s3
  %s6 = scalar_select 0, %s5, %s3
  $region1: #{_lambda_.16} parent=0
    #allocation2 [shape = 'u8[524288]{0}', space=vmem, size = 0x80000, scoped, tag = 'input window, operand 0']
    #allocation3 [shape = 'u8[524288]{0}', space=vmem, size = 0x80000, scoped, tag = 'output window, operand 0']
    loop: start=0, step=1, limit=4
    $region2: #{_lambda_.16} parent=1 // loop_pre_header
      _
    $region3: #{_lambda_.16} parent=1 // loop_header
      %s8 = sphi 0, %s12
      %p9 = scmp.ge.s32.totalorder %s8, 4
      %s18 = sphi 0, %s20
      %s21 = sphi 0, %s18
      %s22 = sphi 0, %s21
      %s38 = sphi 0, %s22
      %s42 = sphi 0, %s42
      %s44 = sphi 0, %s42
      %s45 = sphi 0, %s44
      %s59 = sphi 0, %s45
      %s65 = sphi 0, %s67
      %s68 = sphi 0, %s65
      %s69 = sphi 0, %s68
      %s85 = sphi 0, %s69
    $region4: #{_lambda_.16} parent=1 // loop_header_branch
      %11 = sbr.rel (%p9) target = $region8
    $region5: #{_lambda_.16} parent=1 // loop_body
      %s13 = ssub.s32 %s8, 1
      %s14 = ssub.s32 %s8, 2
      %s15 = sadd.s32 %s8, 1
      %s16 = ssub.s32 %s8, %s15
      %p17 = scmp.eq.s32.totalorder %s16, 0
      %s19 = sadd.s32 %s18, 1
      %s20 = scalar_select %p17, %s18, %s19
      %p23 = pneg %p17
      %p24 = scmp.eq.s32.totalorder %s8, 1
      %p25 = por %p23, %p24
      %p26 = scmp.ne.s32.totalorder %s18, %s21
      %p27 = scmp.eq.s32.totalorder %s8, 0
      %p28 = por %p26, %p27
      %p29 = scmp.ne.s32.totalorder %s18, %s21
      %p30 = scmp.eq.s32.totalorder %s13, 1
      %p31 = por %p29, %p30
      %p32 = scmp.ne.s32.totalorder %s21, %s22
      %p33 = scmp.eq.s32.totalorder %s13, 0
      %p34 = por %p32, %p33
      %p35 = scmp.ne.s32.totalorder %s21, %s22
      %p36 = scmp.eq.s32.totalorder %s14, 1
      %p37 = por %p35, %p36
      %p39 = scmp.ne.s32.totalorder %s22, %s38
      %p40 = scmp.eq.s32.totalorder %s14, 0
      %p41 = por %p39, %p40
      %s43 = sadd.s32 %s42, 1
      %p46 = scmp.eq.s32.totalorder %s8, 1
      %p47 = scmp.ne.s32.totalorder %s42, %s44
      %p48 = scmp.eq.s32.totalorder %s8, 0
      %p49 = por %p47, %p48
      %p50 = scmp.ne.s32.totalorder %s42, %s44
      %p51 = scmp.eq.s32.totalorder %s13, 1
      %p52 = por %p50, %p51
      %p53 = scmp.ne.s32.totalorder %s44, %s45
      %p54 = scmp.eq.s32.totalorder %s13, 0
      %p55 = por %p53, %p54
      %p56 = scmp.ne.s32.totalorder %s44, %s45
      %p57 = scmp.eq.s32.totalorder %s14, 1
      %p58 = por %p56, %p57
      %p60 = scmp.ne.s32.totalorder %s45, %s59
      %p61 = scmp.eq.s32.totalorder %s14, 0
      %p62 = por %p60, %p61
      %s63 = ssub.s32 %s8, %s15
      %p64 = scmp.eq.s32.totalorder %s63, 0
      %s66 = sadd.s32 %s65, 1
      %s67 = scalar_select %p64, %s65, %s66
      %p70 = pneg %p64
      %p71 = scmp.eq.s32.totalorder %s8, 1
      %p72 = por %p70, %p71
      %p73 = scmp.ne.s32.totalorder %s65, %s68
      %p74 = scmp.eq.s32.totalorder %s8, 0
      %p75 = por %p73, %p74
      %p76 = scmp.ne.s32.totalorder %s65, %s68
      %p77 = scmp.eq.s32.totalorder %s13, 1
      %p78 = por %p76, %p77
      %p79 = scmp.ne.s32.totalorder %s68, %s69
      %p80 = scmp.eq.s32.totalorder %s13, 0
      %p81 = por %p79, %p80
      %p82 = scmp.ne.s32.totalorder %s68, %s69
      %p83 = scmp.eq.s32.totalorder %s14, 1
      %p84 = por %p82, %p83
      %p86 = scmp.ne.s32.totalorder %s69, %s85
      %p87 = scmp.eq.s32.totalorder %s14, 0
      %p88 = por %p86, %p87
      %p89 = scmp.le.s32.totalorder 1, %s8
      %p90 = scmp.lt.s32.totalorder %s8, 3
      %p91 = pnand %p89, %p90
      %p92 = pneg %p91
      // Predicated region
      $region9: #{_lambda_.16} parent=5 // pred_check
        _
      $region10: #{_lambda_.16} parent=5 // pred_check_branch
        %94 = sbr.rel (%p91) target = $region12
      $region11: #{_lambda_.16} parent=5 // pred_region
        %s95 = ssub.s32 %s8, 1
        // Predicated region
        $region13: #{_lambda_.16} parent=11 // pred_check
          %p96 = pneg %p55
        $region14: #{_lambda_.16} parent=11 // pred_check_branch
          %98 = sbr.rel (%p96) target = $region16
        $region15: #{_lambda_.16} parent=11 // pred_region
          _
        $region16: #{_lambda_.16} parent=11 // pred_fallthru
          _
      $region12: #{_lambda_.16} parent=5 // pred_fallthru
        _
      %p99 = scmp.lt.s32.totalorder %s8, 2
      // Predicated region
      $region17: #{_lambda_.16} parent=5 // pred_check
        %p100 = pneg %p99
      $region18: #{_lambda_.16} parent=5 // pred_check_branch
        %102 = sbr.rel (%p100) target = $region20
      $region19: #{_lambda_.16} parent=5 // pred_region
        // Predicated region
        $region21: #{_lambda_.16} parent=19 // pred_check
          %p103 = pneg %p28
        $region22: #{_lambda_.16} parent=19 // pred_check_branch
          %105 = sbr.rel (%p103) target = $region24
        $region23: #{_lambda_.16} parent=19 // pred_region
          %s106 = sand.u32 %s18, 1
          %s107 = sand.u32 %s18, 1
          %s108 = smul.addr %s107, 512
          %s109 = scalar_lea.vmem [#allocation2], %s108
          %s110 = smul.u32 16, %s8
          %s111 = smul.addr %s110, 8
          %s112 = scalar_lea.vmem %s0, %s111
          // Predicated region
          $region25: #{_lambda_.16} parent=23 // pred_check
            _
          $region26: #{_lambda_.16} parent=23 // pred_check_branch
            %114 = sbr.rel (0) target = $region28
          $region27: #{_lambda_.16} parent=23 // pred_region
            // Predicated region
            $region29: #{_lambda_.16} parent=27 // pred_check
              _
            $region30: #{_lambda_.16} parent=27 // pred_check_branch
              %116 = sbr.rel (0) target = $region32
            $region31: #{_lambda_.16} parent=27 // pred_region
              loop: start=0, step=1, limit=1
              $region33: #{_lambda_.16} parent=31 // loop_pre_header
                _
              $region34: #{_lambda_.16} parent=31 // loop_header
                %s118 = sphi 0, %s122
                %p119 = scmp.ge.s32.totalorder %s118, 1
                %s123 = sphi %s112, %s112
                %s124 = sphi %s109, %s109
              $region35: #{_lambda_.16} parent=31 // loop_header_branch
                %121 = sbr.rel (%p119) target = $region39
              $region36: #{_lambda_.16} parent=31 // loop_body
                %v125 = vld [vmem:[%s123] sm:$0xff]
                %126 = vst [vmem:[%s124] sm:$0xff] %v125
                %v127 = vld [vmem:[%s123 + $0x8] sm:$0xff]
                %128 = vst [vmem:[%s124 + $0x8] sm:$0xff] %v127
                %v129 = vld [vmem:[%s123 + $0x10] sm:$0xff]
                %130 = vst [vmem:[%s124 + $0x10] sm:$0xff] %v129
                %v131 = vld [vmem:[%s123 + $0x18] sm:$0xff]
                %132 = vst [vmem:[%s124 + $0x18] sm:$0xff] %v131
                %v133 = vld [vmem:[%s123 + $0x20] sm:$0xff]
                %134 = vst [vmem:[%s124 + $0x20] sm:$0xff] %v133
                %v135 = vld [vmem:[%s123 + $0x28] sm:$0xff]
                %136 = vst [vmem:[%s124 + $0x28] sm:$0xff] %v135
                %v137 = vld [vmem:[%s123 + $0x30] sm:$0xff]
                %138 = vst [vmem:[%s124 + $0x30] sm:$0xff] %v137
                %v139 = vld [vmem:[%s123 + $0x38] sm:$0xff]
                %140 = vst [vmem:[%s124 + $0x38] sm:$0xff] %v139
                %v141 = vld [vmem:[%s123 + $0x40] sm:$0xff]
                %142 = vst [vmem:[%s124 + $0x40] sm:$0xff] %v141
                %v143 = vld [vmem:[%s123 + $0x48] sm:$0xff]
                %144 = vst [vmem:[%s124 + $0x48] sm:$0xff] %v143
                %v145 = vld [vmem:[%s123 + $0x50] sm:$0xff]
                %146 = vst [vmem:[%s124 + $0x50] sm:$0xff] %v145
                %v147 = vld [vmem:[%s123 + $0x58] sm:$0xff]
                %148 = vst [vmem:[%s124 + $0x58] sm:$0xff] %v147
                %v149 = vld [vmem:[%s123 + $0x60] sm:$0xff]
                %150 = vst [vmem:[%s124 + $0x60] sm:$0xff] %v149
                %v151 = vld [vmem:[%s123 + $0x68] sm:$0xff]
                %152 = vst [vmem:[%s124 + $0x68] sm:$0xff] %v151
                %v153 = vld [vmem:[%s123 + $0x70] sm:$0xff]
                %154 = vst [vmem:[%s124 + $0x70] sm:$0xff] %v153
                %v155 = vld [vmem:[%s123 + $0x78] sm:$0xff]
                %156 = vst [vmem:[%s124 + $0x78] sm:$0xff] %v155
                %v157 = vld [vmem:[%s123 + $0x100] sm:$0xff]
                %158 = vst [vmem:[%s124 + $0x80] sm:$0xff] %v157
                %v159 = vld [vmem:[%s123 + $0x108] sm:$0xff]
                %160 = vst [vmem:[%s124 + $0x88] sm:$0xff] %v159
                %v161 = vld [vmem:[%s123 + $0x110] sm:$0xff]
                %162 = vst [vmem:[%s124 + $0x90] sm:$0xff] %v161
                %v163 = vld [vmem:[%s123 + $0x118] sm:$0xff]
                %164 = vst [vmem:[%s124 + $0x98] sm:$0xff] %v163
                %v165 = vld [vmem:[%s123 + $0x120] sm:$0xff]
                %166 = vst [vmem:[%s124 + $0xa0] sm:$0xff] %v165
                %v167 = vld [vmem:[%s123 + $0x128] sm:$0xff]
                %168 = vst [vmem:[%s124 + $0xa8] sm:$0xff] %v167
                %v169 = vld [vmem:[%s123 + $0x130] sm:$0xff]
                %170 = vst [vmem:[%s124 + $0xb0] sm:$0xff] %v169
                %v171 = vld [vmem:[%s123 + $0x138] sm:$0xff]
                %172 = vst [vmem:[%s124 + $0xb8] sm:$0xff] %v171
                %v173 = vld [vmem:[%s123 + $0x140] sm:$0xff]
                %174 = vst [vmem:[%s124 + $0xc0] sm:$0xff] %v173
                %v175 = vld [vmem:[%s123 + $0x148] sm:$0xff]
                %176 = vst [vmem:[%s124 + $0xc8] sm:$0xff] %v175
                %v177 = vld [vmem:[%s123 + $0x150] sm:$0xff]
                %178 = vst [vmem:[%s124 + $0xd0] sm:$0xff] %v177
                %v179 = vld [vmem:[%s123 + $0x158] sm:$0xff]
                %180 = vst [vmem:[%s124 + $0xd8] sm:$0xff] %v179
                %v181 = vld [vmem:[%s123 + $0x160] sm:$0xff]
                %182 = vst [vmem:[%s124 + $0xe0] sm:$0xff] %v181
                %v183 = vld [vmem:[%s123 + $0x168] sm:$0xff]
                %184 = vst [vmem:[%s124 + $0xe8] sm:$0xff] %v183
                %v185 = vld [vmem:[%s123 + $0x170] sm:$0xff]
                %186 = vst [vmem:[%s124 + $0xf0] sm:$0xff] %v185
                %v187 = vld [vmem:[%s123 + $0x178] sm:$0xff]
                %188 = vst [vmem:[%s124 + $0xf8] sm:$0xff] %v187
                %v189 = vld [vmem:[%s123 + $0x200] sm:$0xff]
                %190 = vst [vmem:[%s124 + $0x100] sm:$0xff] %v189
                %v191 = vld [vmem:[%s123 + $0x208] sm:$0xff]
                %192 = vst [vmem:[%s124 + $0x108] sm:$0xff] %v191
                %v193 = vld [vmem:[%s123 + $0x210] sm:$0xff]
                %194 = vst [vmem:[%s124 + $0x110] sm:$0xff] %v193
                %v195 = vld [vmem:[%s123 + $0x218] sm:$0xff]
                %196 = vst [vmem:[%s124 + $0x118] sm:$0xff] %v195
                %v197 = vld [vmem:[%s123 + $0x220] sm:$0xff]
                %198 = vst [vmem:[%s124 + $0x120] sm:$0xff] %v197
                %v199 = vld [vmem:[%s123 + $0x228] sm:$0xff]
                %200 = vst [vmem:[%s124 + $0x128] sm:$0xff] %v199
                %v201 = vld [vmem:[%s123 + $0x230] sm:$0xff]
                %202 = vst [vmem:[%s124 + $0x130] sm:$0xff] %v201
                %v203 = vld [vmem:[%s123 + $0x238] sm:$0xff]
                %204 = vst [vmem:[%s124 + $0x138] sm:$0xff] %v203
                %v205 = vld [vmem:[%s123 + $0x240] sm:$0xff]
                %206 = vst [vmem:[%s124 + $0x140] sm:$0xff] %v205
                %v207 = vld [vmem:[%s123 + $0x248] sm:$0xff]
                %208 = vst [vmem:[%s124 + $0x148] sm:$0xff] %v207
                %v209 = vld [vmem:[%s123 + $0x250] sm:$0xff]
                %210 = vst [vmem:[%s124 + $0x150] sm:$0xff] %v209
                %v211 = vld [vmem:[%s123 + $0x258] sm:$0xff]
                %212 = vst [vmem:[%s124 + $0x158] sm:$0xff] %v211
                %v213 = vld [vmem:[%s123 + $0x260] sm:$0xff]
                %214 = vst [vmem:[%s124 + $0x160] sm:$0xff] %v213
                %v215 = vld [vmem:[%s123 + $0x268] sm:$0xff]
                %216 = vst [vmem:[%s124 + $0x168] sm:$0xff] %v215
                %v217 = vld [vmem:[%s123 + $0x270] sm:$0xff]
                %218 = vst [vmem:[%s124 + $0x170] sm:$0xff] %v217
                %v219 = vld [vmem:[%s123 + $0x278] sm:$0xff]
                %220 = vst [vmem:[%s124 + $0x178] sm:$0xff] %v219
                %v221 = vld [vmem:[%s123 + $0x300] sm:$0xff]
                %222 = vst [vmem:[%s124 + $0x180] sm:$0xff] %v221
                %v223 = vld [vmem:[%s123 + $0x308] sm:$0xff]
                %224 = vst [vmem:[%s124 + $0x188] sm:$0xff] %v223
                %v225 = vld [vmem:[%s123 + $0x310] sm:$0xff]
                %226 = vst [vmem:[%s124 + $0x190] sm:$0xff] %v225
                %v227 = vld [vmem:[%s123 + $0x318] sm:$0xff]
                %228 = vst [vmem:[%s124 + $0x198] sm:$0xff] %v227
                %v229 = vld [vmem:[%s123 + $0x320] sm:$0xff]
                %230 = vst [vmem:[%s124 + $0x1a0] sm:$0xff] %v229
                %v231 = vld [vmem:[%s123 + $0x328] sm:$0xff]
                %232 = vst [vmem:[%s124 + $0x1a8] sm:$0xff] %v231
                %v233 = vld [vmem:[%s123 + $0x330] sm:$0xff]
                %234 = vst [vmem:[%s124 + $0x1b0] sm:$0xff] %v233
                %v235 = vld [vmem:[%s123 + $0x338] sm:$0xff]
                %236 = vst [vmem:[%s124 + $0x1b8] sm:$0xff] %v235
                %v237 = vld [vmem:[%s123 + $0x340] sm:$0xff]
                %238 = vst [vmem:[%s124 + $0x1c0] sm:$0xff] %v237
                %v239 = vld [vmem:[%s123 + $0x348] sm:$0xff]
                %240 = vst [vmem:[%s124 + $0x1c8] sm:$0xff] %v239
                %v241 = vld [vmem:[%s123 + $0x350] sm:$0xff]
                %242 = vst [vmem:[%s124 + $0x1d0] sm:$0xff] %v241
                %v243 = vld [vmem:[%s123 + $0x358] sm:$0xff]
                %244 = vst [vmem:[%s124 + $0x1d8] sm:$0xff] %v243
                %v245 = vld [vmem:[%s123 + $0x360] sm:$0xff]
                %246 = vst [vmem:[%s124 + $0x1e0] sm:$0xff] %v245
                %v247 = vld [vmem:[%s123 + $0x368] sm:$0xff]
                %248 = vst [vmem:[%s124 + $0x1e8] sm:$0xff] %v247
                %v249 = vld [vmem:[%s123 + $0x370] sm:$0xff]
                %250 = vst [vmem:[%s124 + $0x1f0] sm:$0xff] %v249
                %v251 = vld [vmem:[%s123 + $0x378] sm:$0xff]
                %252 = vst [vmem:[%s124 + $0x1f8] sm:$0xff] %v251
              $region37: #{_lambda_.16} parent=31 // loop_footer
                %s122 = sadd.s32 1, %s118
              $region38: #{_lambda_.16} parent=31 // loop_footer_branch
                %117 = sbr.rel target = $region34
              $region39: #{_lambda_.16} parent=31 // loop_exit
                _
            $region32: #{_lambda_.16} parent=27 // pred_fallthru
              _
            // Predicated region
            $region40: #{_lambda_.16} parent=27 // pred_check
              _
            $region41: #{_lambda_.16} parent=27 // pred_check_branch
              %254 = sbr.rel target = $region43
            $region42: #{_lambda_.16} parent=27 // pred_region
              _
            $region43: #{_lambda_.16} parent=27 // pred_fallthru
              _
          $region28: #{_lambda_.16} parent=23 // pred_fallthru
            _
          %255 = vnop
        $region24: #{_lambda_.16} parent=19 // pred_fallthru
          _
      $region20: #{_lambda_.16} parent=5 // pred_fallthru
        _
      %p256 = scmp.le.s32.totalorder 1, %s8
      %p257 = scmp.lt.s32.totalorder %s8, 3
      %p258 = pnand %p256, %p257
      %p259 = pneg %p258
      // Predicated region
      $region44: #{_lambda_.16} parent=5 // pred_check
        _
      $region45: #{_lambda_.16} parent=5 // pred_check_branch
        %261 = sbr.rel (%p258) target = $region47
      $region46: #{_lambda_.16} parent=5 // pred_region
        %s262 = ssub.s32 %s8, 1
        %s263 = sand.u32 %s21, 1
        %s264 = sand.u32 %s21, 1
        %s265 = smul.addr %s264, 512
        %s266 = scalar_lea.vmem [#allocation2], %s265
        // Predicated region
        $region48: #{_lambda_.16} parent=46 // pred_check
          %p267 = pneg %p34
        $region49: #{_lambda_.16} parent=46 // pred_check_branch
          %269 = sbr.rel (%p267) target = $region51
        $region50: #{_lambda_.16} parent=46 // pred_region
          _
        $region51: #{_lambda_.16} parent=46 // pred_fallthru
          _
        %s270 = sand.u32 %s21, 1
        %s271 = sand.u32 %s21, 1
        %s272 = smul.addr %s271, 512
        %s273 = scalar_lea.vmem [#allocation2], %s272
        %p274 = pneg %p34
        %p275 = pneg %p31
        %p276 = pneg %p55
        %p277 = pneg %p52
        %p278 = pneg %p81
        %p279 = pneg %p78
        %s280 = sand.u32 %s68, 1
        %s281 = sand.u32 %s68, 1
        %s282 = smul.addr %s281, 512
        %s283 = scalar_lea.vmem [#allocation3], %s282
        %s284 = smul.u32 16, %s13
        %s285 = smul.u32 16, %s13
        %v286 = vld [vmem:[%s266] sm:$0xff]
        %v287 = vld [vmem:[%s266 + $0x8] sm:$0xff]
        %v288 = vld [vmem:[%s266 + $0x10] sm:$0xff]
        %v289 = vld [vmem:[%s266 + $0x18] sm:$0xff]
        %v290 = vld [vmem:[%s266 + $0x20] sm:$0xff]
        %v291 = vld [vmem:[%s266 + $0x28] sm:$0xff]
        %v292 = vld [vmem:[%s266 + $0x30] sm:$0xff]
        %v293 = vld [vmem:[%s266 + $0x38] sm:$0xff]
        %v294 = vld [vmem:[%s266 + $0x40] sm:$0xff]
        %v295 = vld [vmem:[%s266 + $0x48] sm:$0xff]
        %v296 = vld [vmem:[%s266 + $0x50] sm:$0xff]
        %v297 = vld [vmem:[%s266 + $0x58] sm:$0xff]
        %v298 = vld [vmem:[%s266 + $0x60] sm:$0xff]
        %v299 = vld [vmem:[%s266 + $0x68] sm:$0xff]
        %v300 = vld [vmem:[%s266 + $0x70] sm:$0xff]
        %v301 = vld [vmem:[%s266 + $0x78] sm:$0xff]
        %v302 = vld [vmem:[%s266 + $0x80] sm:$0xff]
        %v303 = vld [vmem:[%s266 + $0x88] sm:$0xff]
        %v304 = vld [vmem:[%s266 + $0x90] sm:$0xff]
        %v305 = vld [vmem:[%s266 + $0x98] sm:$0xff]
        %v306 = vld [vmem:[%s266 + $0xa0] sm:$0xff]
        %v307 = vld [vmem:[%s266 + $0xa8] sm:$0xff]
        %v308 = vld [vmem:[%s266 + $0xb0] sm:$0xff]
        %v309 = vld [vmem:[%s266 + $0xb8] sm:$0xff]
        %v310 = vld [vmem:[%s266 + $0xc0] sm:$0xff]
        %v311 = vld [vmem:[%s266 + $0xc8] sm:$0xff]
        %v312 = vld [vmem:[%s266 + $0xd0] sm:$0xff]
        %v313 = vld [vmem:[%s266 + $0xd8] sm:$0xff]
        %v314 = vld [vmem:[%s266 + $0xe0] sm:$0xff]
        %v315 = vld [vmem:[%s266 + $0xe8] sm:$0xff]
        %v316 = vld [vmem:[%s266 + $0xf0] sm:$0xff]
        %v317 = vld [vmem:[%s266 + $0xf8] sm:$0xff]
        %v318 = vld [vmem:[%s266 + $0x100] sm:$0xff]
        %v319 = vld [vmem:[%s266 + $0x108] sm:$0xff]
        %v320 = vld [vmem:[%s266 + $0x110] sm:$0xff]
        %v321 = vld [vmem:[%s266 + $0x118] sm:$0xff]
        %v322 = vld [vmem:[%s266 + $0x120] sm:$0xff]
        %v323 = vld [vmem:[%s266 + $0x128] sm:$0xff]
        %v324 = vld [vmem:[%s266 + $0x130] sm:$0xff]
        %v325 = vld [vmem:[%s266 + $0x138] sm:$0xff]
        %v326 = vld [vmem:[%s266 + $0x140] sm:$0xff]
        %v327 = vld [vmem:[%s266 + $0x148] sm:$0xff]
        %v328 = vld [vmem:[%s266 + $0x150] sm:$0xff]
        %v329 = vld [vmem:[%s266 + $0x158] sm:$0xff]
        %v330 = vld [vmem:[%s266 + $0x160] sm:$0xff]
        %v331 = vld [vmem:[%s266 + $0x168] sm:$0xff]
        %v332 = vld [vmem:[%s266 + $0x170] sm:$0xff]
        %v333 = vld [vmem:[%s266 + $0x178] sm:$0xff]
        %v334 = vld [vmem:[%s266 + $0x180] sm:$0xff]
        %v335 = vld [vmem:[%s266 + $0x188] sm:$0xff]
        %v336 = vld [vmem:[%s266 + $0x190] sm:$0xff]
        %v337 = vld [vmem:[%s266 + $0x198] sm:$0xff]
        %v338 = vld [vmem:[%s266 + $0x1a0] sm:$0xff]
        %v339 = vld [vmem:[%s266 + $0x1a8] sm:$0xff]
        %v340 = vld [vmem:[%s266 + $0x1b0] sm:$0xff]
        %v341 = vld [vmem:[%s266 + $0x1b8] sm:$0xff]
        %v342 = vld [vmem:[%s266 + $0x1c0] sm:$0xff]
        %v343 = vld [vmem:[%s266 + $0x1c8] sm:$0xff]
        %v344 = vld [vmem:[%s266 + $0x1d0] sm:$0xff]
        %v345 = vld [vmem:[%s266 + $0x1d8] sm:$0xff]
        %v346 = vld [vmem:[%s266 + $0x1e0] sm:$0xff]
        %v347 = vld [vmem:[%s266 + $0x1e8] sm:$0xff]
        %v348 = vld [vmem:[%s266 + $0x1f0] sm:$0xff]
        %v349 = vld [vmem:[%s266 + $0x1f8] sm:$0xff]
        %v350 = vld [vmem:[%s1] sm:$0x1]
        %v351 = vlaneseq
        %v352 = vshrl.u32 %v351, 7
        %v353 = vsub.s32 0, %v352
        %v354 = vrot.slane %v350, %v353
        %356 = vbcast.lane.b32.xlu0 %v354, 256
        %v357 = vpop.permute.xlu0 %356
        %s359 = sor.u32 256, 8
        %360 = vbcast.lane.b32.xlu0 %v354, %s359
        %v361 = vpop.permute.xlu0 %360
        %v362 = vadd.f32 %v286, %v357
        %v363 = vadd.f32 %v287, %v357
        %v364 = vadd.f32 %v288, %v357
        %v365 = vadd.f32 %v289, %v357
        %v366 = vadd.f32 %v290, %v357
        %v367 = vadd.f32 %v291, %v357
        %v368 = vadd.f32 %v292, %v357
        %v369 = vadd.f32 %v293, %v357
        %v370 = vadd.f32 %v294, %v357
        %v371 = vadd.f32 %v295, %v357
        %v372 = vadd.f32 %v296, %v357
        %v373 = vadd.f32 %v297, %v357
        %v374 = vadd.f32 %v298, %v357
        %v375 = vadd.f32 %v299, %v357
        %v376 = vadd.f32 %v300, %v357
        %v377 = vadd.f32 %v301, %v357
        %v378 = vadd.f32 %v302, %v361
        %v379 = vadd.f32 %v303, %v361
        %v380 = vadd.f32 %v304, %v361
        %v381 = vadd.f32 %v305, %v361
        %v382 = vadd.f32 %v306, %v361
        %v383 = vadd.f32 %v307, %v361
        %v384 = vadd.f32 %v308, %v361
        %v385 = vadd.f32 %v309, %v361
        %v386 = vadd.f32 %v310, %v361
        %v387 = vadd.f32 %v311, %v361
        %v388 = vadd.f32 %v312, %v361
        %v389 = vadd.f32 %v313, %v361
        %v390 = vadd.f32 %v314, %v361
        %v391 = vadd.f32 %v315, %v361
        %v392 = vadd.f32 %v316, %v361
        %v393 = vadd.f32 %v317, %v361
        %v394 = vadd.f32 %v318, %v357
        %v395 = vadd.f32 %v319, %v357
        %v396 = vadd.f32 %v320, %v357
        %v397 = vadd.f32 %v321, %v357
        %v398 = vadd.f32 %v322, %v357
        %v399 = vadd.f32 %v323, %v357
        %v400 = vadd.f32 %v324, %v357
        %v401 = vadd.f32 %v325, %v357
        %v402 = vadd.f32 %v326, %v357
        %v403 = vadd.f32 %v327, %v357
        %v404 = vadd.f32 %v328, %v357
        %v405 = vadd.f32 %v329, %v357
        %v406 = vadd.f32 %v330, %v357
        %v407 = vadd.f32 %v331, %v357
        %v408 = vadd.f32 %v332, %v357
        %v409 = vadd.f32 %v333, %v357
        %v410 = vadd.f32 %v334, %v361
        %v411 = vadd.f32 %v335, %v361
        %v412 = vadd.f32 %v336, %v361
        %v413 = vadd.f32 %v337, %v361
        %v414 = vadd.f32 %v338, %v361
        %v415 = vadd.f32 %v339, %v361
        %v416 = vadd.f32 %v340, %v361
        %v417 = vadd.f32 %v341, %v361
        %v418 = vadd.f32 %v342, %v361
        %v419 = vadd.f32 %v343, %v361
        %v420 = vadd.f32 %v344, %v361
        %v421 = vadd.f32 %v345, %v361
        %v422 = vadd.f32 %v346, %v361
        %v423 = vadd.f32 %v347, %v361
        %v424 = vadd.f32 %v348, %v361
        %v425 = vadd.f32 %v349, %v361
        %v426 = vmax.f32 %v362, 0.0
        %v427 = vmax.f32 %v363, 0.0
        %v428 = vmax.f32 %v364, 0.0
        %v429 = vmax.f32 %v365, 0.0
        %v430 = vmax.f32 %v366, 0.0
        %v431 = vmax.f32 %v367, 0.0
        %v432 = vmax.f32 %v368, 0.0
        %v433 = vmax.f32 %v369, 0.0
        %v434 = vmax.f32 %v370, 0.0
        %v435 = vmax.f32 %v371, 0.0
        %v436 = vmax.f32 %v372, 0.0
        %v437 = vmax.f32 %v373, 0.0
        %v438 = vmax.f32 %v374, 0.0
        %v439 = vmax.f32 %v375, 0.0
        %v440 = vmax.f32 %v376, 0.0
        %v441 = vmax.f32 %v377, 0.0
        %v442 = vmax.f32 %v378, 0.0
        %v443 = vmax.f32 %v379, 0.0
        %v444 = vmax.f32 %v380, 0.0
        %v445 = vmax.f32 %v381, 0.0
        %v446 = vmax.f32 %v382, 0.0
        %v447 = vmax.f32 %v383, 0.0
        %v448 = vmax.f32 %v384, 0.0
        %v449 = vmax.f32 %v385, 0.0
        %v450 = vmax.f32 %v386, 0.0
        %v451 = vmax.f32 %v387, 0.0
        %v452 = vmax.f32 %v388, 0.0
        %v453 = vmax.f32 %v389, 0.0
        %v454 = vmax.f32 %v390, 0.0
        %v455 = vmax.f32 %v391, 0.0
        %v456 = vmax.f32 %v392, 0.0
        %v457 = vmax.f32 %v393, 0.0
        %v458 = vmax.f32 %v394, 0.0
        %v459 = vmax.f32 %v395, 0.0
        %v460 = vmax.f32 %v396, 0.0
        %v461 = vmax.f32 %v397, 0.0
        %v462 = vmax.f32 %v398, 0.0
        %v463 = vmax.f32 %v399, 0.0
        %v464 = vmax.f32 %v400, 0.0
        %v465 = vmax.f32 %v401, 0.0
        %v466 = vmax.f32 %v402, 0.0
        %v467 = vmax.f32 %v403, 0.0
        %v468 = vmax.f32 %v404, 0.0
        %v469 = vmax.f32 %v405, 0.0
        %v470 = vmax.f32 %v406, 0.0
        %v471 = vmax.f32 %v407, 0.0
        %v472 = vmax.f32 %v408, 0.0
        %v473 = vmax.f32 %v409, 0.0
        %v474 = vmax.f32 %v410, 0.0
        %v475 = vmax.f32 %v411, 0.0
        %v476 = vmax.f32 %v412, 0.0
        %v477 = vmax.f32 %v413, 0.0
        %v478 = vmax.f32 %v414, 0.0
        %v479 = vmax.f32 %v415, 0.0
        %v480 = vmax.f32 %v416, 0.0
        %v481 = vmax.f32 %v417, 0.0
        %v482 = vmax.f32 %v418, 0.0
        %v483 = vmax.f32 %v419, 0.0
        %v484 = vmax.f32 %v420, 0.0
        %v485 = vmax.f32 %v421, 0.0
        %v486 = vmax.f32 %v422, 0.0
        %v487 = vmax.f32 %v423, 0.0
        %v488 = vmax.f32 %v424, 0.0
        %v489 = vmax.f32 %v425, 0.0
        %490 = vst [vmem:[%s283] sm:$0xff] %v426
        %491 = vst [vmem:[%s283 + $0x8] sm:$0xff] %v427
        %492 = vst [vmem:[%s283 + $0x10] sm:$0xff] %v428
        %493 = vst [vmem:[%s283 + $0x18] sm:$0xff] %v429
        %494 = vst [vmem:[%s283 + $0x20] sm:$0xff] %v430
        %495 = vst [vmem:[%s283 + $0x28] sm:$0xff] %v431
        %496 = vst [vmem:[%s283 + $0x30] sm:$0xff] %v432
        %497 = vst [vmem:[%s283 + $0x38] sm:$0xff] %v433
        %498 = vst [vmem:[%s283 + $0x40] sm:$0xff] %v434
        %499 = vst [vmem:[%s283 + $0x48] sm:$0xff] %v435
        %500 = vst [vmem:[%s283 + $0x50] sm:$0xff] %v436
        %501 = vst [vmem:[%s283 + $0x58] sm:$0xff] %v437
        %502 = vst [vmem:[%s283 + $0x60] sm:$0xff] %v438
        %503 = vst [vmem:[%s283 + $0x68] sm:$0xff] %v439
        %504 = vst [vmem:[%s283 + $0x70] sm:$0xff] %v440
        %505 = vst [vmem:[%s283 + $0x78] sm:$0xff] %v441
        %506 = vst [vmem:[%s283 + $0x80] sm:$0xff] %v442
        %507 = vst [vmem:[%s283 + $0x88] sm:$0xff] %v443
        %508 = vst [vmem:[%s283 + $0x90] sm:$0xff] %v444
        %509 = vst [vmem:[%s283 + $0x98] sm:$0xff] %v445
        %510 = vst [vmem:[%s283 + $0xa0] sm:$0xff] %v446
        %511 = vst [vmem:[%s283 + $0xa8] sm:$0xff] %v447
        %512 = vst [vmem:[%s283 + $0xb0] sm:$0xff] %v448
        %513 = vst [vmem:[%s283 + $0xb8] sm:$0xff] %v449
        %514 = vst [vmem:[%s283 + $0xc0] sm:$0xff] %v450
        %515 = vst [vmem:[%s283 + $0xc8] sm:$0xff] %v451
        %516 = vst [vmem:[%s283 + $0xd0] sm:$0xff] %v452
        %517 = vst [vmem:[%s283 + $0xd8] sm:$0xff] %v453
        %518 = vst [vmem:[%s283 + $0xe0] sm:$0xff] %v454
        %519 = vst [vmem:[%s283 + $0xe8] sm:$0xff] %v455
        %520 = vst [vmem:[%s283 + $0xf0] sm:$0xff] %v456
        %521 = vst [vmem:[%s283 + $0xf8] sm:$0xff] %v457
        %522 = vst [vmem:[%s283 + $0x100] sm:$0xff] %v458
        %523 = vst [vmem:[%s283 + $0x108] sm:$0xff] %v459
        %524 = vst [vmem:[%s283 + $0x110] sm:$0xff] %v460
        %525 = vst [vmem:[%s283 + $0x118] sm:$0xff] %v461
        %526 = vst [vmem:[%s283 + $0x120] sm:$0xff] %v462
        %527 = vst [vmem:[%s283 + $0x128] sm:$0xff] %v463
        %528 = vst [vmem:[%s283 + $0x130] sm:$0xff] %v464
        %529 = vst [vmem:[%s283 + $0x138] sm:$0xff] %v465
        %530 = vst [vmem:[%s283 + $0x140] sm:$0xff] %v466
        %531 = vst [vmem:[%s283 + $0x148] sm:$0xff] %v467
        %532 = vst [vmem:[%s283 + $0x150] sm:$0xff] %v468
        %533 = vst [vmem:[%s283 + $0x158] sm:$0xff] %v469
        %534 = vst [vmem:[%s283 + $0x160] sm:$0xff] %v470
        %535 = vst [vmem:[%s283 + $0x168] sm:$0xff] %v471
        %536 = vst [vmem:[%s283 + $0x170] sm:$0xff] %v472
        %537 = vst [vmem:[%s283 + $0x178] sm:$0xff] %v473
        %538 = vst [vmem:[%s283 + $0x180] sm:$0xff] %v474
        %539 = vst [vmem:[%s283 + $0x188] sm:$0xff] %v475
        %540 = vst [vmem:[%s283 + $0x190] sm:$0xff] %v476
        %541 = vst [vmem:[%s283 + $0x198] sm:$0xff] %v477
        %542 = vst [vmem:[%s283 + $0x1a0] sm:$0xff] %v478
        %543 = vst [vmem:[%s283 + $0x1a8] sm:$0xff] %v479
        %544 = vst [vmem:[%s283 + $0x1b0] sm:$0xff] %v480
        %545 = vst [vmem:[%s283 + $0x1b8] sm:$0xff] %v481
        %546 = vst [vmem:[%s283 + $0x1c0] sm:$0xff] %v482
        %547 = vst [vmem:[%s283 + $0x1c8] sm:$0xff] %v483
        %548 = vst [vmem:[%s283 + $0x1d0] sm:$0xff] %v484
        %549 = vst [vmem:[%s283 + $0x1d8] sm:$0xff] %v485
        %550 = vst [vmem:[%s283 + $0x1e0] sm:$0xff] %v486
        %551 = vst [vmem:[%s283 + $0x1e8] sm:$0xff] %v487
        %552 = vst [vmem:[%s283 + $0x1f0] sm:$0xff] %v488
        %553 = vst [vmem:[%s283 + $0x1f8] sm:$0xff] %v489
        %s554 = sand.u32 %s68, 1
        %s555 = sand.u32 %s68, 1
        %s556 = smul.addr %s555, 512
        %s557 = scalar_lea.vmem [#allocation3], %s556
        // Predicated region
        $region52: #{_lambda_.16} parent=46 // pred_check
          %p558 = pneg %p78
        $region53: #{_lambda_.16} parent=46 // pred_check_branch
          %560 = sbr.rel (%p558) target = $region55
        $region54: #{_lambda_.16} parent=46 // pred_region
          %s561 = smul.u32 16, %s13
          %s562 = smul.addr %s561, 8
          %s563 = scalar_lea.vmem %s2, %s562
          // Predicated region
          $region56: #{_lambda_.16} parent=54 // pred_check
            _
          $region57: #{_lambda_.16} parent=54 // pred_check_branch
            %565 = sbr.rel (0) target = $region59
          $region58: #{_lambda_.16} parent=54 // pred_region
            // Predicated region
            $region60: #{_lambda_.16} parent=58 // pred_check
              _
            $region61: #{_lambda_.16} parent=58 // pred_check_branch
              %567 = sbr.rel (0) target = $region63
            $region62: #{_lambda_.16} parent=58 // pred_region
              loop: start=0, step=1, limit=1
              $region64: #{_lambda_.16} parent=62 // loop_pre_header
                _
              $region65: #{_lambda_.16} parent=62 // loop_header
                %s569 = sphi 0, %s573
                %p570 = scmp.ge.s32.totalorder %s569, 1
                %s574 = sphi %s557, %s557
                %s575 = sphi %s563, %s563
              $region66: #{_lambda_.16} parent=62 // loop_header_branch
                %572 = sbr.rel (%p570) target = $region70
              $region67: #{_lambda_.16} parent=62 // loop_body
                %v576 = vld [vmem:[%s574] sm:$0xff]
                %577 = vst [vmem:[%s575] sm:$0xff] %v576
                %v578 = vld [vmem:[%s574 + $0x8] sm:$0xff]
                %579 = vst [vmem:[%s575 + $0x8] sm:$0xff] %v578
                %v580 = vld [vmem:[%s574 + $0x10] sm:$0xff]
                %581 = vst [vmem:[%s575 + $0x10] sm:$0xff] %v580
                %v582 = vld [vmem:[%s574 + $0x18] sm:$0xff]
                %583 = vst [vmem:[%s575 + $0x18] sm:$0xff] %v582
                %v584 = vld [vmem:[%s574 + $0x20] sm:$0xff]
                %585 = vst [vmem:[%s575 + $0x20] sm:$0xff] %v584
                %v586 = vld [vmem:[%s574 + $0x28] sm:$0xff]
                %587 = vst [vmem:[%s575 + $0x28] sm:$0xff] %v586
                %v588 = vld [vmem:[%s574 + $0x30] sm:$0xff]
                %589 = vst [vmem:[%s575 + $0x30] sm:$0xff] %v588
                %v590 = vld [vmem:[%s574 + $0x38] sm:$0xff]
                %591 = vst [vmem:[%s575 + $0x38] sm:$0xff] %v590
                %v592 = vld [vmem:[%s574 + $0x40] sm:$0xff]
                %593 = vst [vmem:[%s575 + $0x40] sm:$0xff] %v592
                %v594 = vld [vmem:[%s574 + $0x48] sm:$0xff]
                %595 = vst [vmem:[%s575 + $0x48] sm:$0xff] %v594
                %v596 = vld [vmem:[%s574 + $0x50] sm:$0xff]
                %597 = vst [vmem:[%s575 + $0x50] sm:$0xff] %v596
                %v598 = vld [vmem:[%s574 + $0x58] sm:$0xff]
                %599 = vst [vmem:[%s575 + $0x58] sm:$0xff] %v598
                %v600 = vld [vmem:[%s574 + $0x60] sm:$0xff]
                %601 = vst [vmem:[%s575 + $0x60] sm:$0xff] %v600
                %v602 = vld [vmem:[%s574 + $0x68] sm:$0xff]
                %603 = vst [vmem:[%s575 + $0x68] sm:$0xff] %v602
                %v604 = vld [vmem:[%s574 + $0x70] sm:$0xff]
                %605 = vst [vmem:[%s575 + $0x70] sm:$0xff] %v604
                %v606 = vld [vmem:[%s574 + $0x78] sm:$0xff]
                %607 = vst [vmem:[%s575 + $0x78] sm:$0xff] %v606
                %v608 = vld [vmem:[%s574 + $0x80] sm:$0xff]
                %609 = vst [vmem:[%s575 + $0x100] sm:$0xff] %v608
                %v610 = vld [vmem:[%s574 + $0x88] sm:$0xff]
                %611 = vst [vmem:[%s575 + $0x108] sm:$0xff] %v610
                %v612 = vld [vmem:[%s574 + $0x90] sm:$0xff]
                %613 = vst [vmem:[%s575 + $0x110] sm:$0xff] %v612
                %v614 = vld [vmem:[%s574 + $0x98] sm:$0xff]
                %615 = vst [vmem:[%s575 + $0x118] sm:$0xff] %v614
                %v616 = vld [vmem:[%s574 + $0xa0] sm:$0xff]
                %617 = vst [vmem:[%s575 + $0x120] sm:$0xff] %v616
                %v618 = vld [vmem:[%s574 + $0xa8] sm:$0xff]
                %619 = vst [vmem:[%s575 + $0x128] sm:$0xff] %v618
                %v620 = vld [vmem:[%s574 + $0xb0] sm:$0xff]
                %621 = vst [vmem:[%s575 + $0x130] sm:$0xff] %v620
                %v622 = vld [vmem:[%s574 + $0xb8] sm:$0xff]
                %623 = vst [vmem:[%s575 + $0x138] sm:$0xff] %v622
                %v624 = vld [vmem:[%s574 + $0xc0] sm:$0xff]
                %625 = vst [vmem:[%s575 + $0x140] sm:$0xff] %v624
                %v626 = vld [vmem:[%s574 + $0xc8] sm:$0xff]
                %627 = vst [vmem:[%s575 + $0x148] sm:$0xff] %v626
                %v628 = vld [vmem:[%s574 + $0xd0] sm:$0xff]
                %629 = vst [vmem:[%s575 + $0x150] sm:$0xff] %v628
                %v630 = vld [vmem:[%s574 + $0xd8] sm:$0xff]
                %631 = vst [vmem:[%s575 + $0x158] sm:$0xff] %v630
                %v632 = vld [vmem:[%s574 + $0xe0] sm:$0xff]
                %633 = vst [vmem:[%s575 + $0x160] sm:$0xff] %v632
                %v634 = vld [vmem:[%s574 + $0xe8] sm:$0xff]
                %635 = vst [vmem:[%s575 + $0x168] sm:$0xff] %v634
                %v636 = vld [vmem:[%s574 + $0xf0] sm:$0xff]
                %637 = vst [vmem:[%s575 + $0x170] sm:$0xff] %v636
                %v638 = vld [vmem:[%s574 + $0xf8] sm:$0xff]
                %639 = vst [vmem:[%s575 + $0x178] sm:$0xff] %v638
                %v640 = vld [vmem:[%s574 + $0x100] sm:$0xff]
                %641 = vst [vmem:[%s575 + $0x200] sm:$0xff] %v640
                %v642 = vld [vmem:[%s574 + $0x108] sm:$0xff]
                %643 = vst [vmem:[%s575 + $0x208] sm:$0xff] %v642
                %v644 = vld [vmem:[%s574 + $0x110] sm:$0xff]
                %645 = vst [vmem:[%s575 + $0x210] sm:$0xff] %v644
                %v646 = vld [vmem:[%s574 + $0x118] sm:$0xff]
                %647 = vst [vmem:[%s575 + $0x218] sm:$0xff] %v646
                %v648 = vld [vmem:[%s574 + $0x120] sm:$0xff]
                %649 = vst [vmem:[%s575 + $0x220] sm:$0xff] %v648
                %v650 = vld [vmem:[%s574 + $0x128] sm:$0xff]
                %651 = vst [vmem:[%s575 + $0x228] sm:$0xff] %v650
                %v652 = vld [vmem:[%s574 + $0x130] sm:$0xff]
                %653 = vst [vmem:[%s575 + $0x230] sm:$0xff] %v652
                %v654 = vld [vmem:[%s574 + $0x138] sm:$0xff]
                %655 = vst [vmem:[%s575 + $0x238] sm:$0xff] %v654
                %v656 = vld [vmem:[%s574 + $0x140] sm:$0xff]
                %657 = vst [vmem:[%s575 + $0x240] sm:$0xff] %v656
                %v658 = vld [vmem:[%s574 + $0x148] sm:$0xff]
                %659 = vst [vmem:[%s575 + $0x248] sm:$0xff] %v658
                %v660 = vld [vmem:[%s574 + $0x150] sm:$0xff]
                %661 = vst [vmem:[%s575 + $0x250] sm:$0xff] %v660
                %v662 = vld [vmem:[%s574 + $0x158] sm:$0xff]
                %663 = vst [vmem:[%s575 + $0x258] sm:$0xff] %v662
                %v664 = vld [vmem:[%s574 + $0x160] sm:$0xff]
                %665 = vst [vmem:[%s575 + $0x260] sm:$0xff] %v664
                %v666 = vld [vmem:[%s574 + $0x168] sm:$0xff]
                %667 = vst [vmem:[%s575 + $0x268] sm:$0xff] %v666
                %v668 = vld [vmem:[%s574 + $0x170] sm:$0xff]
                %669 = vst [vmem:[%s575 + $0x270] sm:$0xff] %v668
                %v670 = vld [vmem:[%s574 + $0x178] sm:$0xff]
                %671 = vst [vmem:[%s575 + $0x278] sm:$0xff] %v670
                %v672 = vld [vmem:[%s574 + $0x180] sm:$0xff]
                %673 = vst [vmem:[%s575 + $0x300] sm:$0xff] %v672
                %v674 = vld [vmem:[%s574 + $0x188] sm:$0xff]
                %675 = vst [vmem:[%s575 + $0x308] sm:$0xff] %v674
                %v676 = vld [vmem:[%s574 + $0x190] sm:$0xff]
                %677 = vst [vmem:[%s575 + $0x310] sm:$0xff] %v676
                %v678 = vld [vmem:[%s574 + $0x198] sm:$0xff]
                %679 = vst [vmem:[%s575 + $0x318] sm:$0xff] %v678
                %v680 = vld [vmem:[%s574 + $0x1a0] sm:$0xff]
                %681 = vst [vmem:[%s575 + $0x320] sm:$0xff] %v680
                %v682 = vld [vmem:[%s574 + $0x1a8] sm:$0xff]
                %683 = vst [vmem:[%s575 + $0x328] sm:$0xff] %v682
                %v684 = vld [vmem:[%s574 + $0x1b0] sm:$0xff]
                %685 = vst [vmem:[%s575 + $0x330] sm:$0xff] %v684
                %v686 = vld [vmem:[%s574 + $0x1b8] sm:$0xff]
                %687 = vst [vmem:[%s575 + $0x338] sm:$0xff] %v686
                %v688 = vld [vmem:[%s574 + $0x1c0] sm:$0xff]
                %689 = vst [vmem:[%s575 + $0x340] sm:$0xff] %v688
                %v690 = vld [vmem:[%s574 + $0x1c8] sm:$0xff]
                %691 = vst [vmem:[%s575 + $0x348] sm:$0xff] %v690
                %v692 = vld [vmem:[%s574 + $0x1d0] sm:$0xff]
                %693 = vst [vmem:[%s575 + $0x350] sm:$0xff] %v692
                %v694 = vld [vmem:[%s574 + $0x1d8] sm:$0xff]
                %695 = vst [vmem:[%s575 + $0x358] sm:$0xff] %v694
                %v696 = vld [vmem:[%s574 + $0x1e0] sm:$0xff]
                %697 = vst [vmem:[%s575 + $0x360] sm:$0xff] %v696
                %v698 = vld [vmem:[%s574 + $0x1e8] sm:$0xff]
                %699 = vst [vmem:[%s575 + $0x368] sm:$0xff] %v698
                %v700 = vld [vmem:[%s574 + $0x1f0] sm:$0xff]
                %701 = vst [vmem:[%s575 + $0x370] sm:$0xff] %v700
                %v702 = vld [vmem:[%s574 + $0x1f8] sm:$0xff]
                %703 = vst [vmem:[%s575 + $0x378] sm:$0xff] %v702
              $region68: #{_lambda_.16} parent=62 // loop_footer
                %s573 = sadd.s32 1, %s569
              $region69: #{_lambda_.16} parent=62 // loop_footer_branch
                %568 = sbr.rel target = $region65
              $region70: #{_lambda_.16} parent=62 // loop_exit
                _
            $region63: #{_lambda_.16} parent=58 // pred_fallthru
              _
            // Predicated region
            $region71: #{_lambda_.16} parent=58 // pred_check
              _
            $region72: #{_lambda_.16} parent=58 // pred_check_branch
              %705 = sbr.rel target = $region74
            $region73: #{_lambda_.16} parent=58 // pred_region
              _
            $region74: #{_lambda_.16} parent=58 // pred_fallthru
              _
          $region59: #{_lambda_.16} parent=54 // pred_fallthru
            _
          %706 = vnop
        $region55: #{_lambda_.16} parent=46 // pred_fallthru
          _
      $region47: #{_lambda_.16} parent=5 // pred_fallthru
        _
      %p707 = scmp.le.s32.totalorder 2, %s8
      // Predicated region
      $region75: #{_lambda_.16} parent=5 // pred_check
        %p708 = pneg %p707
      $region76: #{_lambda_.16} parent=5 // pred_check_branch
        %710 = sbr.rel (%p708) target = $region78
      $region77: #{_lambda_.16} parent=5 // pred_region
        %s711 = ssub.s32 %s8, 2
        // Predicated region
        $region79: #{_lambda_.16} parent=77 // pred_check
          %p712 = pneg %p84
        $region80: #{_lambda_.16} parent=77 // pred_check_branch
          %714 = sbr.rel (%p712) target = $region82
        $region81: #{_lambda_.16} parent=77 // pred_region
          %s715 = sand.u32 %s69, 1
          %s716 = sand.u32 %s69, 1
          %s717 = smul.addr %s716, 512
          %s718 = scalar_lea.vmem [#allocation3], %s717
        $region82: #{_lambda_.16} parent=77 // pred_fallthru
          _
      $region78: #{_lambda_.16} parent=5 // pred_fallthru
        _
    $region6: #{_lambda_.16} parent=1 // loop_footer
      %s12 = sadd.s32 1, %s8
    $region7: #{_lambda_.16} parent=1 // loop_footer_branch
      %7 = sbr.rel target = $region3
    $region8: #{_lambda_.16} parent=1 // loop_exit
      _

// kernel: _lambda_.17
$region0: #{_lambda_.17}
  #allocation0 [shape = 'u32[]', space=smem, size = 0x4, offset = 0x4, fixed_abs, tag = 'smem constant byte address 0x4 - core index']
  #allocation1 [shape = 'u32[144,128]{1,0:T(1,128)}', space=vmem, size = 0x12000, scoped, tag = 'internal scratch']
  %s0 = inlined_call_operand.vmem [shape: bf16[4,16,256], index: 0, kind: input, shape index: {}]
  %s1 = inlined_call_operand.vmem [shape: bf16[4,256,512], index: 1, kind: input, shape index: {}]
  %s2 = inlined_call_operand.vmem [shape: f32[4,16,512], index: 2, kind: output, shape index: {}]
  %s3 = sld [smem:[#allocation0]]
  $region41: #{_lambda_.17} parent=0
    _
  %s5 = ssub.s32 1, %s3
  %s6 = scalar_select 0, %s5, %s3
  loop: start=0, step=1, limit=6
  $region2: #{_lambda_.17} parent=0 // loop_pre_header
    _
  $region3: #{_lambda_.17} parent=0 // loop_header
    %s8 = sphi 0, %s12
    %p9 = scmp.ge.s32.totalorder %s8, 6
    %s18 = sphi 0, %s20
    %s21 = sphi 0, %s18
    %s22 = sphi 0, %s21
    %s38 = sphi 0, %s22
    %s44 = sphi 0, %s46
    %s47 = sphi 0, %s44
    %s48 = sphi 0, %s47
    %s64 = sphi 0, %s48
    %s70 = sphi 0, %s72
    %s73 = sphi 0, %s70
    %s74 = sphi 0, %s73
    %s90 = sphi 0, %s74
  $region4: #{_lambda_.17} parent=0 // loop_header_branch
    %11 = sbr.rel (%p9) target = $region8
  $region5: #{_lambda_.17} parent=0 // loop_body
    %s13 = ssub.s32 %s8, 1
    %s14 = ssub.s32 %s8, 2
    %s15 = sadd.s32 %s8, 1
    %s16 = ssub.s32 %s8, %s15
    %p17 = scmp.eq.s32.totalorder %s16, 0
    %s19 = sadd.s32 %s18, 1
    %s20 = scalar_select %p17, %s18, %s19
    %p23 = pneg %p17
    %p24 = scmp.eq.s32.totalorder %s8, 3
    %p25 = por %p23, %p24
    %p26 = scmp.ne.s32.totalorder %s18, %s21
    %p27 = scmp.eq.s32.totalorder %s8, 0
    %p28 = por %p26, %p27
    %p29 = scmp.ne.s32.totalorder %s18, %s21
    %p30 = scmp.eq.s32.totalorder %s13, 3
    %p31 = por %p29, %p30
    %p32 = scmp.ne.s32.totalorder %s21, %s22
    %p33 = scmp.eq.s32.totalorder %s13, 0
    %p34 = por %p32, %p33
    %p35 = scmp.ne.s32.totalorder %s21, %s22
    %p36 = scmp.eq.s32.totalorder %s14, 3
    %p37 = por %p35, %p36
    %p39 = scmp.ne.s32.totalorder %s22, %s38
    %p40 = scmp.eq.s32.totalorder %s14, 0
    %p41 = por %p39, %p40
    %s42 = ssub.s32 %s8, %s15
    %p43 = scmp.eq.s32.totalorder %s42, 0
    %s45 = sadd.s32 %s44, 1
    %s46 = scalar_select %p43, %s44, %s45
    %p49 = pneg %p43
    %p50 = scmp.eq.s32.totalorder %s8, 3
    %p51 = por %p49, %p50
    %p52 = scmp.ne.s32.totalorder %s44, %s47
    %p53 = scmp.eq.s32.totalorder %s8, 0
    %p54 = por %p52, %p53
    %p55 = scmp.ne.s32.totalorder %s44, %s47
    %p56 = scmp.eq.s32.totalorder %s13, 3
    %p57 = por %p55, %p56
    %p58 = scmp.ne.s32.totalorder %s47, %s48
    %p59 = scmp.eq.s32.totalorder %s13, 0
    %p60 = por %p58, %p59
    %p61 = scmp.ne.s32.totalorder %s47, %s48
    %p62 = scmp.eq.s32.totalorder %s14, 3
    %p63 = por %p61, %p62
    %p65 = scmp.ne.s32.totalorder %s48, %s64
    %p66 = scmp.eq.s32.totalorder %s14, 0
    %p67 = por %p65, %p66
    %s68 = ssub.s32 %s8, %s15
    %p69 = scmp.eq.s32.totalorder %s68, 0
    %s71 = sadd.s32 %s70, 1
    %s72 = scalar_select %p69, %s70, %s71
    %p75 = pneg %p69
    %p76 = scmp.eq.s32.totalorder %s8, 3
    %p77 = por %p75, %p76
    %p78 = scmp.ne.s32.totalorder %s70, %s73
    %p79 = scmp.eq.s32.totalorder %s8, 0
    %p80 = por %p78, %p79
    %p81 = scmp.ne.s32.totalorder %s70, %s73
    %p82 = scmp.eq.s32.totalorder %s13, 3
    %p83 = por %p81, %p82
    %p84 = scmp.ne.s32.totalorder %s73, %s74
    %p85 = scmp.eq.s32.totalorder %s13, 0
    %p86 = por %p84, %p85
    %p87 = scmp.ne.s32.totalorder %s73, %s74
    %p88 = scmp.eq.s32.totalorder %s14, 3
    %p89 = por %p87, %p88
    %p91 = scmp.ne.s32.totalorder %s74, %s90
    %p92 = scmp.eq.s32.totalorder %s14, 0
    %p93 = por %p91, %p92
    %p94 = scmp.le.s32.totalorder 1, %s8
    %p95 = scmp.lt.s32.totalorder %s8, 5
    %p96 = pnand %p94, %p95
    %p97 = pneg %p96
    // Predicated region
    $region9: #{_lambda_.17} parent=5 // pred_check
      _
    $region10: #{_lambda_.17} parent=5 // pred_check_branch
      %99 = sbr.rel (%p96) target = $region12
    $region11: #{_lambda_.17} parent=5 // pred_region
      %s100 = ssub.s32 %s8, 1
    $region12: #{_lambda_.17} parent=5 // pred_fallthru
      _
    %p101 = scmp.lt.s32.totalorder %s8, 4
    // Predicated region
    $region13: #{_lambda_.17} parent=5 // pred_check
      %p102 = pneg %p101
    $region14: #{_lambda_.17} parent=5 // pred_check_branch
      %104 = sbr.rel (%p102) target = $region16
    $region15: #{_lambda_.17} parent=5 // pred_region
      // Predicated region
      $region17: #{_lambda_.17} parent=15 // pred_check
        %p105 = pneg %p28
      $region18: #{_lambda_.17} parent=15 // pred_check_branch
        %107 = sbr.rel (%p105) target = $region20
      $region19: #{_lambda_.17} parent=15 // pred_region
        %p108 = scmp.lt.s32.totalorder %s8, 3
        %s109 = scalar_select %p108, %s8, 3
        %s110 = smul.addr %s109, 4
        %s111 = smul.addr %s110, 4
        %s112 = scalar_lea.vmem %s0, %s111
      $region20: #{_lambda_.17} parent=15 // pred_fallthru
        _
      // Predicated region
      $region21: #{_lambda_.17} parent=15 // pred_check
        %p113 = pneg %p54
      $region22: #{_lambda_.17} parent=15 // pred_check_branch
        %115 = sbr.rel (%p113) target = $region24
      $region23: #{_lambda_.17} parent=15 // pred_region
        %p116 = scmp.lt.s32.totalorder %s8, 3
        %s117 = scalar_select %p116, %s8, 3
        %s118 = smul.addr %s117, 128
        %s119 = smul.addr %s118, 4
        %s120 = scalar_lea.vmem %s1, %s119
      $region24: #{_lambda_.17} parent=15 // pred_fallthru
        _
    $region16: #{_lambda_.17} parent=5 // pred_fallthru
      _
    %p121 = scmp.le.s32.totalorder 1, %s8
    %p122 = scmp.lt.s32.totalorder %s8, 5
    %p123 = pnand %p121, %p122
    %p124 = pneg %p123
    // Predicated region
    $region25: #{_lambda_.17} parent=5 // pred_check
      _
    $region26: #{_lambda_.17} parent=5 // pred_check_branch
      %126 = sbr.rel (%p123) target = $region28
    $region27: #{_lambda_.17} parent=5 // pred_region
      %s127 = ssub.s32 %s8, 1
      %p128 = scmp.lt.s32.totalorder %s13, 3
      %s129 = scalar_select %p128, %s13, 3
      %s130 = smul.addr %s129, 4
      %s131 = smul.addr %s130, 4
      %s132 = scalar_lea.vmem %s0, %s131
      %p133 = pneg %p34
      %p134 = pneg %p31
      %p135 = scmp.lt.s32.totalorder %s13, 3
      %s136 = scalar_select %p135, %s13, 3
      %s137 = smul.addr %s136, 128
      %s138 = smul.addr %s137, 4
      %s139 = scalar_lea.vmem %s1, %s138
      %p140 = pneg %p60
      %p141 = pneg %p57
      %p142 = pneg %p86
      %p143 = pneg %p83
      %p144 = scmp.lt.s32.totalorder %s13, 3
      %s145 = scalar_select %p144, %s13, 3
      %s146 = smul.addr %s145, 8
      %s147 = smul.addr %s146, 8
      %s148 = scalar_lea.vmem %s2, %s147
      %p149 = scmp.lt.s32.totalorder %s13, 3
      %s150 = scalar_select %p149, %s13, 3
      %s151 = smul.addr %s150, 4
      %s152 = smul.addr %s151, 4
      %s153 = scalar_lea.vmem %s0, %s152
      %p154 = scmp.lt.s32.totalorder %s13, 3
      %s155 = scalar_select %p154, %s13, 3
      %s156 = smul.addr %s155, 128
      %s157 = smul.addr %s156, 4
      %s158 = scalar_lea.vmem %s1, %s157
      %p159 = scmp.lt.s32.totalorder %s13, 3
      %s160 = scalar_select %p159, %s13, 3
      %s161 = smul.addr %s160, 8
      %s162 = smul.addr %s161, 8
      %s163 = scalar_lea.vmem %s2, %s162
      %v164 = vld [vmem:[%s153] sm:$0xff]
      %v165 = vld [vmem:[%s153 + $0x8] sm:$0xff]
      %v166 = vld [vmem:[%s158] sm:$0xff]
      %v167 = vld [vmem:[%s158 + $0x8] sm:$0xff]
      %v168 = vld [vmem:[%s158 + $0x10] sm:$0xff]
      %v169 = vld [vmem:[%s158 + $0x18] sm:$0xff]
      %v170 = vld [vmem:[%s158 + $0x20] sm:$0xff]
      %v171 = vld [vmem:[%s158 + $0x28] sm:$0xff]
      %v172 = vld [vmem:[%s158 + $0x30] sm:$0xff]
      %v173 = vld [vmem:[%s158 + $0x38] sm:$0xff]
      %v174 = vld [vmem:[%s158 + $0x40] sm:$0xff]
      %v175 = vld [vmem:[%s158 + $0x48] sm:$0xff]
      %v176 = vld [vmem:[%s158 + $0x50] sm:$0xff]
      %v177 = vld [vmem:[%s158 + $0x58] sm:$0xff]
      %v178 = vld [vmem:[%s158 + $0x60] sm:$0xff]
      %v179 = vld [vmem:[%s158 + $0x68] sm:$0xff]
      %v180 = vld [vmem:[%s158 + $0x70] sm:$0xff]
      %v181 = vld [vmem:[%s158 + $0x78] sm:$0xff]
      %v182 = vld [vmem:[%s158 + $0x80] sm:$0xff]
      %v183 = vld [vmem:[%s158 + $0x88] sm:$0xff]
      %v184 = vld [vmem:[%s158 + $0x90] sm:$0xff]
      %v185 = vld [vmem:[%s158 + $0x98] sm:$0xff]
      %v186 = vld [vmem:[%s158 + $0xa0] sm:$0xff]
      %v187 = vld [vmem:[%s158 + $0xa8] sm:$0xff]
      %v188 = vld [vmem:[%s158 + $0xb0] sm:$0xff]
      %v189 = vld [vmem:[%s158 + $0xb8] sm:$0xff]
      %v190 = vld [vmem:[%s158 + $0xc0] sm:$0xff]
      %v191 = vld [vmem:[%s158 + $0xc8] sm:$0xff]
      %v192 = vld [vmem:[%s158 + $0xd0] sm:$0xff]
      %v193 = vld [vmem:[%s158 + $0xd8] sm:$0xff]
      %v194 = vld [vmem:[%s158 + $0xe0] sm:$0xff]
      %v195 = vld [vmem:[%s158 + $0xe8] sm:$0xff]
      %v196 = vld [vmem:[%s158 + $0xf0] sm:$0xff]
      %v197 = vld [vmem:[%s158 + $0xf8] sm:$0xff]
      %v198 = vld [vmem:[%s158 + $0x100] sm:$0xff]
      %v199 = vld [vmem:[%s158 + $0x108] sm:$0xff]
      %v200 = vld [vmem:[%s158 + $0x110] sm:$0xff]
      %v201 = vld [vmem:[%s158 + $0x118] sm:$0xff]
      %v202 = vld [vmem:[%s158 + $0x120] sm:$0xff]
      %v203 = vld [vmem:[%s158 + $0x128] sm:$0xff]
      %v204 = vld [vmem:[%s158 + $0x130] sm:$0xff]
      %v205 = vld [vmem:[%s158 + $0x138] sm:$0xff]
      %v206 = vld [vmem:[%s158 + $0x140] sm:$0xff]
      %v207 = vld [vmem:[%s158 + $0x148] sm:$0xff]
      %v208 = vld [vmem:[%s158 + $0x150] sm:$0xff]
      %v209 = vld [vmem:[%s158 + $0x158] sm:$0xff]
      %v210 = vld [vmem:[%s158 + $0x160] sm:$0xff]
      %v211 = vld [vmem:[%s158 + $0x168] sm:$0xff]
      %v212 = vld [vmem:[%s158 + $0x170] sm:$0xff]
      %v213 = vld [vmem:[%s158 + $0x178] sm:$0xff]
      %v214 = vld [vmem:[%s158 + $0x180] sm:$0xff]
      %v215 = vld [vmem:[%s158 + $0x188] sm:$0xff]
      %v216 = vld [vmem:[%s158 + $0x190] sm:$0xff]
      %v217 = vld [vmem:[%s158 + $0x198] sm:$0xff]
      %v218 = vld [vmem:[%s158 + $0x1a0] sm:$0xff]
      %v219 = vld [vmem:[%s158 + $0x1a8] sm:$0xff]
      %v220 = vld [vmem:[%s158 + $0x1b0] sm:$0xff]
      %v221 = vld [vmem:[%s158 + $0x1b8] sm:$0xff]
      %v222 = vld [vmem:[%s158 + $0x1c0] sm:$0xff]
      %v223 = vld [vmem:[%s158 + $0x1c8] sm:$0xff]
      %v224 = vld [vmem:[%s158 + $0x1d0] sm:$0xff]
      %v225 = vld [vmem:[%s158 + $0x1d8] sm:$0xff]
      %v226 = vld [vmem:[%s158 + $0x1e0] sm:$0xff]
      %v227 = vld [vmem:[%s158 + $0x1e8] sm:$0xff]
      %v228 = vld [vmem:[%s158 + $0x1f0] sm:$0xff]
      %v229 = vld [vmem:[%s158 + $0x1f8] sm:$0xff]
      %v232 = vunpack.c.l.b16 %v164
      %v233 = vunpack.c.h.b16 %v164
      %v234 = vunpack.c.l.b16 %v165
      %v235 = vunpack.c.h.b16 %v165
      %v236 = vpack.c.b16 %v234, %v232
      %v237 = vpack.c.b16 %v235, %v233
      %v304 = vunpack.c.l.b16 %v166
      %v305 = vunpack.c.h.b16 %v166
      %v306 = vunpack.c.l.b16 %v167
      %v307 = vunpack.c.h.b16 %v167
      %v308 = vunpack.c.l.b16 %v168
      %v309 = vunpack.c.h.b16 %v168
      %v310 = vunpack.c.l.b16 %v169
      %v311 = vunpack.c.h.b16 %v169
      %v312 = vunpack.c.l.b16 %v170
      %v313 = vunpack.c.h.b16 %v170
      %v314 = vunpack.c.l.b16 %v171
      %v315 = vunpack.c.h.b16 %v171
      %v316 = vunpack.c.l.b16 %v172
      %v317 = vunpack.c.h.b16 %v172
      %v318 = vunpack.c.l.b16 %v173
      %v319 = vunpack.c.h.b16 %v173
      %v320 = vunpack.c.l.b16 %v174
      %v321 = vunpack.c.h.b16 %v174
      %v322 = vunpack.c.l.b16 %v175
      %v323 = vunpack.c.h.b16 %v175
      %v324 = vunpack.c.l.b16 %v176
      %v325 = vunpack.c.h.b16 %v176
      %v326 = vunpack.c.l.b16 %v177
      %v327 = vunpack.c.h.b16 %v177
      %v328 = vunpack.c.l.b16 %v178
      %v329 = vunpack.c.h.b16 %v178
      %v330 = vunpack.c.l.b16 %v179
      %v331 = vunpack.c.h.b16 %v179
      %v332 = vunpack.c.l.b16 %v180
      %v333 = vunpack.c.h.b16 %v180
      %v334 = vunpack.c.l.b16 %v181
      %v335 = vunpack.c.h.b16 %v181
      %v336 = vunpack.c.l.b16 %v182
      %v337 = vunpack.c.h.b16 %v182
      %v338 = vunpack.c.l.b16 %v183
      %v339 = vunpack.c.h.b16 %v183
      %v340 = vunpack.c.l.b16 %v184
      %v341 = vunpack.c.h.b16 %v184
      %v342 = vunpack.c.l.b16 %v185
      %v343 = vunpack.c.h.b16 %v185
      %v344 = vunpack.c.l.b16 %v186
      %v345 = vunpack.c.h.b16 %v186
      %v346 = vunpack.c.l.b16 %v187
      %v347 = vunpack.c.h.b16 %v187
      %v348 = vunpack.c.l.b16 %v188
      %v349 = vunpack.c.h.b16 %v188
      %v350 = vunpack.c.l.b16 %v189
      %v351 = vunpack.c.h.b16 %v189
      %v352 = vunpack.c.l.b16 %v190
      %v353 = vunpack.c.h.b16 %v190
      %v354 = vunpack.c.l.b16 %v191
      %v355 = vunpack.c.h.b16 %v191
      %v356 = vunpack.c.l.b16 %v192
      %v357 = vunpack.c.h.b16 %v192
      %v358 = vunpack.c.l.b16 %v193
      %v359 = vunpack.c.h.b16 %v193
      %v360 = vunpack.c.l.b16 %v194
      %v361 = vunpack.c.h.b16 %v194
      %v362 = vunpack.c.l.b16 %v195
      %v363 = vunpack.c.h.b16 %v195
      %v364 = vunpack.c.l.b16 %v196
      %v365 = vunpack.c.h.b16 %v196
      %v366 = vunpack.c.l.b16 %v197
      %v367 = vunpack.c.h.b16 %v197
      %v368 = vunpack.c.l.b16 %v198
      %v369 = vunpack.c.h.b16 %v198
      %v370 = vunpack.c.l.b16 %v199
      %v371 = vunpack.c.h.b16 %v199
      %v372 = vunpack.c.l.b16 %v200
      %v373 = vunpack.c.h.b16 %v200
      %v374 = vunpack.c.l.b16 %v201
      %v375 = vunpack.c.h.b16 %v201
      %v376 = vunpack.c.l.b16 %v202
      %v377 = vunpack.c.h.b16 %v202
      %v378 = vunpack.c.l.b16 %v203
      %v379 = vunpack.c.h.b16 %v203
      %v380 = vunpack.c.l.b16 %v204
      %v381 = vunpack.c.h.b16 %v204
      %v382 = vunpack.c.l.b16 %v205
      %v383 = vunpack.c.h.b16 %v205
      %v384 = vunpack.c.l.b16 %v206
      %v385 = vunpack.c.h.b16 %v206
      %v386 = vunpack.c.l.b16 %v207
      %v387 = vunpack.c.h.b16 %v207
      %v388 = vunpack.c.l.b16 %v208
      %v389 = vunpack.c.h.b16 %v208
      %v390 = vunpack.c.l.b16 %v209
      %v391 = vunpack.c.h.b16 %v209
      %v392 = vunpack.c.l.b16 %v210
      %v393 = vunpack.c.h.b16 %v210
      %v394 = vunpack.c.l.b16 %v211
      %v395 = vunpack.c.h.b16 %v211
      %v396 = vunpack.c.l.b16 %v212
      %v397 = vunpack.c.h.b16 %v212
      %v398 = vunpack.c.l.b16 %v213
      %v399 = vunpack.c.h.b16 %v213
      %v400 = vunpack.c.l.b16 %v214
      %v401 = vunpack.c.h.b16 %v214
      %v402 = vunpack.c.l.b16 %v215
      %v403 = vunpack.c.h.b16 %v215
      %v404 = vunpack.c.l.b16 %v216
      %v405 = vunpack.c.h.b16 %v216
      %v406 = vunpack.c.l.b16 %v217
      %v407 = vunpack.c.h.b16 %v217
      %v408 = vunpack.c.l.b16 %v218
      %v409 = vunpack.c.h.b16 %v218
      %v410 = vunpack.c.l.b16 %v219
      %v411 = vunpack.c.h.b16 %v219
      %v412 = vunpack.c.l.b16 %v220
      %v413 = vunpack.c.h.b16 %v220
      %v414 = vunpack.c.l.b16 %v221
      %v415 = vunpack.c.h.b16 %v221
      %v416 = vunpack.c.l.b16 %v222
      %v417 = vunpack.c.h.b16 %v222
      %v418 = vunpack.c.l.b16 %v223
      %v419 = vunpack.c.h.b16 %v223
      %v420 = vunpack.c.l.b16 %v224
      %v421 = vunpack.c.h.b16 %v224
      %v422 = vunpack.c.l.b16 %v225
      %v423 = vunpack.c.h.b16 %v225
      %v424 = vunpack.c.l.b16 %v226
      %v425 = vunpack.c.h.b16 %v226
      %v426 = vunpack.c.l.b16 %v227
      %v427 = vunpack.c.h.b16 %v227
      %v428 = vunpack.c.l.b16 %v228
      %v429 = vunpack.c.h.b16 %v228
      %v430 = vunpack.c.l.b16 %v229
      %v431 = vunpack.c.h.b16 %v229
      %v432 = vpack.c.b16 %v308, %v304
      %v433 = vpack.c.b16 %v309, %v305
      %v434 = vpack.c.b16 %v310, %v306
      %v435 = vpack.c.b16 %v311, %v307
      %v436 = vpack.c.b16 %v316, %v312
      %v437 = vpack.c.b16 %v317, %v313
      %v438 = vpack.c.b16 %v318, %v314
      %v439 = vpack.c.b16 %v319, %v315
      %v440 = vpack.c.b16 %v324, %v320
      %v441 = vpack.c.b16 %v325, %v321
      %v442 = vpack.c.b16 %v326, %v322
      %v443 = vpack.c.b16 %v327, %v323
      %v444 = vpack.c.b16 %v332, %v328
      %v445 = vpack.c.b16 %v333, %v329
      %v446 = vpack.c.b16 %v334, %v330
      %v447 = vpack.c.b16 %v335, %v331
      %v448 = vpack.c.b16 %v340, %v336
      %v449 = vpack.c.b16 %v341, %v337
      %v450 = vpack.c.b16 %v342, %v338
      %v451 = vpack.c.b16 %v343, %v339
      %v452 = vpack.c.b16 %v348, %v344
      %v453 = vpack.c.b16 %v349, %v345
      %v454 = vpack.c.b16 %v350, %v346
      %v455 = vpack.c.b16 %v351, %v347
      %v456 = vpack.c.b16 %v356, %v352
      %v457 = vpack.c.b16 %v357, %v353
      %v458 = vpack.c.b16 %v358, %v354
      %v459 = vpack.c.b16 %v359, %v355
      %v460 = vpack.c.b16 %v364, %v360
      %v461 = vpack.c.b16 %v365, %v361
      %v462 = vpack.c.b16 %v366, %v362
      %v463 = vpack.c.b16 %v367, %v363
      %v464 = vpack.c.b16 %v372, %v368
      %v465 = vpack.c.b16 %v373, %v369
      %v466 = vpack.c.b16 %v374, %v370
      %v467 = vpack.c.b16 %v375, %v371
      %v468 = vpack.c.b16 %v380, %v376
      %v469 = vpack.c.b16 %v381, %v377
      %v470 = vpack.c.b16 %v382, %v378
      %v471 = vpack.c.b16 %v383, %v379
      %v472 = vpack.c.b16 %v388, %v384
      %v473 = vpack.c.b16 %v389, %v385
      %v474 = vpack.c.b16 %v390, %v386
      %v475 = vpack.c.b16 %v391, %v387
      %v476 = vpack.c.b16 %v396, %v392
      %v477 = vpack.c.b16 %v397, %v393
      %v478 = vpack.c.b16 %v398, %v394
      %v479 = vpack.c.b16 %v399, %v395
      %v480 = vpack.c.b16 %v404, %v400
      %v481 = vpack.c.b16 %v405, %v401
      %v482 = vpack.c.b16 %v406, %v402
      %v483 = vpack.c.b16 %v407, %v403
      %v484 = vpack.c.b16 %v412, %v408
      %v485 = vpack.c.b16 %v413, %v409
      %v486 = vpack.c.b16 %v414, %v410
      %v487 = vpack.c.b16 %v415, %v411
      %v488 = vpack.c.b16 %v420, %v416
      %v489 = vpack.c.b16 %v421, %v417
      %v490 = vpack.c.b16 %v422, %v418
      %v491 = vpack.c.b16 %v423, %v419
      %v492 = vpack.c.b16 %v428, %v424
      %v493 = vpack.c.b16 %v429, %v425
      %v494 = vpack.c.b16 %v430, %v426
      %v495 = vpack.c.b16 %v431, %v427
      %560 = vmatprep.subr.bf16.mxu0 %v433
      %561 = vmatpush1.bf16.msra.mxu0 %v432
      %562 = vmatprep.subr.bf16.mxu0 %v437
      %563 = vmatpush1.bf16.msra.mxu0 %v436
      %564 = vmatprep.subr.bf16.mxu0 %v441
      %565 = vmatpush1.bf16.msra.mxu0 %v440
      %566 = vmatprep.subr.bf16.mxu0 %v445
      %567 = vmatpush1.bf16.msra.mxu0 %v444
      %568 = vmatprep.subr.bf16.mxu0 %v449
      %569 = vmatpush1.bf16.msra.mxu0 %v448
      %570 = vmatprep.subr.bf16.mxu0 %v453
      %571 = vmatpush1.bf16.msra.mxu0 %v452
      %572 = vmatprep.subr.bf16.mxu0 %v457
      %573 = vmatpush1.bf16.msra.mxu0 %v456
      %574 = vmatprep.subr.bf16.mxu0 %v461
      %575 = vmatpush1.bf16.msra.mxu0 %v460
      %576 = vmatprep.subr.bf16.mxu0 %v465
      %577 = vmatpush1.bf16.msra.mxu0 %v464
      %578 = vmatprep.subr.bf16.mxu0 %v469
      %579 = vmatpush1.bf16.msra.mxu0 %v468
      %580 = vmatprep.subr.bf16.mxu0 %v473
      %581 = vmatpush1.bf16.msra.mxu0 %v472
      %582 = vmatprep.subr.bf16.mxu0 %v477
      %583 = vmatpush1.bf16.msra.mxu0 %v476
      %584 = vmatprep.subr.bf16.mxu0 %v481
      %585 = vmatpush1.bf16.msra.mxu0 %v480
      %586 = vmatprep.subr.bf16.mxu0 %v485
      %587 = vmatpush1.bf16.msra.mxu0 %v484
      %588 = vmatprep.subr.bf16.mxu0 %v489
      %589 = vmatpush1.bf16.msra.mxu0 %v488
      %590 = vmatprep.subr.bf16.mxu0 %v493
      %591 = vmatpush1.bf16.msra.mxu0 %v492
      %592 = vmatprep.mubr.bf16.mxu0 %v237
      %593 = vmatmul.mubr.bf16.gmra.mrb[0].mxu0 %v236
      %v594 = vpop.f32.mrb[0].mxu0
      %v595 = vadd.f32 0.0, %v594
      %v596 = vpop.f32.mrb[0].mxu0
      %v597 = vadd.f32 0.0, %v596
      %v598 = vpop.f32.mrb[0].mxu0
      %v599 = vadd.f32 0.0, %v598
      %v600 = vpop.f32.mrb[0].mxu0
      %v601 = vadd.f32 0.0, %v600
      %602 = vdwg.mxu0
      %603 = vmatprep.subr.bf16.mxu0 %v435
      %604 = vmatpush1.bf16.msra.mxu0 %v434
      %605 = vmatprep.subr.bf16.mxu0 %v439
      %606 = vmatpush1.bf16.msra.mxu0 %v438
      %607 = vmatprep.subr.bf16.mxu0 %v443
      %608 = vmatpush1.bf16.msra.mxu0 %v442
      %609 = vmatprep.subr.bf16.mxu0 %v447
      %610 = vmatpush1.bf16.msra.mxu0 %v446
      %611 = vmatprep.subr.bf16.mxu0 %v451
      %612 = vmatpush1.bf16.msra.mxu0 %v450
      %613 = vmatprep.subr.bf16.mxu0 %v455
      %614 = vmatpush1.bf16.msra.mxu0 %v454
      %615 = vmatprep.subr.bf16.mxu0 %v459
      %616 = vmatpush1.bf16.msra.mxu0 %v458
      %617 = vmatprep.subr.bf16.mxu0 %v463
      %618 = vmatpush1.bf16.msra.mxu0 %v462
      %619 = vmatprep.subr.bf16.mxu0 %v467
      %620 = vmatpush1.bf16.msra.mxu0 %v466
      %621 = vmatprep.subr.bf16.mxu0 %v471
      %622 = vmatpush1.bf16.msra.mxu0 %v470
      %623 = vmatprep.subr.bf16.mxu0 %v475
      %624 = vmatpush1.bf16.msra.mxu0 %v474
      %625 = vmatprep.subr.bf16.mxu0 %v479
      %626 = vmatpush1.bf16.msra.mxu0 %v478
      %627 = vmatprep.subr.bf16.mxu0 %v483
      %628 = vmatpush1.bf16.msra.mxu0 %v482
      %629 = vmatprep.subr.bf16.mxu0 %v487
      %630 = vmatpush1.bf16.msra.mxu0 %v486
      %631 = vmatprep.subr.bf16.mxu0 %v491
      %632 = vmatpush1.bf16.msra.mxu0 %v490
      %633 = vmatprep.subr.bf16.mxu0 %v495
      %634 = vmatpush1.bf16.msra.mxu0 %v494
      %635 = vmatprep.mubr.bf16.mxu0 %v237
      %636 = vmatmul.mubr.bf16.gmra.mrb[0].mxu0 %v236
      %v637 = vpop.f32.mrb[0].mxu0
      %v638 = vadd.f32 0.0, %v637
      %v639 = vpop.f32.mrb[0].mxu0
      %v640 = vadd.f32 0.0, %v639
      %v641 = vpop.f32.mrb[0].mxu0
      %v642 = vadd.f32 0.0, %v641
      %v643 = vpop.f32.mrb[0].mxu0
      %v644 = vadd.f32 0.0, %v643
      %645 = vdwg.mxu0
      %646 = vst [vmem:[%s163] sm:$0xff] %v595
      %647 = vst [vmem:[%s163 + $0x8] sm:$0xff] %v597
      %648 = vst [vmem:[%s163 + $0x10] sm:$0xff] %v638
      %649 = vst [vmem:[%s163 + $0x18] sm:$0xff] %v640
      %650 = vst [vmem:[%s163 + $0x20] sm:$0xff] %v599
      %651 = vst [vmem:[%s163 + $0x28] sm:$0xff] %v601
      %652 = vst [vmem:[%s163 + $0x30] sm:$0xff] %v642
      %653 = vst [vmem:[%s163 + $0x38] sm:$0xff] %v644
      %p654 = scmp.lt.s32.totalorder %s13, 3
      %s655 = scalar_select %p654, %s13, 3
      %s656 = smul.addr %s655, 8
      %s657 = smul.addr %s656, 8
      %s658 = scalar_lea.vmem %s2, %s657
      // Predicated region
      $region29: #{_lambda_.17} parent=27 // pred_check
        %p659 = pneg %p83
      $region30: #{_lambda_.17} parent=27 // pred_check_branch
        %661 = sbr.rel (%p659) target = $region32
      $region31: #{_lambda_.17} parent=27 // pred_region
        _
      $region32: #{_lambda_.17} parent=27 // pred_fallthru
        _
    $region28: #{_lambda_.17} parent=5 // pred_fallthru
      _
    %p662 = scmp.le.s32.totalorder 2, %s8
    // Predicated region
    $region33: #{_lambda_.17} parent=5 // pred_check
      %p663 = pneg %p662
    $region34: #{_lambda_.17} parent=5 // pred_check_branch
      %665 = sbr.rel (%p663) target = $region36
    $region35: #{_lambda_.17} parent=5 // pred_region
      %s666 = ssub.s32 %s8, 2
      // Predicated region
      $region37: #{_lambda_.17} parent=35 // pred_check
        %p667 = pneg %p89
      $region38: #{_lambda_.17} parent=35 // pred_check_branch
        %669 = sbr.rel (%p667) target = $region40
      $region39: #{_lambda_.17} parent=35 // pred_region
        %p670 = scmp.lt.s32.totalorder %s14, 3
        %s671 = scalar_select %p670, %s14, 3
        %s672 = smul.addr %s671, 8
        %s673 = smul.addr %s672, 8
        %s674 = scalar_lea.vmem %s2, %s673
      $region40: #{_lambda_.17} parent=35 // pred_fallthru
        _
    $region36: #{_lambda_.17} parent=5 // pred_fallthru
      _
  $region6: #{_lambda_.17} parent=0 // loop_footer
    %s12 = sadd.s32 1, %s8
  $region7: #{_lambda_.17} parent=0 // loop_footer_branch
    %7 = sbr.rel target = $region3
  $region8: #{_lambda_.17} parent=0 // loop_exit
    _

// kernel: _lambda_.18
$region0: #{_lambda_.18}
  #allocation0 [shape = 'u32[]', space=smem, size = 0x4, offset = 0x4, fixed_abs, tag = 'smem constant byte address 0x4 - core index']
  #allocation1 [shape = 'u32[144,128]{1,0:T(1,128)}', space=vmem, size = 0x12000, scoped, tag = 'internal scratch']
  %s0 = inlined_call_operand.vmem [shape: f32[2,32,512], index: 0, kind: input, shape index: {}]
  %s1 = inlined_call_operand.vmem [shape: f32[1,32], index: 1, kind: input, shape index: {}]
  %s2 = inlined_call_operand.vmem [shape: f32[2,32,512], index: 2, kind: output, shape index: {}]
  %s3 = sld [smem:[#allocation0]]
  $region18: #{_lambda_.18} parent=0
    _
  %s5 = ssub.s32 1, %s3
  %s6 = scalar_select 0, %s5, %s3
  // Predicated region
  $region2: #{_lambda_.18} parent=0 // pred_check
    _
  $region3: #{_lambda_.18} parent=0 // pred_check_branch
    %8 = sbr.rel (0) target = $region5
  $region4: #{_lambda_.18} parent=0 // pred_region
    _
  $region5: #{_lambda_.18} parent=0 // pred_fallthru
    _
  // Predicated region
  $region6: #{_lambda_.18} parent=0 // pred_check
    _
  $region7: #{_lambda_.18} parent=0 // pred_check_branch
    %10 = sbr.rel (0) target = $region9
  $region8: #{_lambda_.18} parent=0 // pred_region
    _
  $region9: #{_lambda_.18} parent=0 // pred_fallthru
    _
  %v11 = vld [vmem:[%s0] sm:$0xff]
  %v12 = vld [vmem:[%s0 + $0x8] sm:$0xff]
  %v13 = vld [vmem:[%s0 + $0x10] sm:$0xff]
  %v14 = vld [vmem:[%s0 + $0x18] sm:$0xff]
  %v15 = vld [vmem:[%s0 + $0x20] sm:$0xff]
  %v16 = vld [vmem:[%s0 + $0x28] sm:$0xff]
  %v17 = vld [vmem:[%s0 + $0x30] sm:$0xff]
  %v18 = vld [vmem:[%s0 + $0x38] sm:$0xff]
  %v19 = vld [vmem:[%s0 + $0x40] sm:$0xff]
  %v20 = vld [vmem:[%s0 + $0x48] sm:$0xff]
  %v21 = vld [vmem:[%s0 + $0x50] sm:$0xff]
  %v22 = vld [vmem:[%s0 + $0x58] sm:$0xff]
  %v23 = vld [vmem:[%s0 + $0x60] sm:$0xff]
  %v24 = vld [vmem:[%s0 + $0x68] sm:$0xff]
  %v25 = vld [vmem:[%s0 + $0x70] sm:$0xff]
  %v26 = vld [vmem:[%s0 + $0x78] sm:$0xff]
  %v27 = vld [vmem:[%s0 + $0x80] sm:$0xff]
  %v28 = vld [vmem:[%s0 + $0x88] sm:$0xff]
  %v29 = vld [vmem:[%s0 + $0x90] sm:$0xff]
  %v30 = vld [vmem:[%s0 + $0x98] sm:$0xff]
  %v31 = vld [vmem:[%s0 + $0xa0] sm:$0xff]
  %v32 = vld [vmem:[%s0 + $0xa8] sm:$0xff]
  %v33 = vld [vmem:[%s0 + $0xb0] sm:$0xff]
  %v34 = vld [vmem:[%s0 + $0xb8] sm:$0xff]
  %v35 = vld [vmem:[%s0 + $0xc0] sm:$0xff]
  %v36 = vld [vmem:[%s0 + $0xc8] sm:$0xff]
  %v37 = vld [vmem:[%s0 + $0xd0] sm:$0xff]
  %v38 = vld [vmem:[%s0 + $0xd8] sm:$0xff]
  %v39 = vld [vmem:[%s0 + $0xe0] sm:$0xff]
  %v40 = vld [vmem:[%s0 + $0xe8] sm:$0xff]
  %v41 = vld [vmem:[%s0 + $0xf0] sm:$0xff]
  %v42 = vld [vmem:[%s0 + $0xf8] sm:$0xff]
  %v43 = vld [vmem:[%s1] sm:$0x1]
  %v44 = vlaneseq
  %v45 = vshrl.u32 %v44, 7
  %v46 = vsub.s32 0, %v45
  %v47 = vrot.slane %v43, %v46
  %49 = vbcast.lane.b32.xlu0 %v47, 256
  %v50 = vpop.permute.xlu0 %49
  %s52 = sor.u32 256, 8
  %53 = vbcast.lane.b32.xlu0 %v47, %s52
  %v54 = vpop.permute.xlu0 %53
  %s56 = sor.u32 256, 16
  %57 = vbcast.lane.b32.xlu0 %v47, %s56
  %v58 = vpop.permute.xlu0 %57
  %s60 = sor.u32 256, 24
  %61 = vbcast.lane.b32.xlu0 %v47, %s60
  %v62 = vpop.permute.xlu0 %61
  %v63 = vadd.f32 %v11, %v50
  %v64 = vadd.f32 %v12, %v50
  %v65 = vadd.f32 %v13, %v50
  %v66 = vadd.f32 %v14, %v50
  %v67 = vadd.f32 %v15, %v54
  %v68 = vadd.f32 %v16, %v54
  %v69 = vadd.f32 %v17, %v54
  %v70 = vadd.f32 %v18, %v54
  %v71 = vadd.f32 %v19, %v58
  %v72 = vadd.f32 %v20, %v58
  %v73 = vadd.f32 %v21, %v58
  %v74 = vadd.f32 %v22, %v58
  %v75 = vadd.f32 %v23, %v62
  %v76 = vadd.f32 %v24, %v62
  %v77 = vadd.f32 %v25, %v62
  %v78 = vadd.f32 %v26, %v62
  %v79 = vadd.f32 %v27, %v50
  %v80 = vadd.f32 %v28, %v50
  %v81 = vadd.f32 %v29, %v50
  %v82 = vadd.f32 %v30, %v50
  %v83 = vadd.f32 %v31, %v54
  %v84 = vadd.f32 %v32, %v54
  %v85 = vadd.f32 %v33, %v54
  %v86 = vadd.f32 %v34, %v54
  %v87 = vadd.f32 %v35, %v58
  %v88 = vadd.f32 %v36, %v58
  %v89 = vadd.f32 %v37, %v58
  %v90 = vadd.f32 %v38, %v58
  %v91 = vadd.f32 %v39, %v62
  %v92 = vadd.f32 %v40, %v62
  %v93 = vadd.f32 %v41, %v62
  %v94 = vadd.f32 %v42, %v62
  %v95 = vmax.f32 %v63, 0.0
  %v96 = vmax.f32 %v64, 0.0
  %v97 = vmax.f32 %v65, 0.0
  %v98 = vmax.f32 %v66, 0.0
  %v99 = vmax.f32 %v67, 0.0
  %v100 = vmax.f32 %v68, 0.0
  %v101 = vmax.f32 %v69, 0.0
  %v102 = vmax.f32 %v70, 0.0
  %v103 = vmax.f32 %v71, 0.0
  %v104 = vmax.f32 %v72, 0.0
  %v105 = vmax.f32 %v73, 0.0
  %v106 = vmax.f32 %v74, 0.0
  %v107 = vmax.f32 %v75, 0.0
  %v108 = vmax.f32 %v76, 0.0
  %v109 = vmax.f32 %v77, 0.0
  %v110 = vmax.f32 %v78, 0.0
  %v111 = vmax.f32 %v79, 0.0
  %v112 = vmax.f32 %v80, 0.0
  %v113 = vmax.f32 %v81, 0.0
  %v114 = vmax.f32 %v82, 0.0
  %v115 = vmax.f32 %v83, 0.0
  %v116 = vmax.f32 %v84, 0.0
  %v117 = vmax.f32 %v85, 0.0
  %v118 = vmax.f32 %v86, 0.0
  %v119 = vmax.f32 %v87, 0.0
  %v120 = vmax.f32 %v88, 0.0
  %v121 = vmax.f32 %v89, 0.0
  %v122 = vmax.f32 %v90, 0.0
  %v123 = vmax.f32 %v91, 0.0
  %v124 = vmax.f32 %v92, 0.0
  %v125 = vmax.f32 %v93, 0.0
  %v126 = vmax.f32 %v94, 0.0
  %127 = vst [vmem:[%s2] sm:$0xff] %v95
  %128 = vst [vmem:[%s2 + $0x8] sm:$0xff] %v96
  %129 = vst [vmem:[%s2 + $0x10] sm:$0xff] %v97
  %130 = vst [vmem:[%s2 + $0x18] sm:$0xff] %v98
  %131 = vst [vmem:[%s2 + $0x20] sm:$0xff] %v99
  %132 = vst [vmem:[%s2 + $0x28] sm:$0xff] %v100
  %133 = vst [vmem:[%s2 + $0x30] sm:$0xff] %v101
  %134 = vst [vmem:[%s2 + $0x38] sm:$0xff] %v102
  %135 = vst [vmem:[%s2 + $0x40] sm:$0xff] %v103
  %136 = vst [vmem:[%s2 + $0x48] sm:$0xff] %v104
  %137 = vst [vmem:[%s2 + $0x50] sm:$0xff] %v105
  %138 = vst [vmem:[%s2 + $0x58] sm:$0xff] %v106
  %139 = vst [vmem:[%s2 + $0x60] sm:$0xff] %v107
  %140 = vst [vmem:[%s2 + $0x68] sm:$0xff] %v108
  %141 = vst [vmem:[%s2 + $0x70] sm:$0xff] %v109
  %142 = vst [vmem:[%s2 + $0x78] sm:$0xff] %v110
  %143 = vst [vmem:[%s2 + $0x80] sm:$0xff] %v111
  %144 = vst [vmem:[%s2 + $0x88] sm:$0xff] %v112
  %145 = vst [vmem:[%s2 + $0x90] sm:$0xff] %v113
  %146 = vst [vmem:[%s2 + $0x98] sm:$0xff] %v114
  %147 = vst [vmem:[%s2 + $0xa0] sm:$0xff] %v115
  %148 = vst [vmem:[%s2 + $0xa8] sm:$0xff] %v116
  %149 = vst [vmem:[%s2 + $0xb0] sm:$0xff] %v117
  %150 = vst [vmem:[%s2 + $0xb8] sm:$0xff] %v118
  %151 = vst [vmem:[%s2 + $0xc0] sm:$0xff] %v119
  %152 = vst [vmem:[%s2 + $0xc8] sm:$0xff] %v120
  %153 = vst [vmem:[%s2 + $0xd0] sm:$0xff] %v121
  %154 = vst [vmem:[%s2 + $0xd8] sm:$0xff] %v122
  %155 = vst [vmem:[%s2 + $0xe0] sm:$0xff] %v123
  %156 = vst [vmem:[%s2 + $0xe8] sm:$0xff] %v124
  %157 = vst [vmem:[%s2 + $0xf0] sm:$0xff] %v125
  %158 = vst [vmem:[%s2 + $0xf8] sm:$0xff] %v126
  // Predicated region
  $region10: #{_lambda_.18} parent=0 // pred_check
    _
  $region11: #{_lambda_.18} parent=0 // pred_check_branch
    %160 = sbr.rel (0) target = $region13
  $region12: #{_lambda_.18} parent=0 // pred_region
    _
  $region13: #{_lambda_.18} parent=0 // pred_fallthru
    _
  // Predicated region
  $region14: #{_lambda_.18} parent=0 // pred_check
    _
  $region15: #{_lambda_.18} parent=0 // pred_check_branch
    %162 = sbr.rel (0) target = $region17
  $region16: #{_lambda_.18} parent=0 // pred_region
    _
  $region17: #{_lambda_.18} parent=0 // pred_fallthru
    _

// kernel: _lambda_.19
$region0: #{_lambda_.19}
  #allocation0 [shape = 'u32[]', space=smem, size = 0x4, offset = 0x4, fixed_abs, tag = 'smem constant byte address 0x4 - core index']
  #allocation1 [shape = 'u32[144,128]{1,0:T(1,128)}', space=vmem, size = 0x12000, scoped, tag = 'internal scratch']
  %s0 = inlined_call_operand.vmem [shape: bf16[4,16,512], index: 0, kind: input, shape index: {}]
  %s1 = inlined_call_operand.vmem [shape: bf16[4,512,512], index: 1, kind: input, shape index: {}]
  %s2 = inlined_call_operand.vmem [shape: f32[4,16,512], index: 2, kind: output, shape index: {}]
  %s3 = sld [smem:[#allocation0]]
  $region41: #{_lambda_.19} parent=0
    _
  %s5 = ssub.s32 1, %s3
  %s6 = scalar_select 0, %s5, %s3
  loop: start=0, step=1, limit=6
  $region2: #{_lambda_.19} parent=0 // loop_pre_header
    _
  $region3: #{_lambda_.19} parent=0 // loop_header
    %s8 = sphi 0, %s12
    %p9 = scmp.ge.s32.totalorder %s8, 6
    %s18 = sphi 0, %s20
    %s21 = sphi 0, %s18
    %s22 = sphi 0, %s21
    %s38 = sphi 0, %s22
    %s44 = sphi 0, %s46
    %s47 = sphi 0, %s44
    %s48 = sphi 0, %s47
    %s64 = sphi 0, %s48
    %s70 = sphi 0, %s72
    %s73 = sphi 0, %s70
    %s74 = sphi 0, %s73
    %s90 = sphi 0, %s74
  $region4: #{_lambda_.19} parent=0 // loop_header_branch
    %11 = sbr.rel (%p9) target = $region8
  $region5: #{_lambda_.19} parent=0 // loop_body
    %s13 = ssub.s32 %s8, 1
    %s14 = ssub.s32 %s8, 2
    %s15 = sadd.s32 %s8, 1
    %s16 = ssub.s32 %s8, %s15
    %p17 = scmp.eq.s32.totalorder %s16, 0
    %s19 = sadd.s32 %s18, 1
    %s20 = scalar_select %p17, %s18, %s19
    %p23 = pneg %p17
    %p24 = scmp.eq.s32.totalorder %s8, 3
    %p25 = por %p23, %p24
    %p26 = scmp.ne.s32.totalorder %s18, %s21
    %p27 = scmp.eq.s32.totalorder %s8, 0
    %p28 = por %p26, %p27
    %p29 = scmp.ne.s32.totalorder %s18, %s21
    %p30 = scmp.eq.s32.totalorder %s13, 3
    %p31 = por %p29, %p30
    %p32 = scmp.ne.s32.totalorder %s21, %s22
    %p33 = scmp.eq.s32.totalorder %s13, 0
    %p34 = por %p32, %p33
    %p35 = scmp.ne.s32.totalorder %s21, %s22
    %p36 = scmp.eq.s32.totalorder %s14, 3
    %p37 = por %p35, %p36
    %p39 = scmp.ne.s32.totalorder %s22, %s38
    %p40 = scmp.eq.s32.totalorder %s14, 0
    %p41 = por %p39, %p40
    %s42 = ssub.s32 %s8, %s15
    %p43 = scmp.eq.s32.totalorder %s42, 0
    %s45 = sadd.s32 %s44, 1
    %s46 = scalar_select %p43, %s44, %s45
    %p49 = pneg %p43
    %p50 = scmp.eq.s32.totalorder %s8, 3
    %p51 = por %p49, %p50
    %p52 = scmp.ne.s32.totalorder %s44, %s47
    %p53 = scmp.eq.s32.totalorder %s8, 0
    %p54 = por %p52, %p53
    %p55 = scmp.ne.s32.totalorder %s44, %s47
    %p56 = scmp.eq.s32.totalorder %s13, 3
    %p57 = por %p55, %p56
    %p58 = scmp.ne.s32.totalorder %s47, %s48
    %p59 = scmp.eq.s32.totalorder %s13, 0
    %p60 = por %p58, %p59
    %p61 = scmp.ne.s32.totalorder %s47, %s48
    %p62 = scmp.eq.s32.totalorder %s14, 3
    %p63 = por %p61, %p62
    %p65 = scmp.ne.s32.totalorder %s48, %s64
    %p66 = scmp.eq.s32.totalorder %s14, 0
    %p67 = por %p65, %p66
    %s68 = ssub.s32 %s8, %s15
    %p69 = scmp.eq.s32.totalorder %s68, 0
    %s71 = sadd.s32 %s70, 1
    %s72 = scalar_select %p69, %s70, %s71
    %p75 = pneg %p69
    %p76 = scmp.eq.s32.totalorder %s8, 3
    %p77 = por %p75, %p76
    %p78 = scmp.ne.s32.totalorder %s70, %s73
    %p79 = scmp.eq.s32.totalorder %s8, 0
    %p80 = por %p78, %p79
    %p81 = scmp.ne.s32.totalorder %s70, %s73
    %p82 = scmp.eq.s32.totalorder %s13, 3
    %p83 = por %p81, %p82
    %p84 = scmp.ne.s32.totalorder %s73, %s74
    %p85 = scmp.eq.s32.totalorder %s13, 0
    %p86 = por %p84, %p85
    %p87 = scmp.ne.s32.totalorder %s73, %s74
    %p88 = scmp.eq.s32.totalorder %s14, 3
    %p89 = por %p87, %p88
    %p91 = scmp.ne.s32.totalorder %s74, %s90
    %p92 = scmp.eq.s32.totalorder %s14, 0
    %p93 = por %p91, %p92
    %p94 = scmp.le.s32.totalorder 1, %s8
    %p95 = scmp.lt.s32.totalorder %s8, 5
    %p96 = pnand %p94, %p95
    %p97 = pneg %p96
    // Predicated region
    $region9: #{_lambda_.19} parent=5 // pred_check
      _
    $region10: #{_lambda_.19} parent=5 // pred_check_branch
      %99 = sbr.rel (%p96) target = $region12
    $region11: #{_lambda_.19} parent=5 // pred_region
      %s100 = ssub.s32 %s8, 1
    $region12: #{_lambda_.19} parent=5 // pred_fallthru
      _
    %p101 = scmp.lt.s32.totalorder %s8, 4
    // Predicated region
    $region13: #{_lambda_.19} parent=5 // pred_check
      %p102 = pneg %p101
    $region14: #{_lambda_.19} parent=5 // pred_check_branch
      %104 = sbr.rel (%p102) target = $region16
    $region15: #{_lambda_.19} parent=5 // pred_region
      // Predicated region
      $region17: #{_lambda_.19} parent=15 // pred_check
        %p105 = pneg %p28
      $region18: #{_lambda_.19} parent=15 // pred_check_branch
        %107 = sbr.rel (%p105) target = $region20
      $region19: #{_lambda_.19} parent=15 // pred_region
        %p108 = scmp.lt.s32.totalorder %s8, 3
        %s109 = scalar_select %p108, %s8, 3
        %s110 = smul.addr %s109, 8
        %s111 = smul.addr %s110, 4
        %s112 = scalar_lea.vmem %s0, %s111
      $region20: #{_lambda_.19} parent=15 // pred_fallthru
        _
      // Predicated region
      $region21: #{_lambda_.19} parent=15 // pred_check
        %p113 = pneg %p54
      $region22: #{_lambda_.19} parent=15 // pred_check_branch
        %115 = sbr.rel (%p113) target = $region24
      $region23: #{_lambda_.19} parent=15 // pred_region
        %p116 = scmp.lt.s32.totalorder %s8, 3
        %s117 = scalar_select %p116, %s8, 3
        %s118 = smul.addr %s117, 256
        %s119 = smul.addr %s118, 4
        %s120 = scalar_lea.vmem %s1, %s119
      $region24: #{_lambda_.19} parent=15 // pred_fallthru
        _
    $region16: #{_lambda_.19} parent=5 // pred_fallthru
      _
    %p121 = scmp.le.s32.totalorder 1, %s8
    %p122 = scmp.lt.s32.totalorder %s8, 5
    %p123 = pnand %p121, %p122
    %p124 = pneg %p123
    // Predicated region
    $region25: #{_lambda_.19} parent=5 // pred_check
      _
    $region26: #{_lambda_.19} parent=5 // pred_check_branch
      %126 = sbr.rel (%p123) target = $region28
    $region27: #{_lambda_.19} parent=5 // pred_region
      %s127 = ssub.s32 %s8, 1
      %p128 = scmp.lt.s32.totalorder %s13, 3
      %s129 = scalar_select %p128, %s13, 3
      %s130 = smul.addr %s129, 8
      %s131 = smul.addr %s130, 4
      %s132 = scalar_lea.vmem %s0, %s131
      %p133 = pneg %p34
      %p134 = pneg %p31
      %p135 = scmp.lt.s32.totalorder %s13, 3
      %s136 = scalar_select %p135, %s13, 3
      %s137 = smul.addr %s136, 256
      %s138 = smul.addr %s137, 4
      %s139 = scalar_lea.vmem %s1, %s138
      %p140 = pneg %p60
      %p141 = pneg %p57
      %p142 = pneg %p86
      %p143 = pneg %p83
      %p144 = scmp.lt.s32.totalorder %s13, 3
      %s145 = scalar_select %p144, %s13, 3
      %s146 = smul.addr %s145, 8
      %s147 = smul.addr %s146, 8
      %s148 = scalar_lea.vmem %s2, %s147
      %p149 = scmp.lt.s32.totalorder %s13, 3
      %s150 = scalar_select %p149, %s13, 3
      %s151 = smul.addr %s150, 8
      %s152 = smul.addr %s151, 4
      %s153 = scalar_lea.vmem %s0, %s152
      %p154 = scmp.lt.s32.totalorder %s13, 3
      %s155 = scalar_select %p154, %s13, 3
      %s156 = smul.addr %s155, 256
      %s157 = smul.addr %s156, 4
      %s158 = scalar_lea.vmem %s1, %s157
      %p159 = scmp.lt.s32.totalorder %s13, 3
      %s160 = scalar_select %p159, %s13, 3
      %s161 = smul.addr %s160, 8
      %s162 = smul.addr %s161, 8
      %s163 = scalar_lea.vmem %s2, %s162
      %v164 = vld [vmem:[%s153] sm:$0xff]
      %v165 = vld [vmem:[%s153 + $0x8] sm:$0xff]
      %v166 = vld [vmem:[%s153 + $0x10] sm:$0xff]
      %v167 = vld [vmem:[%s153 + $0x18] sm:$0xff]
      %v168 = vld [vmem:[%s158] sm:$0xff]
      %v169 = vld [vmem:[%s158 + $0x8] sm:$0xff]
      %v170 = vld [vmem:[%s158 + $0x10] sm:$0xff]
      %v171 = vld [vmem:[%s158 + $0x18] sm:$0xff]
      %v172 = vld [vmem:[%s158 + $0x20] sm:$0xff]
      %v173 = vld [vmem:[%s158 + $0x28] sm:$0xff]
      %v174 = vld [vmem:[%s158 + $0x30] sm:$0xff]
      %v175 = vld [vmem:[%s158 + $0x38] sm:$0xff]
      %v176 = vld [vmem:[%s158 + $0x40] sm:$0xff]
      %v177 = vld [vmem:[%s158 + $0x48] sm:$0xff]
      %v178 = vld [vmem:[%s158 + $0x50] sm:$0xff]
      %v179 = vld [vmem:[%s158 + $0x58] sm:$0xff]
      %v180 = vld [vmem:[%s158 + $0x60] sm:$0xff]
      %v181 = vld [vmem:[%s158 + $0x68] sm:$0xff]
      %v182 = vld [vmem:[%s158 + $0x70] sm:$0xff]
      %v183 = vld [vmem:[%s158 + $0x78] sm:$0xff]
      %v184 = vld [vmem:[%s158 + $0x80] sm:$0xff]
      %v185 = vld [vmem:[%s158 + $0x88] sm:$0xff]
      %v186 = vld [vmem:[%s158 + $0x90] sm:$0xff]
      %v187 = vld [vmem:[%s158 + $0x98] sm:$0xff]
      %v188 = vld [vmem:[%s158 + $0xa0] sm:$0xff]
      %v189 = vld [vmem:[%s158 + $0xa8] sm:$0xff]
      %v190 = vld [vmem:[%s158 + $0xb0] sm:$0xff]
      %v191 = vld [vmem:[%s158 + $0xb8] sm:$0xff]
      %v192 = vld [vmem:[%s158 + $0xc0] sm:$0xff]
      %v193 = vld [vmem:[%s158 + $0xc8] sm:$0xff]
      %v194 = vld [vmem:[%s158 + $0xd0] sm:$0xff]
      %v195 = vld [vmem:[%s158 + $0xd8] sm:$0xff]
      %v196 = vld [vmem:[%s158 + $0xe0] sm:$0xff]
      %v197 = vld [vmem:[%s158 + $0xe8] sm:$0xff]
      %v198 = vld [vmem:[%s158 + $0xf0] sm:$0xff]
      %v199 = vld [vmem:[%s158 + $0xf8] sm:$0xff]
      %v200 = vld [vmem:[%s158 + $0x100] sm:$0xff]
      %v201 = vld [vmem:[%s158 + $0x108] sm:$0xff]
      %v202 = vld [vmem:[%s158 + $0x110] sm:$0xff]
      %v203 = vld [vmem:[%s158 + $0x118] sm:$0xff]
      %v204 = vld [vmem:[%s158 + $0x120] sm:$0xff]
      %v205 = vld [vmem:[%s158 + $0x128] sm:$0xff]
      %v206 = vld [vmem:[%s158 + $0x130] sm:$0xff]
      %v207 = vld [vmem:[%s158 + $0x138] sm:$0xff]
      %v208 = vld [vmem:[%s158 + $0x140] sm:$0xff]
      %v209 = vld [vmem:[%s158 + $0x148] sm:$0xff]
      %v210 = vld [vmem:[%s158 + $0x150] sm:$0xff]
      %v211 = vld [vmem:[%s158 + $0x158] sm:$0xff]
      %v212 = vld [vmem:[%s158 + $0x160] sm:$0xff]
      %v213 = vld [vmem:[%s158 + $0x168] sm:$0xff]
      %v214 = vld [vmem:[%s158 + $0x170] sm:$0xff]
      %v215 = vld [vmem:[%s158 + $0x178] sm:$0xff]
      %v216 = vld [vmem:[%s158 + $0x180] sm:$0xff]
      %v217 = vld [vmem:[%s158 + $0x188] sm:$0xff]
      %v218 = vld [vmem:[%s158 + $0x190] sm:$0xff]
      %v219 = vld [vmem:[%s158 + $0x198] sm:$0xff]
      %v220 = vld [vmem:[%s158 + $0x1a0] sm:$0xff]
      %v221 = vld [vmem:[%s158 + $0x1a8] sm:$0xff]
      %v222 = vld [vmem:[%s158 + $0x1b0] sm:$0xff]
      %v223 = vld [vmem:[%s158 + $0x1b8] sm:$0xff]
      %v224 = vld [vmem:[%s158 + $0x1c0] sm:$0xff]
      %v225 = vld [vmem:[%s158 + $0x1c8] sm:$0xff]
      %v226 = vld [vmem:[%s158 + $0x1d0] sm:$0xff]
      %v227 = vld [vmem:[%s158 + $0x1d8] sm:$0xff]
      %v228 = vld [vmem:[%s158 + $0x1e0] sm:$0xff]
      %v229 = vld [vmem:[%s158 + $0x1e8] sm:$0xff]
      %v230 = vld [vmem:[%s158 + $0x1f0] sm:$0xff]
      %v231 = vld [vmem:[%s158 + $0x1f8] sm:$0xff]
      %v232 = vld [vmem:[%s158 + $0x200] sm:$0xff]
      %v233 = vld [vmem:[%s158 + $0x208] sm:$0xff]
      %v234 = vld [vmem:[%s158 + $0x210] sm:$0xff]
      %v235 = vld [vmem:[%s158 + $0x218] sm:$0xff]
      %v236 = vld [vmem:[%s158 + $0x220] sm:$0xff]
      %v237 = vld [vmem:[%s158 + $0x228] sm:$0xff]
      %v238 = vld [vmem:[%s158 + $0x230] sm:$0xff]
      %v239 = vld [vmem:[%s158 + $0x238] sm:$0xff]
      %v240 = vld [vmem:[%s158 + $0x240] sm:$0xff]
      %v241 = vld [vmem:[%s158 + $0x248] sm:$0xff]
      %v242 = vld [vmem:[%s158 + $0x250] sm:$0xff]
      %v243 = vld [vmem:[%s158 + $0x258] sm:$0xff]
      %v244 = vld [vmem:[%s158 + $0x260] sm:$0xff]
      %v245 = vld [vmem:[%s158 + $0x268] sm:$0xff]
      %v246 = vld [vmem:[%s158 + $0x270] sm:$0xff]
      %v247 = vld [vmem:[%s158 + $0x278] sm:$0xff]
      %v248 = vld [vmem:[%s158 + $0x280] sm:$0xff]
      %v249 = vld [vmem:[%s158 + $0x288] sm:$0xff]
      %v250 = vld [vmem:[%s158 + $0x290] sm:$0xff]
      %v251 = vld [vmem:[%s158 + $0x298] sm:$0xff]
      %v252 = vld [vmem:[%s158 + $0x2a0] sm:$0xff]
      %v253 = vld [vmem:[%s158 + $0x2a8] sm:$0xff]
      %v254 = vld [vmem:[%s158 + $0x2b0] sm:$0xff]
      %v255 = vld [vmem:[%s158 + $0x2b8] sm:$0xff]
      %v256 = vld [vmem:[%s158 + $0x2c0] sm:$0xff]
      %v257 = vld [vmem:[%s158 + $0x2c8] sm:$0xff]
      %v258 = vld [vmem:[%s158 + $0x2d0] sm:$0xff]
      %v259 = vld [vmem:[%s158 + $0x2d8] sm:$0xff]
      %v260 = vld [vmem:[%s158 + $0x2e0] sm:$0xff]
      %v261 = vld [vmem:[%s158 + $0x2e8] sm:$0xff]
      %v262 = vld [vmem:[%s158 + $0x2f0] sm:$0xff]
      %v263 = vld [vmem:[%s158 + $0x2f8] sm:$0xff]
      %v264 = vld [vmem:[%s158 + $0x300] sm:$0xff]
      %v265 = vld [vmem:[%s158 + $0x308] sm:$0xff]
      %v266 = vld [vmem:[%s158 + $0x310] sm:$0xff]
      %v267 = vld [vmem:[%s158 + $0x318] sm:$0xff]
      %v268 = vld [vmem:[%s158 + $0x320] sm:$0xff]
      %v269 = vld [vmem:[%s158 + $0x328] sm:$0xff]
      %v270 = vld [vmem:[%s158 + $0x330] sm:$0xff]
      %v271 = vld [vmem:[%s158 + $0x338] sm:$0xff]
      %v272 = vld [vmem:[%s158 + $0x340] sm:$0xff]
      %v273 = vld [vmem:[%s158 + $0x348] sm:$0xff]
      %v274 = vld [vmem:[%s158 + $0x350] sm:$0xff]
      %v275 = vld [vmem:[%s158 + $0x358] sm:$0xff]
      %v276 = vld [vmem:[%s158 + $0x360] sm:$0xff]
      %v277 = vld [vmem:[%s158 + $0x368] sm:$0xff]
      %v278 = vld [vmem:[%s158 + $0x370] sm:$0xff]
      %v279 = vld [vmem:[%s158 + $0x378] sm:$0xff]
      %v280 = vld [vmem:[%s158 + $0x380] sm:$0xff]
      %v281 = vld [vmem:[%s158 + $0x388] sm:$0xff]
      %v282 = vld [vmem:[%s158 + $0x390] sm:$0xff]
      %v283 = vld [vmem:[%s158 + $0x398] sm:$0xff]
      %v284 = vld [vmem:[%s158 + $0x3a0] sm:$0xff]
      %v285 = vld [vmem:[%s158 + $0x3a8] sm:$0xff]
      %v286 = vld [vmem:[%s158 + $0x3b0] sm:$0xff]
      %v287 = vld [vmem:[%s158 + $0x3b8] sm:$0xff]
      %v288 = vld [vmem:[%s158 + $0x3c0] sm:$0xff]
      %v289 = vld [vmem:[%s158 + $0x3c8] sm:$0xff]
      %v290 = vld [vmem:[%s158 + $0x3d0] sm:$0xff]
      %v291 = vld [vmem:[%s158 + $0x3d8] sm:$0xff]
      %v292 = vld [vmem:[%s158 + $0x3e0] sm:$0xff]
      %v293 = vld [vmem:[%s158 + $0x3e8] sm:$0xff]
      %v294 = vld [vmem:[%s158 + $0x3f0] sm:$0xff]
      %v295 = vld [vmem:[%s158 + $0x3f8] sm:$0xff]
      %v300 = vunpack.c.l.b16 %v164
      %v301 = vunpack.c.h.b16 %v164
      %v302 = vunpack.c.l.b16 %v165
      %v303 = vunpack.c.h.b16 %v165
      %v304 = vunpack.c.l.b16 %v166
      %v305 = vunpack.c.h.b16 %v166
      %v306 = vunpack.c.l.b16 %v167
      %v307 = vunpack.c.h.b16 %v167
      %v308 = vpack.c.b16 %v304, %v300
      %v309 = vpack.c.b16 %v305, %v301
      %v310 = vpack.c.b16 %v306, %v302
      %v311 = vpack.c.b16 %v307, %v303
      %v444 = vunpack.c.l.b16 %v168
      %v445 = vunpack.c.h.b16 %v168
      %v446 = vunpack.c.l.b16 %v169
      %v447 = vunpack.c.h.b16 %v169
      %v448 = vunpack.c.l.b16 %v170
      %v449 = vunpack.c.h.b16 %v170
      %v450 = vunpack.c.l.b16 %v171
      %v451 = vunpack.c.h.b16 %v171
      %v452 = vunpack.c.l.b16 %v172
      %v453 = vunpack.c.h.b16 %v172
      %v454 = vunpack.c.l.b16 %v173
      %v455 = vunpack.c.h.b16 %v173
      %v456 = vunpack.c.l.b16 %v174
      %v457 = vunpack.c.h.b16 %v174
      %v458 = vunpack.c.l.b16 %v175
      %v459 = vunpack.c.h.b16 %v175
      %v460 = vunpack.c.l.b16 %v176
      %v461 = vunpack.c.h.b16 %v176
      %v462 = vunpack.c.l.b16 %v177
      %v463 = vunpack.c.h.b16 %v177
      %v464 = vunpack.c.l.b16 %v178
      %v465 = vunpack.c.h.b16 %v178
      %v466 = vunpack.c.l.b16 %v179
      %v467 = vunpack.c.h.b16 %v179
      %v468 = vunpack.c.l.b16 %v180
      %v469 = vunpack.c.h.b16 %v180
      %v470 = vunpack.c.l.b16 %v181
      %v471 = vunpack.c.h.b16 %v181
      %v472 = vunpack.c.l.b16 %v182
      %v473 = vunpack.c.h.b16 %v182
      %v474 = vunpack.c.l.b16 %v183
      %v475 = vunpack.c.h.b16 %v183
      %v476 = vunpack.c.l.b16 %v184
      %v477 = vunpack.c.h.b16 %v184
      %v478 = vunpack.c.l.b16 %v185
      %v479 = vunpack.c.h.b16 %v185
      %v480 = vunpack.c.l.b16 %v186
      %v481 = vunpack.c.h.b16 %v186
      %v482 = vunpack.c.l.b16 %v187
      %v483 = vunpack.c.h.b16 %v187
      %v484 = vunpack.c.l.b16 %v188
      %v485 = vunpack.c.h.b16 %v188
      %v486 = vunpack.c.l.b16 %v189
      %v487 = vunpack.c.h.b16 %v189
      %v488 = vunpack.c.l.b16 %v190
      %v489 = vunpack.c.h.b16 %v190
      %v490 = vunpack.c.l.b16 %v191
      %v491 = vunpack.c.h.b16 %v191
      %v492 = vunpack.c.l.b16 %v192
      %v493 = vunpack.c.h.b16 %v192
      %v494 = vunpack.c.l.b16 %v193
      %v495 = vunpack.c.h.b16 %v193
      %v496 = vunpack.c.l.b16 %v194
      %v497 = vunpack.c.h.b16 %v194
      %v498 = vunpack.c.l.b16 %v195
      %v499 = vunpack.c.h.b16 %v195
      %v500 = vunpack.c.l.b16 %v196
      %v501 = vunpack.c.h.b16 %v196
      %v502 = vunpack.c.l.b16 %v197
      %v503 = vunpack.c.h.b16 %v197
      %v504 = vunpack.c.l.b16 %v198
      %v505 = vunpack.c.h.b16 %v198
      %v506 = vunpack.c.l.b16 %v199
      %v507 = vunpack.c.h.b16 %v199
      %v508 = vunpack.c.l.b16 %v200
      %v509 = vunpack.c.h.b16 %v200
      %v510 = vunpack.c.l.b16 %v201
      %v511 = vunpack.c.h.b16 %v201
      %v512 = vunpack.c.l.b16 %v202
      %v513 = vunpack.c.h.b16 %v202
      %v514 = vunpack.c.l.b16 %v203
      %v515 = vunpack.c.h.b16 %v203
      %v516 = vunpack.c.l.b16 %v204
      %v517 = vunpack.c.h.b16 %v204
      %v518 = vunpack.c.l.b16 %v205
      %v519 = vunpack.c.h.b16 %v205
      %v520 = vunpack.c.l.b16 %v206
      %v521 = vunpack.c.h.b16 %v206
      %v522 = vunpack.c.l.b16 %v207
      %v523 = vunpack.c.h.b16 %v207
      %v524 = vunpack.c.l.b16 %v208
      %v525 = vunpack.c.h.b16 %v208
      %v526 = vunpack.c.l.b16 %v209
      %v527 = vunpack.c.h.b16 %v209
      %v528 = vunpack.c.l.b16 %v210
      %v529 = vunpack.c.h.b16 %v210
      %v530 = vunpack.c.l.b16 %v211
      %v531 = vunpack.c.h.b16 %v211
      %v532 = vunpack.c.l.b16 %v212
      %v533 = vunpack.c.h.b16 %v212
      %v534 = vunpack.c.l.b16 %v213
      %v535 = vunpack.c.h.b16 %v213
      %v536 = vunpack.c.l.b16 %v214
      %v537 = vunpack.c.h.b16 %v214
      %v538 = vunpack.c.l.b16 %v215
      %v539 = vunpack.c.h.b16 %v215
      %v540 = vunpack.c.l.b16 %v216
      %v541 = vunpack.c.h.b16 %v216
      %v542 = vunpack.c.l.b16 %v217
      %v543 = vunpack.c.h.b16 %v217
      %v544 = vunpack.c.l.b16 %v218
      %v545 = vunpack.c.h.b16 %v218
      %v546 = vunpack.c.l.b16 %v219
      %v547 = vunpack.c.h.b16 %v219
      %v548 = vunpack.c.l.b16 %v220
      %v549 = vunpack.c.h.b16 %v220
      %v550 = vunpack.c.l.b16 %v221
      %v551 = vunpack.c.h.b16 %v221
      %v552 = vunpack.c.l.b16 %v222
      %v553 = vunpack.c.h.b16 %v222
      %v554 = vunpack.c.l.b16 %v223
      %v555 = vunpack.c.h.b16 %v223
      %v556 = vunpack.c.l.b16 %v224
      %v557 = vunpack.c.h.b16 %v224
      %v558 = vunpack.c.l.b16 %v225
      %v559 = vunpack.c.h.b16 %v225
      %v560 = vunpack.c.l.b16 %v226
      %v561 = vunpack.c.h.b16 %v226
      %v562 = vunpack.c.l.b16 %v227
      %v563 = vunpack.c.h.b16 %v227
      %v564 = vunpack.c.l.b16 %v228
      %v565 = vunpack.c.h.b16 %v228
      %v566 = vunpack.c.l.b16 %v229
      %v567 = vunpack.c.h.b16 %v229
      %v568 = vunpack.c.l.b16 %v230
      %v569 = vunpack.c.h.b16 %v230
      %v570 = vunpack.c.l.b16 %v231
      %v571 = vunpack.c.h.b16 %v231
      %v572 = vunpack.c.l.b16 %v232
      %v573 = vunpack.c.h.b16 %v232
      %v574 = vunpack.c.l.b16 %v233
      %v575 = vunpack.c.h.b16 %v233
      %v576 = vunpack.c.l.b16 %v234
      %v577 = vunpack.c.h.b16 %v234
      %v578 = vunpack.c.l.b16 %v235
      %v579 = vunpack.c.h.b16 %v235
      %v580 = vunpack.c.l.b16 %v236
      %v581 = vunpack.c.h.b16 %v236
      %v582 = vunpack.c.l.b16 %v237
      %v583 = vunpack.c.h.b16 %v237
      %v584 = vunpack.c.l.b16 %v238
      %v585 = vunpack.c.h.b16 %v238
      %v586 = vunpack.c.l.b16 %v239
      %v587 = vunpack.c.h.b16 %v239
      %v588 = vunpack.c.l.b16 %v240
      %v589 = vunpack.c.h.b16 %v240
      %v590 = vunpack.c.l.b16 %v241
      %v591 = vunpack.c.h.b16 %v241
      %v592 = vunpack.c.l.b16 %v242
      %v593 = vunpack.c.h.b16 %v242
      %v594 = vunpack.c.l.b16 %v243
      %v595 = vunpack.c.h.b16 %v243
      %v596 = vunpack.c.l.b16 %v244
      %v597 = vunpack.c.h.b16 %v244
      %v598 = vunpack.c.l.b16 %v245
      %v599 = vunpack.c.h.b16 %v245
      %v600 = vunpack.c.l.b16 %v246
      %v601 = vunpack.c.h.b16 %v246
      %v602 = vunpack.c.l.b16 %v247
      %v603 = vunpack.c.h.b16 %v247
      %v604 = vunpack.c.l.b16 %v248
      %v605 = vunpack.c.h.b16 %v248
      %v606 = vunpack.c.l.b16 %v249
      %v607 = vunpack.c.h.b16 %v249
      %v608 = vunpack.c.l.b16 %v250
      %v609 = vunpack.c.h.b16 %v250
      %v610 = vunpack.c.l.b16 %v251
      %v611 = vunpack.c.h.b16 %v251
      %v612 = vunpack.c.l.b16 %v252
      %v613 = vunpack.c.h.b16 %v252
      %v614 = vunpack.c.l.b16 %v253
      %v615 = vunpack.c.h.b16 %v253
      %v616 = vunpack.c.l.b16 %v254
      %v617 = vunpack.c.h.b16 %v254
      %v618 = vunpack.c.l.b16 %v255
      %v619 = vunpack.c.h.b16 %v255
      %v620 = vunpack.c.l.b16 %v256
      %v621 = vunpack.c.h.b16 %v256
      %v622 = vunpack.c.l.b16 %v257
      %v623 = vunpack.c.h.b16 %v257
      %v624 = vunpack.c.l.b16 %v258
      %v625 = vunpack.c.h.b16 %v258
      %v626 = vunpack.c.l.b16 %v259
      %v627 = vunpack.c.h.b16 %v259
      %v628 = vunpack.c.l.b16 %v260
      %v629 = vunpack.c.h.b16 %v260
      %v630 = vunpack.c.l.b16 %v261
      %v631 = vunpack.c.h.b16 %v261
      %v632 = vunpack.c.l.b16 %v262
      %v633 = vunpack.c.h.b16 %v262
      %v634 = vunpack.c.l.b16 %v263
      %v635 = vunpack.c.h.b16 %v263
      %v636 = vunpack.c.l.b16 %v264
      %v637 = vunpack.c.h.b16 %v264
      %v638 = vunpack.c.l.b16 %v265
      %v639 = vunpack.c.h.b16 %v265
      %v640 = vunpack.c.l.b16 %v266
      %v641 = vunpack.c.h.b16 %v266
      %v642 = vunpack.c.l.b16 %v267
      %v643 = vunpack.c.h.b16 %v267
      %v644 = vunpack.c.l.b16 %v268
      %v645 = vunpack.c.h.b16 %v268
      %v646 = vunpack.c.l.b16 %v269
      %v647 = vunpack.c.h.b16 %v269
      %v648 = vunpack.c.l.b16 %v270
      %v649 = vunpack.c.h.b16 %v270
      %v650 = vunpack.c.l.b16 %v271
      %v651 = vunpack.c.h.b16 %v271
      %v652 = vunpack.c.l.b16 %v272
      %v653 = vunpack.c.h.b16 %v272
      %v654 = vunpack.c.l.b16 %v273
      %v655 = vunpack.c.h.b16 %v273
      %v656 = vunpack.c.l.b16 %v274
      %v657 = vunpack.c.h.b16 %v274
      %v658 = vunpack.c.l.b16 %v275
      %v659 = vunpack.c.h.b16 %v275
      %v660 = vunpack.c.l.b16 %v276
      %v661 = vunpack.c.h.b16 %v276
      %v662 = vunpack.c.l.b16 %v277
      %v663 = vunpack.c.h.b16 %v277
      %v664 = vunpack.c.l.b16 %v278
      %v665 = vunpack.c.h.b16 %v278
      %v666 = vunpack.c.l.b16 %v279
      %v667 = vunpack.c.h.b16 %v279
      %v668 = vunpack.c.l.b16 %v280
      %v669 = vunpack.c.h.b16 %v280
      %v670 = vunpack.c.l.b16 %v281
      %v671 = vunpack.c.h.b16 %v281
      %v672 = vunpack.c.l.b16 %v282
      %v673 = vunpack.c.h.b16 %v282
      %v674 = vunpack.c.l.b16 %v283
      %v675 = vunpack.c.h.b16 %v283
      %v676 = vunpack.c.l.b16 %v284
      %v677 = vunpack.c.h.b16 %v284
      %v678 = vunpack.c.l.b16 %v285
      %v679 = vunpack.c.h.b16 %v285
      %v680 = vunpack.c.l.b16 %v286
      %v681 = vunpack.c.h.b16 %v286
      %v682 = vunpack.c.l.b16 %v287
      %v683 = vunpack.c.h.b16 %v287
      %v684 = vunpack.c.l.b16 %v288
      %v685 = vunpack.c.h.b16 %v288
      %v686 = vunpack.c.l.b16 %v289
      %v687 = vunpack.c.h.b16 %v289
      %v688 = vunpack.c.l.b16 %v290
      %v689 = vunpack.c.h.b16 %v290
      %v690 = vunpack.c.l.b16 %v291
      %v691 = vunpack.c.h.b16 %v291
      %v692 = vunpack.c.l.b16 %v292
      %v693 = vunpack.c.h.b16 %v292
      %v694 = vunpack.c.l.b16 %v293
      %v695 = vunpack.c.h.b16 %v293
      %v696 = vunpack.c.l.b16 %v294
      %v697 = vunpack.c.h.b16 %v294
      %v698 = vunpack.c.l.b16 %v295
      %v699 = vunpack.c.h.b16 %v295
      %v700 = vpack.c.b16 %v448, %v444
      %v701 = vpack.c.b16 %v449, %v445
      %v702 = vpack.c.b16 %v450, %v446
      %v703 = vpack.c.b16 %v451, %v447
      %v704 = vpack.c.b16 %v456, %v452
      %v705 = vpack.c.b16 %v457, %v453
      %v706 = vpack.c.b16 %v458, %v454
      %v707 = vpack.c.b16 %v459, %v455
      %v708 = vpack.c.b16 %v464, %v460
      %v709 = vpack.c.b16 %v465, %v461
      %v710 = vpack.c.b16 %v466, %v462
      %v711 = vpack.c.b16 %v467, %v463
      %v712 = vpack.c.b16 %v472, %v468
      %v713 = vpack.c.b16 %v473, %v469
      %v714 = vpack.c.b16 %v474, %v470
      %v715 = vpack.c.b16 %v475, %v471
      %v716 = vpack.c.b16 %v480, %v476
      %v717 = vpack.c.b16 %v481, %v477
      %v718 = vpack.c.b16 %v482, %v478
      %v719 = vpack.c.b16 %v483, %v479
      %v720 = vpack.c.b16 %v488, %v484
      %v721 = vpack.c.b16 %v489, %v485
      %v722 = vpack.c.b16 %v490, %v486
      %v723 = vpack.c.b16 %v491, %v487
      %v724 = vpack.c.b16 %v496, %v492
      %v725 = vpack.c.b16 %v497, %v493
      %v726 = vpack.c.b16 %v498, %v494
      %v727 = vpack.c.b16 %v499, %v495
      %v728 = vpack.c.b16 %v504, %v500
      %v729 = vpack.c.b16 %v505, %v501
      %v730 = vpack.c.b16 %v506, %v502
      %v731 = vpack.c.b16 %v507, %v503
      %v732 = vpack.c.b16 %v512, %v508
      %v733 = vpack.c.b16 %v513, %v509
      %v734 = vpack.c.b16 %v514, %v510
      %v735 = vpack.c.b16 %v515, %v511
      %v736 = vpack.c.b16 %v520, %v516
      %v737 = vpack.c.b16 %v521, %v517
      %v738 = vpack.c.b16 %v522, %v518
      %v739 = vpack.c.b16 %v523, %v519
      %v740 = vpack.c.b16 %v528, %v524
      %v741 = vpack.c.b16 %v529, %v525
      %v742 = vpack.c.b16 %v530, %v526
      %v743 = vpack.c.b16 %v531, %v527
      %v744 = vpack.c.b16 %v536, %v532
      %v745 = vpack.c.b16 %v537, %v533
      %v746 = vpack.c.b16 %v538, %v534
      %v747 = vpack.c.b16 %v539, %v535
      %v748 = vpack.c.b16 %v544, %v540
      %v749 = vpack.c.b16 %v545, %v541
      %v750 = vpack.c.b16 %v546, %v542
      %v751 = vpack.c.b16 %v547, %v543
      %v752 = vpack.c.b16 %v552, %v548
      %v753 = vpack.c.b16 %v553, %v549
      %v754 = vpack.c.b16 %v554, %v550
      %v755 = vpack.c.b16 %v555, %v551
      %v756 = vpack.c.b16 %v560, %v556
      %v757 = vpack.c.b16 %v561, %v557
      %v758 = vpack.c.b16 %v562, %v558
      %v759 = vpack.c.b16 %v563, %v559
      %v760 = vpack.c.b16 %v568, %v564
      %v761 = vpack.c.b16 %v569, %v565
      %v762 = vpack.c.b16 %v570, %v566
      %v763 = vpack.c.b16 %v571, %v567
      %v764 = vpack.c.b16 %v576, %v572
      %v765 = vpack.c.b16 %v577, %v573
      %v766 = vpack.c.b16 %v578, %v574
      %v767 = vpack.c.b16 %v579, %v575
      %v768 = vpack.c.b16 %v584, %v580
      %v769 = vpack.c.b16 %v585, %v581
      %v770 = vpack.c.b16 %v586, %v582
      %v771 = vpack.c.b16 %v587, %v583
      %v772 = vpack.c.b16 %v592, %v588
      %v773 = vpack.c.b16 %v593, %v589
      %v774 = vpack.c.b16 %v594, %v590
      %v775 = vpack.c.b16 %v595, %v591
      %v776 = vpack.c.b16 %v600, %v596
      %v777 = vpack.c.b16 %v601, %v597
      %v778 = vpack.c.b16 %v602, %v598
      %v779 = vpack.c.b16 %v603, %v599
      %v780 = vpack.c.b16 %v608, %v604
      %v781 = vpack.c.b16 %v609, %v605
      %v782 = vpack.c.b16 %v610, %v606
      %v783 = vpack.c.b16 %v611, %v607
      %v784 = vpack.c.b16 %v616, %v612
      %v785 = vpack.c.b16 %v617, %v613
      %v786 = vpack.c.b16 %v618, %v614
      %v787 = vpack.c.b16 %v619, %v615
      %v788 = vpack.c.b16 %v624, %v620
      %v789 = vpack.c.b16 %v625, %v621
      %v790 = vpack.c.b16 %v626, %v622
      %v791 = vpack.c.b16 %v627, %v623
      %v792 = vpack.c.b16 %v632, %v628
      %v793 = vpack.c.b16 %v633, %v629
      %v794 = vpack.c.b16 %v634, %v630
      %v795 = vpack.c.b16 %v635, %v631
      %v796 = vpack.c.b16 %v640, %v636
      %v797 = vpack.c.b16 %v641, %v637
      %v798 = vpack.c.b16 %v642, %v638
      %v799 = vpack.c.b16 %v643, %v639
      %v800 = vpack.c.b16 %v648, %v644
      %v801 = vpack.c.b16 %v649, %v645
      %v802 = vpack.c.b16 %v650, %v646
      %v803 = vpack.c.b16 %v651, %v647
      %v804 = vpack.c.b16 %v656, %v652
      %v805 = vpack.c.b16 %v657, %v653
      %v806 = vpack.c.b16 %v658, %v654
      %v807 = vpack.c.b16 %v659, %v655
      %v808 = vpack.c.b16 %v664, %v660
      %v809 = vpack.c.b16 %v665, %v661
      %v810 = vpack.c.b16 %v666, %v662
      %v811 = vpack.c.b16 %v667, %v663
      %v812 = vpack.c.b16 %v672, %v668
      %v813 = vpack.c.b16 %v673, %v669
      %v814 = vpack.c.b16 %v674, %v670
      %v815 = vpack.c.b16 %v675, %v671
      %v816 = vpack.c.b16 %v680, %v676
      %v817 = vpack.c.b16 %v681, %v677
      %v818 = vpack.c.b16 %v682, %v678
      %v819 = vpack.c.b16 %v683, %v679
      %v820 = vpack.c.b16 %v688, %v684
      %v821 = vpack.c.b16 %v689, %v685
      %v822 = vpack.c.b16 %v690, %v686
      %v823 = vpack.c.b16 %v691, %v687
      %v824 = vpack.c.b16 %v696, %v692
      %v825 = vpack.c.b16 %v697, %v693
      %v826 = vpack.c.b16 %v698, %v694
      %v827 = vpack.c.b16 %v699, %v695
      %956 = vmatprep.subr.bf16.mxu0 %v701
      %957 = vmatpush1.bf16.msra.mxu0 %v700
      %958 = vmatprep.subr.bf16.mxu0 %v705
      %959 = vmatpush1.bf16.msra.mxu0 %v704
      %960 = vmatprep.subr.bf16.mxu0 %v709
      %961 = vmatpush1.bf16.msra.mxu0 %v708
      %962 = vmatprep.subr.bf16.mxu0 %v713
      %963 = vmatpush1.bf16.msra.mxu0 %v712
      %964 = vmatprep.subr.bf16.mxu0 %v717
      %965 = vmatpush1.bf16.msra.mxu0 %v716
      %966 = vmatprep.subr.bf16.mxu0 %v721
      %967 = vmatpush1.bf16.msra.mxu0 %v720
      %968 = vmatprep.subr.bf16.mxu0 %v725
      %969 = vmatpush1.bf16.msra.mxu0 %v724
      %970 = vmatprep.subr.bf16.mxu0 %v729
      %971 = vmatpush1.bf16.msra.mxu0 %v728
      %972 = vmatprep.subr.bf16.mxu0 %v733
      %973 = vmatpush1.bf16.msra.mxu0 %v732
      %974 = vmatprep.subr.bf16.mxu0 %v737
      %975 = vmatpush1.bf16.msra.mxu0 %v736
      %976 = vmatprep.subr.bf16.mxu0 %v741
      %977 = vmatpush1.bf16.msra.mxu0 %v740
      %978 = vmatprep.subr.bf16.mxu0 %v745
      %979 = vmatpush1.bf16.msra.mxu0 %v744
      %980 = vmatprep.subr.bf16.mxu0 %v749
      %981 = vmatpush1.bf16.msra.mxu0 %v748
      %982 = vmatprep.subr.bf16.mxu0 %v753
      %983 = vmatpush1.bf16.msra.mxu0 %v752
      %984 = vmatprep.subr.bf16.mxu0 %v757
      %985 = vmatpush1.bf16.msra.mxu0 %v756
      %986 = vmatprep.subr.bf16.mxu0 %v761
      %987 = vmatpush1.bf16.msra.mxu0 %v760
      %988 = vmatprep.mubr.bf16.mxu0 %v309
      %989 = vmatmul.mubr.bf16.gmra.mrb[0].mxu0 %v308
      %v990 = vpop.f32.mrb[0].mxu0
      %v991 = vadd.f32 0.0, %v990
      %v992 = vpop.f32.mrb[0].mxu0
      %v993 = vadd.f32 0.0, %v992
      %v994 = vpop.f32.mrb[0].mxu0
      %v995 = vadd.f32 0.0, %v994
      %v996 = vpop.f32.mrb[0].mxu0
      %v997 = vadd.f32 0.0, %v996
      %998 = vdwg.mxu0
      %999 = vmatprep.subr.bf16.mxu0 %v765
      %1000 = vmatpush1.bf16.msra.mxu0 %v764
      %1001 = vmatprep.subr.bf16.mxu0 %v769
      %1002 = vmatpush1.bf16.msra.mxu0 %v768
      %1003 = vmatprep.subr.bf16.mxu0 %v773
      %1004 = vmatpush1.bf16.msra.mxu0 %v772
      %1005 = vmatprep.subr.bf16.mxu0 %v777
      %1006 = vmatpush1.bf16.msra.mxu0 %v776
      %1007 = vmatprep.subr.bf16.mxu0 %v781
      %1008 = vmatpush1.bf16.msra.mxu0 %v780
      %1009 = vmatprep.subr.bf16.mxu0 %v785
      %1010 = vmatpush1.bf16.msra.mxu0 %v784
      %1011 = vmatprep.subr.bf16.mxu0 %v789
      %1012 = vmatpush1.bf16.msra.mxu0 %v788
      %1013 = vmatprep.subr.bf16.mxu0 %v793
      %1014 = vmatpush1.bf16.msra.mxu0 %v792
      %1015 = vmatprep.subr.bf16.mxu0 %v797
      %1016 = vmatpush1.bf16.msra.mxu0 %v796
      %1017 = vmatprep.subr.bf16.mxu0 %v801
      %1018 = vmatpush1.bf16.msra.mxu0 %v800
      %1019 = vmatprep.subr.bf16.mxu0 %v805
      %1020 = vmatpush1.bf16.msra.mxu0 %v804
      %1021 = vmatprep.subr.bf16.mxu0 %v809
      %1022 = vmatpush1.bf16.msra.mxu0 %v808
      %1023 = vmatprep.subr.bf16.mxu0 %v813
      %1024 = vmatpush1.bf16.msra.mxu0 %v812
      %1025 = vmatprep.subr.bf16.mxu0 %v817
      %1026 = vmatpush1.bf16.msra.mxu0 %v816
      %1027 = vmatprep.subr.bf16.mxu0 %v821
      %1028 = vmatpush1.bf16.msra.mxu0 %v820
      %1029 = vmatprep.subr.bf16.mxu0 %v825
      %1030 = vmatpush1.bf16.msra.mxu0 %v824
      %1031 = vmatprep.mubr.bf16.mxu0 %v311
      %1032 = vmatmul.mubr.bf16.gmra.mrb[0].mxu0 %v310
      %v1033 = vpop.f32.mrb[0].mxu0
      %v1034 = vadd.f32 %v991, %v1033
      %v1035 = vpop.f32.mrb[0].mxu0
      %v1036 = vadd.f32 %v993, %v1035
      %v1037 = vpop.f32.mrb[0].mxu0
      %v1038 = vadd.f32 %v995, %v1037
      %v1039 = vpop.f32.mrb[0].mxu0
      %v1040 = vadd.f32 %v997, %v1039
      %1041 = vdwg.mxu0
      %1042 = vmatprep.subr.bf16.mxu0 %v703
      %1043 = vmatpush1.bf16.msra.mxu0 %v702
      %1044 = vmatprep.subr.bf16.mxu0 %v707
      %1045 = vmatpush1.bf16.msra.mxu0 %v706
      %1046 = vmatprep.subr.bf16.mxu0 %v711
      %1047 = vmatpush1.bf16.msra.mxu0 %v710
      %1048 = vmatprep.subr.bf16.mxu0 %v715
      %1049 = vmatpush1.bf16.msra.mxu0 %v714
      %1050 = vmatprep.subr.bf16.mxu0 %v719
      %1051 = vmatpush1.bf16.msra.mxu0 %v718
      %1052 = vmatprep.subr.bf16.mxu0 %v723
      %1053 = vmatpush1.bf16.msra.mxu0 %v722
      %1054 = vmatprep.subr.bf16.mxu0 %v727
      %1055 = vmatpush1.bf16.msra.mxu0 %v726
      %1056 = vmatprep.subr.bf16.mxu0 %v731
      %1057 = vmatpush1.bf16.msra.mxu0 %v730
      %1058 = vmatprep.subr.bf16.mxu0 %v735
      %1059 = vmatpush1.bf16.msra.mxu0 %v734
      %1060 = vmatprep.subr.bf16.mxu0 %v739
      %1061 = vmatpush1.bf16.msra.mxu0 %v738
      %1062 = vmatprep.subr.bf16.mxu0 %v743
      %1063 = vmatpush1.bf16.msra.mxu0 %v742
      %1064 = vmatprep.subr.bf16.mxu0 %v747
      %1065 = vmatpush1.bf16.msra.mxu0 %v746
      %1066 = vmatprep.subr.bf16.mxu0 %v751
      %1067 = vmatpush1.bf16.msra.mxu0 %v750
      %1068 = vmatprep.subr.bf16.mxu0 %v755
      %1069 = vmatpush1.bf16.msra.mxu0 %v754
      %1070 = vmatprep.subr.bf16.mxu0 %v759
      %1071 = vmatpush1.bf16.msra.mxu0 %v758
      %1072 = vmatprep.subr.bf16.mxu0 %v763
      %1073 = vmatpush1.bf16.msra.mxu0 %v762
      %1074 = vmatprep.mubr.bf16.mxu0 %v309
      %1075 = vmatmul.mubr.bf16.gmra.mrb[0].mxu0 %v308
      %v1076 = vpop.f32.mrb[0].mxu0
      %v1077 = vadd.f32 0.0, %v1076
      %v1078 = vpop.f32.mrb[0].mxu0
      %v1079 = vadd.f32 0.0, %v1078
      %v1080 = vpop.f32.mrb[0].mxu0
      %v1081 = vadd.f32 0.0, %v1080
      %v1082 = vpop.f32.mrb[0].mxu0
      %v1083 = vadd.f32 0.0, %v1082
      %1084 = vdwg.mxu0
      %1085 = vmatprep.subr.bf16.mxu0 %v767
      %1086 = vmatpush1.bf16.msra.mxu0 %v766
      %1087 = vmatprep.subr.bf16.mxu0 %v771
      %1088 = vmatpush1.bf16.msra.mxu0 %v770
      %1089 = vmatprep.subr.bf16.mxu0 %v775
      %1090 = vmatpush1.bf16.msra.mxu0 %v774
      %1091 = vmatprep.subr.bf16.mxu0 %v779
      %1092 = vmatpush1.bf16.msra.mxu0 %v778
      %1093 = vmatprep.subr.bf16.mxu0 %v783
      %1094 = vmatpush1.bf16.msra.mxu0 %v782
      %1095 = vmatprep.subr.bf16.mxu0 %v787
      %1096 = vmatpush1.bf16.msra.mxu0 %v786
      %1097 = vmatprep.subr.bf16.mxu0 %v791
      %1098 = vmatpush1.bf16.msra.mxu0 %v790
      %1099 = vmatprep.subr.bf16.mxu0 %v795
      %1100 = vmatpush1.bf16.msra.mxu0 %v794
      %1101 = vmatprep.subr.bf16.mxu0 %v799
      %1102 = vmatpush1.bf16.msra.mxu0 %v798
      %1103 = vmatprep.subr.bf16.mxu0 %v803
      %1104 = vmatpush1.bf16.msra.mxu0 %v802
      %1105 = vmatprep.subr.bf16.mxu0 %v807
      %1106 = vmatpush1.bf16.msra.mxu0 %v806
      %1107 = vmatprep.subr.bf16.mxu0 %v811
      %1108 = vmatpush1.bf16.msra.mxu0 %v810
      %1109 = vmatprep.subr.bf16.mxu0 %v815
      %1110 = vmatpush1.bf16.msra.mxu0 %v814
      %1111 = vmatprep.subr.bf16.mxu0 %v819
      %1112 = vmatpush1.bf16.msra.mxu0 %v818
      %1113 = vmatprep.subr.bf16.mxu0 %v823
      %1114 = vmatpush1.bf16.msra.mxu0 %v822
      %1115 = vmatprep.subr.bf16.mxu0 %v827
      %1116 = vmatpush1.bf16.msra.mxu0 %v826
      %1117 = vmatprep.mubr.bf16.mxu0 %v311
      %1118 = vmatmul.mubr.bf16.gmra.mrb[0].mxu0 %v310
      %v1119 = vpop.f32.mrb[0].mxu0
      %v1120 = vadd.f32 %v1077, %v1119
      %v1121 = vpop.f32.mrb[0].mxu0
      %v1122 = vadd.f32 %v1079, %v1121
      %v1123 = vpop.f32.mrb[0].mxu0
      %v1124 = vadd.f32 %v1081, %v1123
      %v1125 = vpop.f32.mrb[0].mxu0
      %v1126 = vadd.f32 %v1083, %v1125
      %1127 = vdwg.mxu0
      %1128 = vst [vmem:[%s163] sm:$0xff] %v1034
      %1129 = vst [vmem:[%s163 + $0x8] sm:$0xff] %v1036
      %1130 = vst [vmem:[%s163 + $0x10] sm:$0xff] %v1120
      %1131 = vst [vmem:[%s163 + $0x18] sm:$0xff] %v1122
      %1132 = vst [vmem:[%s163 + $0x20] sm:$0xff] %v1038
      %1133 = vst [vmem:[%s163 + $0x28] sm:$0xff] %v1040
      %1134 = vst [vmem:[%s163 + $0x30] sm:$0xff] %v1124
      %1135 = vst [vmem:[%s163 + $0x38] sm:$0xff] %v1126
      %p1136 = scmp.lt.s32.totalorder %s13, 3
      %s1137 = scalar_select %p1136, %s13, 3
      %s1138 = smul.addr %s1137, 8
      %s1139 = smul.addr %s1138, 8
      %s1140 = scalar_lea.vmem %s2, %s1139
      // Predicated region
      $region29: #{_lambda_.19} parent=27 // pred_check
        %p1141 = pneg %p83
      $region30: #{_lambda_.19} parent=27 // pred_check_branch
        %1143 = sbr.rel (%p1141) target = $region32
      $region31: #{_lambda_.19} parent=27 // pred_region
        _
      $region32: #{_lambda_.19} parent=27 // pred_fallthru
        _
    $region28: #{_lambda_.19} parent=5 // pred_fallthru
      _
    %p1144 = scmp.le.s32.totalorder 2, %s8
    // Predicated region
    $region33: #{_lambda_.19} parent=5 // pred_check
      %p1145 = pneg %p1144
    $region34: #{_lambda_.19} parent=5 // pred_check_branch
      %1147 = sbr.rel (%p1145) target = $region36
    $region35: #{_lambda_.19} parent=5 // pred_region
      %s1148 = ssub.s32 %s8, 2
      // Predicated region
      $region37: #{_lambda_.19} parent=35 // pred_check
        %p1149 = pneg %p89
      $region38: #{_lambda_.19} parent=35 // pred_check_branch
        %1151 = sbr.rel (%p1149) target = $region40
      $region39: #{_lambda_.19} parent=35 // pred_region
        %p1152 = scmp.lt.s32.totalorder %s14, 3
        %s1153 = scalar_select %p1152, %s14, 3
        %s1154 = smul.addr %s1153, 8
        %s1155 = smul.addr %s1154, 8
        %s1156 = scalar_lea.vmem %s2, %s1155
      $region40: #{_lambda_.19} parent=35 // pred_fallthru
        _
    $region36: #{_lambda_.19} parent=5 // pred_fallthru
      _
  $region6: #{_lambda_.19} parent=0 // loop_footer
    %s12 = sadd.s32 1, %s8
  $region7: #{_lambda_.19} parent=0 // loop_footer_branch
    %7 = sbr.rel target = $region3
  $region8: #{_lambda_.19} parent=0 // loop_exit
    _

// kernel: _lambda_.21
$region0: #{_lambda_.21}
  #allocation0 [shape = 'u32[]', space=smem, size = 0x4, offset = 0x4, fixed_abs, tag = 'smem constant byte address 0x4 - core index']
  #allocation1 [shape = 'u32[144,128]{1,0:T(1,128)}', space=vmem, size = 0x12000, scoped, tag = 'internal scratch']
  %s0 = inlined_call_operand.vmem [shape: bf16[2,8,256], index: 0, kind: input, shape index: {}]
  %s1 = inlined_call_operand.vmem [shape: bf16[2,256,384], index: 1, kind: input, shape index: {}]
  %s2 = inlined_call_operand.vmem [shape: f32[2,8,384], index: 2, kind: output, shape index: {}]
  %s3 = sld [smem:[#allocation0]]
  $region41: #{_lambda_.21} parent=0
    _
  %s5 = ssub.s32 1, %s3
  %s6 = scalar_select 0, %s5, %s3
  loop: start=0, step=1, limit=4
  $region2: #{_lambda_.21} parent=0 // loop_pre_header
    _
  $region3: #{_lambda_.21} parent=0 // loop_header
    %s8 = sphi 0, %s12
    %p9 = scmp.ge.s32.totalorder %s8, 4
    %s18 = sphi 0, %s20
    %s21 = sphi 0, %s18
    %s22 = sphi 0, %s21
    %s38 = sphi 0, %s22
    %s44 = sphi 0, %s46
    %s47 = sphi 0, %s44
    %s48 = sphi 0, %s47
    %s64 = sphi 0, %s48
    %s70 = sphi 0, %s72
    %s73 = sphi 0, %s70
    %s74 = sphi 0, %s73
    %s90 = sphi 0, %s74
  $region4: #{_lambda_.21} parent=0 // loop_header_branch
    %11 = sbr.rel (%p9) target = $region8
  $region5: #{_lambda_.21} parent=0 // loop_body
    %s13 = ssub.s32 %s8, 1
    %s14 = ssub.s32 %s8, 2
    %s15 = sadd.s32 %s8, 1
    %s16 = ssub.s32 %s8, %s15
    %p17 = scmp.eq.s32.totalorder %s16, 0
    %s19 = sadd.s32 %s18, 1
    %s20 = scalar_select %p17, %s18, %s19
    %p23 = pneg %p17
    %p24 = scmp.eq.s32.totalorder %s8, 1
    %p25 = por %p23, %p24
    %p26 = scmp.ne.s32.totalorder %s18, %s21
    %p27 = scmp.eq.s32.totalorder %s8, 0
    %p28 = por %p26, %p27
    %p29 = scmp.ne.s32.totalorder %s18, %s21
    %p30 = scmp.eq.s32.totalorder %s13, 1
    %p31 = por %p29, %p30
    %p32 = scmp.ne.s32.totalorder %s21, %s22
    %p33 = scmp.eq.s32.totalorder %s13, 0
    %p34 = por %p32, %p33
    %p35 = scmp.ne.s32.totalorder %s21, %s22
    %p36 = scmp.eq.s32.totalorder %s14, 1
    %p37 = por %p35, %p36
    %p39 = scmp.ne.s32.totalorder %s22, %s38
    %p40 = scmp.eq.s32.totalorder %s14, 0
    %p41 = por %p39, %p40
    %s42 = ssub.s32 %s8, %s15
    %p43 = scmp.eq.s32.totalorder %s42, 0
    %s45 = sadd.s32 %s44, 1
    %s46 = scalar_select %p43, %s44, %s45
    %p49 = pneg %p43
    %p50 = scmp.eq.s32.totalorder %s8, 1
    %p51 = por %p49, %p50
    %p52 = scmp.ne.s32.totalorder %s44, %s47
    %p53 = scmp.eq.s32.totalorder %s8, 0
    %p54 = por %p52, %p53
    %p55 = scmp.ne.s32.totalorder %s44, %s47
    %p56 = scmp.eq.s32.totalorder %s13, 1
    %p57 = por %p55, %p56
    %p58 = scmp.ne.s32.totalorder %s47, %s48
    %p59 = scmp.eq.s32.totalorder %s13, 0
    %p60 = por %p58, %p59
    %p61 = scmp.ne.s32.totalorder %s47, %s48
    %p62 = scmp.eq.s32.totalorder %s14, 1
    %p63 = por %p61, %p62
    %p65 = scmp.ne.s32.totalorder %s48, %s64
    %p66 = scmp.eq.s32.totalorder %s14, 0
    %p67 = por %p65, %p66
    %s68 = ssub.s32 %s8, %s15
    %p69 = scmp.eq.s32.totalorder %s68, 0
    %s71 = sadd.s32 %s70, 1
    %s72 = scalar_select %p69, %s70, %s71
    %p75 = pneg %p69
    %p76 = scmp.eq.s32.totalorder %s8, 1
    %p77 = por %p75, %p76
    %p78 = scmp.ne.s32.totalorder %s70, %s73
    %p79 = scmp.eq.s32.totalorder %s8, 0
    %p80 = por %p78, %p79
    %p81 = scmp.ne.s32.totalorder %s70, %s73
    %p82 = scmp.eq.s32.totalorder %s13, 1
    %p83 = por %p81, %p82
    %p84 = scmp.ne.s32.totalorder %s73, %s74
    %p85 = scmp.eq.s32.totalorder %s13, 0
    %p86 = por %p84, %p85
    %p87 = scmp.ne.s32.totalorder %s73, %s74
    %p88 = scmp.eq.s32.totalorder %s14, 1
    %p89 = por %p87, %p88
    %p91 = scmp.ne.s32.totalorder %s74, %s90
    %p92 = scmp.eq.s32.totalorder %s14, 0
    %p93 = por %p91, %p92
    %p94 = scmp.le.s32.totalorder 1, %s8
    %p95 = scmp.lt.s32.totalorder %s8, 3
    %p96 = pnand %p94, %p95
    %p97 = pneg %p96
    // Predicated region
    $region9: #{_lambda_.21} parent=5 // pred_check
      _
    $region10: #{_lambda_.21} parent=5 // pred_check_branch
      %99 = sbr.rel (%p96) target = $region12
    $region11: #{_lambda_.21} parent=5 // pred_region
      %s100 = ssub.s32 %s8, 1
    $region12: #{_lambda_.21} parent=5 // pred_fallthru
      _
    %p101 = scmp.lt.s32.totalorder %s8, 2
    // Predicated region
    $region13: #{_lambda_.21} parent=5 // pred_check
      %p102 = pneg %p101
    $region14: #{_lambda_.21} parent=5 // pred_check_branch
      %104 = sbr.rel (%p102) target = $region16
    $region15: #{_lambda_.21} parent=5 // pred_region
      // Predicated region
      $region17: #{_lambda_.21} parent=15 // pred_check
        %p105 = pneg %p28
      $region18: #{_lambda_.21} parent=15 // pred_check_branch
        %107 = sbr.rel (%p105) target = $region20
      $region19: #{_lambda_.21} parent=15 // pred_region
        %p108 = scmp.lt.s32.totalorder %s8, 1
        %s109 = scalar_select %p108, %s8, 1
        %s110 = smul.addr %s109, 2
        %s111 = smul.addr %s110, 4
        %s112 = scalar_lea.vmem %s0, %s111
      $region20: #{_lambda_.21} parent=15 // pred_fallthru
        _
      // Predicated region
      $region21: #{_lambda_.21} parent=15 // pred_check
        %p113 = pneg %p54
      $region22: #{_lambda_.21} parent=15 // pred_check_branch
        %115 = sbr.rel (%p113) target = $region24
      $region23: #{_lambda_.21} parent=15 // pred_region
        %p116 = scmp.lt.s32.totalorder %s8, 1
        %s117 = scalar_select %p116, %s8, 1
        %s118 = smul.addr %s117, 96
        %s119 = smul.addr %s118, 4
        %s120 = scalar_lea.vmem %s1, %s119
      $region24: #{_lambda_.21} parent=15 // pred_fallthru
        _
    $region16: #{_lambda_.21} parent=5 // pred_fallthru
      _
    %p121 = scmp.le.s32.totalorder 1, %s8
    %p122 = scmp.lt.s32.totalorder %s8, 3
    %p123 = pnand %p121, %p122
    %p124 = pneg %p123
    // Predicated region
    $region25: #{_lambda_.21} parent=5 // pred_check
      _
    $region26: #{_lambda_.21} parent=5 // pred_check_branch
      %126 = sbr.rel (%p123) target = $region28
    $region27: #{_lambda_.21} parent=5 // pred_region
      %s127 = ssub.s32 %s8, 1
      %p128 = scmp.lt.s32.totalorder %s13, 1
      %s129 = scalar_select %p128, %s13, 1
      %s130 = smul.addr %s129, 2
      %s131 = smul.addr %s130, 4
      %s132 = scalar_lea.vmem %s0, %s131
      %p133 = pneg %p34
      %p134 = pneg %p31
      %p135 = scmp.lt.s32.totalorder %s13, 1
      %s136 = scalar_select %p135, %s13, 1
      %s137 = smul.addr %s136, 96
      %s138 = smul.addr %s137, 4
      %s139 = scalar_lea.vmem %s1, %s138
      %p140 = pneg %p60
      %p141 = pneg %p57
      %p142 = pneg %p86
      %p143 = pneg %p83
      %p144 = scmp.lt.s32.totalorder %s13, 1
      %s145 = scalar_select %p144, %s13, 1
      %s146 = smul.addr %s145, 3
      %s147 = smul.addr %s146, 8
      %s148 = scalar_lea.vmem %s2, %s147
      %p149 = scmp.lt.s32.totalorder %s13, 1
      %s150 = scalar_select %p149, %s13, 1
      %s151 = smul.addr %s150, 2
      %s152 = smul.addr %s151, 4
      %s153 = scalar_lea.vmem %s0, %s152
      %p154 = scmp.lt.s32.totalorder %s13, 1
      %s155 = scalar_select %p154, %s13, 1
      %s156 = smul.addr %s155, 96
      %s157 = smul.addr %s156, 4
      %s158 = scalar_lea.vmem %s1, %s157
      %p159 = scmp.lt.s32.totalorder %s13, 1
      %s160 = scalar_select %p159, %s13, 1
      %s161 = smul.addr %s160, 3
      %s162 = smul.addr %s161, 8
      %s163 = scalar_lea.vmem %s2, %s162
      %v165 = vld [vmem:[%s153] sm:$0xff]
      %v166 = vld [vmem:[%s158] sm:$0xff]
      %v167 = vld [vmem:[%s158 + $0x8] sm:$0xf]
      %v168 = vld [vmem:[%s158 + $0xc] sm:$0xff]
      %v169 = vld [vmem:[%s158 + $0x14] sm:$0xf]
      %v170 = vld [vmem:[%s158 + $0x18] sm:$0xff]
      %v171 = vld [vmem:[%s158 + $0x20] sm:$0xf]
      %v172 = vld [vmem:[%s158 + $0x24] sm:$0xff]
      %v173 = vld [vmem:[%s158 + $0x2c] sm:$0xf]
      %v174 = vld [vmem:[%s158 + $0x30] sm:$0xff]
      %v175 = vld [vmem:[%s158 + $0x38] sm:$0xf]
      %v176 = vld [vmem:[%s158 + $0x3c] sm:$0xff]
      %v177 = vld [vmem:[%s158 + $0x44] sm:$0xf]
      %v178 = vld [vmem:[%s158 + $0x48] sm:$0xff]
      %v179 = vld [vmem:[%s158 + $0x50] sm:$0xf]
      %v180 = vld [vmem:[%s158 + $0x54] sm:$0xff]
      %v181 = vld [vmem:[%s158 + $0x5c] sm:$0xf]
      %v182 = vld [vmem:[%s158 + $0x60] sm:$0xff]
      %v183 = vld [vmem:[%s158 + $0x68] sm:$0xf]
      %v184 = vld [vmem:[%s158 + $0x6c] sm:$0xff]
      %v185 = vld [vmem:[%s158 + $0x74] sm:$0xf]
      %v186 = vld [vmem:[%s158 + $0x78] sm:$0xff]
      %v187 = vld [vmem:[%s158 + $0x80] sm:$0xf]
      %v188 = vld [vmem:[%s158 + $0x84] sm:$0xff]
      %v189 = vld [vmem:[%s158 + $0x8c] sm:$0xf]
      %v190 = vld [vmem:[%s158 + $0x90] sm:$0xff]
      %v191 = vld [vmem:[%s158 + $0x98] sm:$0xf]
      %v192 = vld [vmem:[%s158 + $0x9c] sm:$0xff]
      %v193 = vld [vmem:[%s158 + $0xa4] sm:$0xf]
      %v194 = vld [vmem:[%s158 + $0xa8] sm:$0xff]
      %v195 = vld [vmem:[%s158 + $0xb0] sm:$0xf]
      %v196 = vld [vmem:[%s158 + $0xb4] sm:$0xff]
      %v197 = vld [vmem:[%s158 + $0xbc] sm:$0xf]
      %v198 = vld [vmem:[%s158 + $0xc0] sm:$0xff]
      %v199 = vld [vmem:[%s158 + $0xc8] sm:$0xf]
      %v200 = vld [vmem:[%s158 + $0xcc] sm:$0xff]
      %v201 = vld [vmem:[%s158 + $0xd4] sm:$0xf]
      %v202 = vld [vmem:[%s158 + $0xd8] sm:$0xff]
      %v203 = vld [vmem:[%s158 + $0xe0] sm:$0xf]
      %v204 = vld [vmem:[%s158 + $0xe4] sm:$0xff]
      %v205 = vld [vmem:[%s158 + $0xec] sm:$0xf]
      %v206 = vld [vmem:[%s158 + $0xf0] sm:$0xff]
      %v207 = vld [vmem:[%s158 + $0xf8] sm:$0xf]
      %v208 = vld [vmem:[%s158 + $0xfc] sm:$0xff]
      %v209 = vld [vmem:[%s158 + $0x104] sm:$0xf]
      %v210 = vld [vmem:[%s158 + $0x108] sm:$0xff]
      %v211 = vld [vmem:[%s158 + $0x110] sm:$0xf]
      %v212 = vld [vmem:[%s158 + $0x114] sm:$0xff]
      %v213 = vld [vmem:[%s158 + $0x11c] sm:$0xf]
      %v214 = vld [vmem:[%s158 + $0x120] sm:$0xff]
      %v215 = vld [vmem:[%s158 + $0x128] sm:$0xf]
      %v216 = vld [vmem:[%s158 + $0x12c] sm:$0xff]
      %v217 = vld [vmem:[%s158 + $0x134] sm:$0xf]
      %v218 = vld [vmem:[%s158 + $0x138] sm:$0xff]
      %v219 = vld [vmem:[%s158 + $0x140] sm:$0xf]
      %v220 = vld [vmem:[%s158 + $0x144] sm:$0xff]
      %v221 = vld [vmem:[%s158 + $0x14c] sm:$0xf]
      %v222 = vld [vmem:[%s158 + $0x150] sm:$0xff]
      %v223 = vld [vmem:[%s158 + $0x158] sm:$0xf]
      %v224 = vld [vmem:[%s158 + $0x15c] sm:$0xff]
      %v225 = vld [vmem:[%s158 + $0x164] sm:$0xf]
      %v226 = vld [vmem:[%s158 + $0x168] sm:$0xff]
      %v227 = vld [vmem:[%s158 + $0x170] sm:$0xf]
      %v228 = vld [vmem:[%s158 + $0x174] sm:$0xff]
      %v229 = vld [vmem:[%s158 + $0x17c] sm:$0xf]
      %v231 = vunpack.c.l.b16 %v165
      %v232 = vunpack.c.h.b16 %v165
      %v233 = vpack.c.b16 %v231, %v231
      %v234 = vpack.c.b16 %v232, %v232
      %v301 = vunpack.c.l.b16 %v166
      %v302 = vunpack.c.h.b16 %v166
      %v303 = vunpack.c.l.b16 %v167
      %v304 = vunpack.c.l.b16 %v168
      %v305 = vunpack.c.h.b16 %v168
      %v306 = vunpack.c.l.b16 %v169
      %v307 = vunpack.c.l.b16 %v170
      %v308 = vunpack.c.h.b16 %v170
      %v309 = vunpack.c.l.b16 %v171
      %v310 = vunpack.c.l.b16 %v172
      %v311 = vunpack.c.h.b16 %v172
      %v312 = vunpack.c.l.b16 %v173
      %v313 = vunpack.c.l.b16 %v174
      %v314 = vunpack.c.h.b16 %v174
      %v315 = vunpack.c.l.b16 %v175
      %v316 = vunpack.c.l.b16 %v176
      %v317 = vunpack.c.h.b16 %v176
      %v318 = vunpack.c.l.b16 %v177
      %v319 = vunpack.c.l.b16 %v178
      %v320 = vunpack.c.h.b16 %v178
      %v321 = vunpack.c.l.b16 %v179
      %v322 = vunpack.c.l.b16 %v180
      %v323 = vunpack.c.h.b16 %v180
      %v324 = vunpack.c.l.b16 %v181
      %v325 = vunpack.c.l.b16 %v182
      %v326 = vunpack.c.h.b16 %v182
      %v327 = vunpack.c.l.b16 %v183
      %v328 = vunpack.c.l.b16 %v184
      %v329 = vunpack.c.h.b16 %v184
      %v330 = vunpack.c.l.b16 %v185
      %v331 = vunpack.c.l.b16 %v186
      %v332 = vunpack.c.h.b16 %v186
      %v333 = vunpack.c.l.b16 %v187
      %v334 = vunpack.c.l.b16 %v188
      %v335 = vunpack.c.h.b16 %v188
      %v336 = vunpack.c.l.b16 %v189
      %v337 = vunpack.c.l.b16 %v190
      %v338 = vunpack.c.h.b16 %v190
      %v339 = vunpack.c.l.b16 %v191
      %v340 = vunpack.c.l.b16 %v192
      %v341 = vunpack.c.h.b16 %v192
      %v342 = vunpack.c.l.b16 %v193
      %v343 = vunpack.c.l.b16 %v194
      %v344 = vunpack.c.h.b16 %v194
      %v345 = vunpack.c.l.b16 %v195
      %v346 = vunpack.c.l.b16 %v196
      %v347 = vunpack.c.h.b16 %v196
      %v348 = vunpack.c.l.b16 %v197
      %v349 = vunpack.c.l.b16 %v198
      %v350 = vunpack.c.h.b16 %v198
      %v351 = vunpack.c.l.b16 %v199
      %v352 = vunpack.c.l.b16 %v200
      %v353 = vunpack.c.h.b16 %v200
      %v354 = vunpack.c.l.b16 %v201
      %v355 = vunpack.c.l.b16 %v202
      %v356 = vunpack.c.h.b16 %v202
      %v357 = vunpack.c.l.b16 %v203
      %v358 = vunpack.c.l.b16 %v204
      %v359 = vunpack.c.h.b16 %v204
      %v360 = vunpack.c.l.b16 %v205
      %v361 = vunpack.c.l.b16 %v206
      %v362 = vunpack.c.h.b16 %v206
      %v363 = vunpack.c.l.b16 %v207
      %v364 = vunpack.c.l.b16 %v208
      %v365 = vunpack.c.h.b16 %v208
      %v366 = vunpack.c.l.b16 %v209
      %v367 = vunpack.c.l.b16 %v210
      %v368 = vunpack.c.h.b16 %v210
      %v369 = vunpack.c.l.b16 %v211
      %v370 = vunpack.c.l.b16 %v212
      %v371 = vunpack.c.h.b16 %v212
      %v372 = vunpack.c.l.b16 %v213
      %v373 = vunpack.c.l.b16 %v214
      %v374 = vunpack.c.h.b16 %v214
      %v375 = vunpack.c.l.b16 %v215
      %v376 = vunpack.c.l.b16 %v216
      %v377 = vunpack.c.h.b16 %v216
      %v378 = vunpack.c.l.b16 %v217
      %v379 = vunpack.c.l.b16 %v218
      %v380 = vunpack.c.h.b16 %v218
      %v381 = vunpack.c.l.b16 %v219
      %v382 = vunpack.c.l.b16 %v220
      %v383 = vunpack.c.h.b16 %v220
      %v384 = vunpack.c.l.b16 %v221
      %v385 = vunpack.c.l.b16 %v222
      %v386 = vunpack.c.h.b16 %v222
      %v387 = vunpack.c.l.b16 %v223
      %v388 = vunpack.c.l.b16 %v224
      %v389 = vunpack.c.h.b16 %v224
      %v390 = vunpack.c.l.b16 %v225
      %v391 = vunpack.c.l.b16 %v226
      %v392 = vunpack.c.h.b16 %v226
      %v393 = vunpack.c.l.b16 %v227
      %v394 = vunpack.c.l.b16 %v228
      %v395 = vunpack.c.h.b16 %v228
      %v396 = vunpack.c.l.b16 %v229
      %v397 = vpack.c.b16 %v304, %v301
      %v398 = vpack.c.b16 %v305, %v302
      %v399 = vpack.c.b16 %v306, %v303
      %v400 = vpack.c.b16 %v310, %v307
      %v401 = vpack.c.b16 %v311, %v308
      %v402 = vpack.c.b16 %v312, %v309
      %v403 = vpack.c.b16 %v316, %v313
      %v404 = vpack.c.b16 %v317, %v314
      %v405 = vpack.c.b16 %v318, %v315
      %v406 = vpack.c.b16 %v322, %v319
      %v407 = vpack.c.b16 %v323, %v320
      %v408 = vpack.c.b16 %v324, %v321
      %v409 = vpack.c.b16 %v328, %v325
      %v410 = vpack.c.b16 %v329, %v326
      %v411 = vpack.c.b16 %v330, %v327
      %v412 = vpack.c.b16 %v334, %v331
      %v413 = vpack.c.b16 %v335, %v332
      %v414 = vpack.c.b16 %v336, %v333
      %v415 = vpack.c.b16 %v340, %v337
      %v416 = vpack.c.b16 %v341, %v338
      %v417 = vpack.c.b16 %v342, %v339
      %v418 = vpack.c.b16 %v346, %v343
      %v419 = vpack.c.b16 %v347, %v344
      %v420 = vpack.c.b16 %v348, %v345
      %v421 = vpack.c.b16 %v352, %v349
      %v422 = vpack.c.b16 %v353, %v350
      %v423 = vpack.c.b16 %v354, %v351
      %v424 = vpack.c.b16 %v358, %v355
      %v425 = vpack.c.b16 %v359, %v356
      %v426 = vpack.c.b16 %v360, %v357
      %v427 = vpack.c.b16 %v364, %v361
      %v428 = vpack.c.b16 %v365, %v362
      %v429 = vpack.c.b16 %v366, %v363
      %v430 = vpack.c.b16 %v370, %v367
      %v431 = vpack.c.b16 %v371, %v368
      %v432 = vpack.c.b16 %v372, %v369
      %v433 = vpack.c.b16 %v376, %v373
      %v434 = vpack.c.b16 %v377, %v374
      %v435 = vpack.c.b16 %v378, %v375
      %v436 = vpack.c.b16 %v382, %v379
      %v437 = vpack.c.b16 %v383, %v380
      %v438 = vpack.c.b16 %v384, %v381
      %v439 = vpack.c.b16 %v388, %v385
      %v440 = vpack.c.b16 %v389, %v386
      %v441 = vpack.c.b16 %v390, %v387
      %v442 = vpack.c.b16 %v394, %v391
      %v443 = vpack.c.b16 %v395, %v392
      %v444 = vpack.c.b16 %v396, %v393
      %493 = vmatprep.subr.bf16.mxu0 %v398
      %494 = vmatpush1.bf16.msra.mxu0 %v397
      %495 = vmatprep.subr.bf16.mxu0 %v401
      %496 = vmatpush1.bf16.msra.mxu0 %v400
      %497 = vmatprep.subr.bf16.mxu0 %v404
      %498 = vmatpush1.bf16.msra.mxu0 %v403
      %499 = vmatprep.subr.bf16.mxu0 %v407
      %500 = vmatpush1.bf16.msra.mxu0 %v406
      %501 = vmatprep.subr.bf16.mxu0 %v410
      %502 = vmatpush1.bf16.msra.mxu0 %v409
      %503 = vmatprep.subr.bf16.mxu0 %v413
      %504 = vmatpush1.bf16.msra.mxu0 %v412
      %505 = vmatprep.subr.bf16.mxu0 %v416
      %506 = vmatpush1.bf16.msra.mxu0 %v415
      %507 = vmatprep.subr.bf16.mxu0 %v419
      %508 = vmatpush1.bf16.msra.mxu0 %v418
      %509 = vmatprep.subr.bf16.mxu0 %v422
      %510 = vmatpush1.bf16.msra.mxu0 %v421
      %511 = vmatprep.subr.bf16.mxu0 %v425
      %512 = vmatpush1.bf16.msra.mxu0 %v424
      %513 = vmatprep.subr.bf16.mxu0 %v428
      %514 = vmatpush1.bf16.msra.mxu0 %v427
      %515 = vmatprep.subr.bf16.mxu0 %v431
      %516 = vmatpush1.bf16.msra.mxu0 %v430
      %517 = vmatprep.subr.bf16.mxu0 %v434
      %518 = vmatpush1.bf16.msra.mxu0 %v433
      %519 = vmatprep.subr.bf16.mxu0 %v437
      %520 = vmatpush1.bf16.msra.mxu0 %v436
      %521 = vmatprep.subr.bf16.mxu0 %v440
      %522 = vmatpush1.bf16.msra.mxu0 %v439
      %523 = vmatprep.subr.bf16.mxu0 %v443
      %524 = vmatpush1.bf16.msra.mxu0 %v442
      %525 = vmatprep.mubr.bf16.mxu0 %v234
      %526 = vmatmul.mubr.bf16.gmra.mrb[0].mxu0 %v233
      %v527 = vpop.f32.mrb[0].mxu0
      %v528 = vadd.f32 0.0, %v527
      %v529 = vpop.f32.mrb[0].mxu0
      %v530 = vadd.f32 0.0, %v529
      %v531 = vpop.f32.mrb[0].mxu0
      %v532 = vpop.f32.mrb[0].mxu0
      %533 = vdwg.mxu0
      %534 = vmatprep.subr.bf16.mxu0 0
      %535 = vmatpush1.bf16.msra.mxu0 %v399
      %536 = vmatprep.subr.bf16.mxu0 0
      %537 = vmatpush1.bf16.msra.mxu0 %v402
      %538 = vmatprep.subr.bf16.mxu0 0
      %539 = vmatpush1.bf16.msra.mxu0 %v405
      %540 = vmatprep.subr.bf16.mxu0 0
      %541 = vmatpush1.bf16.msra.mxu0 %v408
      %542 = vmatprep.subr.bf16.mxu0 0
      %543 = vmatpush1.bf16.msra.mxu0 %v411
      %544 = vmatprep.subr.bf16.mxu0 0
      %545 = vmatpush1.bf16.msra.mxu0 %v414
      %546 = vmatprep.subr.bf16.mxu0 0
      %547 = vmatpush1.bf16.msra.mxu0 %v417
      %548 = vmatprep.subr.bf16.mxu0 0
      %549 = vmatpush1.bf16.msra.mxu0 %v420
      %550 = vmatprep.subr.bf16.mxu0 0
      %551 = vmatpush1.bf16.msra.mxu0 %v423
      %552 = vmatprep.subr.bf16.mxu0 0
      %553 = vmatpush1.bf16.msra.mxu0 %v426
      %554 = vmatprep.subr.bf16.mxu0 0
      %555 = vmatpush1.bf16.msra.mxu0 %v429
      %556 = vmatprep.subr.bf16.mxu0 0
      %557 = vmatpush1.bf16.msra.mxu0 %v432
      %558 = vmatprep.subr.bf16.mxu0 0
      %559 = vmatpush1.bf16.msra.mxu0 %v435
      %560 = vmatprep.subr.bf16.mxu0 0
      %561 = vmatpush1.bf16.msra.mxu0 %v438
      %562 = vmatprep.subr.bf16.mxu0 0
      %563 = vmatpush1.bf16.msra.mxu0 %v441
      %564 = vmatprep.subr.bf16.mxu0 0
      %565 = vmatpush1.bf16.msra.mxu0 %v444
      %566 = vmatprep.mubr.bf16.mxu0 %v234
      %567 = vmatmul.mubr.bf16.gmra.mrb[0].mxu0 %v233
      %v568 = vpop.f32.mrb[0].mxu0
      %v569 = vadd.f32 0.0, %v568
      %v570 = vpop.f32.mrb[0].mxu0
      %v571 = vpop.f32.mrb[0].mxu0
      %v572 = vpop.f32.mrb[0].mxu0
      %573 = vdwg.mxu0
      %574 = vst [vmem:[%s163] sm:$0xff] %v528
      %575 = vst [vmem:[%s163 + $0x8] sm:$0xff] %v530
      %576 = vst [vmem:[%s163 + $0x10] sm:$0xff] %v569
      %p577 = scmp.lt.s32.totalorder %s13, 1
      %s578 = scalar_select %p577, %s13, 1
      %s579 = smul.addr %s578, 3
      %s580 = smul.addr %s579, 8
      %s581 = scalar_lea.vmem %s2, %s580
      // Predicated region
      $region29: #{_lambda_.21} parent=27 // pred_check
        %p582 = pneg %p83
      $region30: #{_lambda_.21} parent=27 // pred_check_branch
        %584 = sbr.rel (%p582) target = $region32
      $region31: #{_lambda_.21} parent=27 // pred_region
        _
      $region32: #{_lambda_.21} parent=27 // pred_fallthru
        _
    $region28: #{_lambda_.21} parent=5 // pred_fallthru
      _
    %p585 = scmp.le.s32.totalorder 2, %s8
    // Predicated region
    $region33: #{_lambda_.21} parent=5 // pred_check
      %p586 = pneg %p585
    $region34: #{_lambda_.21} parent=5 // pred_check_branch
      %588 = sbr.rel (%p586) target = $region36
    $region35: #{_lambda_.21} parent=5 // pred_region
      %s589 = ssub.s32 %s8, 2
      // Predicated region
      $region37: #{_lambda_.21} parent=35 // pred_check
        %p590 = pneg %p89
      $region38: #{_lambda_.21} parent=35 // pred_check_branch
        %592 = sbr.rel (%p590) target = $region40
      $region39: #{_lambda_.21} parent=35 // pred_region
        %p593 = scmp.lt.s32.totalorder %s14, 1
        %s594 = scalar_select %p593, %s14, 1
        %s595 = smul.addr %s594, 3
        %s596 = smul.addr %s595, 8
        %s597 = scalar_lea.vmem %s2, %s596
      $region40: #{_lambda_.21} parent=35 // pred_fallthru
        _
    $region36: #{_lambda_.21} parent=5 // pred_fallthru
      _
  $region6: #{_lambda_.21} parent=0 // loop_footer
    %s12 = sadd.s32 1, %s8
  $region7: #{_lambda_.21} parent=0 // loop_footer_branch
    %7 = sbr.rel target = $region3
  $region8: #{_lambda_.21} parent=0 // loop_exit
    _

// kernel: _lambda_.22
$region0: #{_lambda_.22}
  #allocation0 [shape = 'u32[]', space=smem, size = 0x4, offset = 0x4, fixed_abs, tag = 'smem constant byte address 0x4 - core index']
  #allocation1 [shape = 'u32[144,128]{1,0:T(1,128)}', space=vmem, size = 0x12000, scoped, tag = 'internal scratch']
  %s0 = inlined_call_operand.vmem [shape: f32[2,64,64], index: 0, kind: input, shape index: {}]
  %s1 = inlined_call_operand.vmem [shape: f32[1,64], index: 1, kind: input, shape index: {}]
  %s2 = inlined_call_operand.vmem [shape: f32[2,64,64], index: 2, kind: output, shape index: {}]
  %s3 = sld [smem:[#allocation0]]
  $region18: #{_lambda_.22} parent=0
    _
  %s5 = ssub.s32 1, %s3
  %s6 = scalar_select 0, %s5, %s3
  // Predicated region
  $region2: #{_lambda_.22} parent=0 // pred_check
    _
  $region3: #{_lambda_.22} parent=0 // pred_check_branch
    %8 = sbr.rel (0) target = $region5
  $region4: #{_lambda_.22} parent=0 // pred_region
    _
  $region5: #{_lambda_.22} parent=0 // pred_fallthru
    _
  // Predicated region
  $region6: #{_lambda_.22} parent=0 // pred_check
    _
  $region7: #{_lambda_.22} parent=0 // pred_check_branch
    %10 = sbr.rel (0) target = $region9
  $region8: #{_lambda_.22} parent=0 // pred_region
    _
  $region9: #{_lambda_.22} parent=0 // pred_fallthru
    _
  %v11 = vld [vmem:[%s0] sm:$0xff]
  %v12 = vld [vmem:[%s0 + $0x8] sm:$0xff]
  %v13 = vld [vmem:[%s0 + $0x10] sm:$0xff]
  %v14 = vld [vmem:[%s0 + $0x18] sm:$0xff]
  %v15 = vld [vmem:[%s0 + $0x20] sm:$0xff]
  %v16 = vld [vmem:[%s0 + $0x28] sm:$0xff]
  %v17 = vld [vmem:[%s0 + $0x30] sm:$0xff]
  %v18 = vld [vmem:[%s0 + $0x38] sm:$0xff]
  %v19 = vld [vmem:[%s0 + $0x40] sm:$0xff]
  %v20 = vld [vmem:[%s0 + $0x48] sm:$0xff]
  %v21 = vld [vmem:[%s0 + $0x50] sm:$0xff]
  %v22 = vld [vmem:[%s0 + $0x58] sm:$0xff]
  %v23 = vld [vmem:[%s0 + $0x60] sm:$0xff]
  %v24 = vld [vmem:[%s0 + $0x68] sm:$0xff]
  %v25 = vld [vmem:[%s0 + $0x70] sm:$0xff]
  %v26 = vld [vmem:[%s0 + $0x78] sm:$0xff]
  %v27 = vld [vmem:[%s1] sm:$0x1]
  %v28 = vlaneseq
  %v29 = vshrl.u32 %v28, 7
  %v30 = vsub.s32 0, %v29
  %v31 = vrot.slane %v27, %v30
  %33 = vbcast.lane.b32.xlu0 %v31, 256
  %v34 = vpop.permute.xlu0 %33
  %s36 = sor.u32 256, 8
  %37 = vbcast.lane.b32.xlu0 %v31, %s36
  %v38 = vpop.permute.xlu0 %37
  %s40 = sor.u32 256, 16
  %41 = vbcast.lane.b32.xlu0 %v31, %s40
  %v42 = vpop.permute.xlu0 %41
  %s44 = sor.u32 256, 24
  %45 = vbcast.lane.b32.xlu0 %v31, %s44
  %v46 = vpop.permute.xlu0 %45
  %s48 = sor.u32 256, 32
  %49 = vbcast.lane.b32.xlu0 %v31, %s48
  %v50 = vpop.permute.xlu0 %49
  %s52 = sor.u32 256, 40
  %53 = vbcast.lane.b32.xlu0 %v31, %s52
  %v54 = vpop.permute.xlu0 %53
  %s56 = sor.u32 256, 48
  %57 = vbcast.lane.b32.xlu0 %v31, %s56
  %v58 = vpop.permute.xlu0 %57
  %s60 = sor.u32 256, 56
  %61 = vbcast.lane.b32.xlu0 %v31, %s60
  %v62 = vpop.permute.xlu0 %61
  %v63 = vadd.f32 %v11, %v34
  %v64 = vadd.f32 %v12, %v38
  %v65 = vadd.f32 %v13, %v42
  %v66 = vadd.f32 %v14, %v46
  %v67 = vadd.f32 %v15, %v50
  %v68 = vadd.f32 %v16, %v54
  %v69 = vadd.f32 %v17, %v58
  %v70 = vadd.f32 %v18, %v62
  %v71 = vadd.f32 %v19, %v34
  %v72 = vadd.f32 %v20, %v38
  %v73 = vadd.f32 %v21, %v42
  %v74 = vadd.f32 %v22, %v46
  %v75 = vadd.f32 %v23, %v50
  %v76 = vadd.f32 %v24, %v54
  %v77 = vadd.f32 %v25, %v58
  %v78 = vadd.f32 %v26, %v62
  %v79 = vmax.f32 %v63, 0.0
  %v80 = vmax.f32 %v64, 0.0
  %v81 = vmax.f32 %v65, 0.0
  %v82 = vmax.f32 %v66, 0.0
  %v83 = vmax.f32 %v67, 0.0
  %v84 = vmax.f32 %v68, 0.0
  %v85 = vmax.f32 %v69, 0.0
  %v86 = vmax.f32 %v70, 0.0
  %v87 = vmax.f32 %v71, 0.0
  %v88 = vmax.f32 %v72, 0.0
  %v89 = vmax.f32 %v73, 0.0
  %v90 = vmax.f32 %v74, 0.0
  %v91 = vmax.f32 %v75, 0.0
  %v92 = vmax.f32 %v76, 0.0
  %v93 = vmax.f32 %v77, 0.0
  %v94 = vmax.f32 %v78, 0.0
  %vm95 = vcmask 523264
  %96 = vst.msk [vmem:[%s2] sm:$0xff] %vm95, %v79
  %97 = vst.msk [vmem:[%s2 + $0x8] sm:$0xff] %vm95, %v80
  %98 = vst.msk [vmem:[%s2 + $0x10] sm:$0xff] %vm95, %v81
  %99 = vst.msk [vmem:[%s2 + $0x18] sm:$0xff] %vm95, %v82
  %100 = vst.msk [vmem:[%s2 + $0x20] sm:$0xff] %vm95, %v83
  %101 = vst.msk [vmem:[%s2 + $0x28] sm:$0xff] %vm95, %v84
  %102 = vst.msk [vmem:[%s2 + $0x30] sm:$0xff] %vm95, %v85
  %103 = vst.msk [vmem:[%s2 + $0x38] sm:$0xff] %vm95, %v86
  %104 = vst.msk [vmem:[%s2 + $0x40] sm:$0xff] %vm95, %v87
  %105 = vst.msk [vmem:[%s2 + $0x48] sm:$0xff] %vm95, %v88
  %106 = vst.msk [vmem:[%s2 + $0x50] sm:$0xff] %vm95, %v89
  %107 = vst.msk [vmem:[%s2 + $0x58] sm:$0xff] %vm95, %v90
  %108 = vst.msk [vmem:[%s2 + $0x60] sm:$0xff] %vm95, %v91
  %109 = vst.msk [vmem:[%s2 + $0x68] sm:$0xff] %vm95, %v92
  %110 = vst.msk [vmem:[%s2 + $0x70] sm:$0xff] %vm95, %v93
  %111 = vst.msk [vmem:[%s2 + $0x78] sm:$0xff] %vm95, %v94
  // Predicated region
  $region10: #{_lambda_.22} parent=0 // pred_check
    _
  $region11: #{_lambda_.22} parent=0 // pred_check_branch
    %113 = sbr.rel (0) target = $region13
  $region12: #{_lambda_.22} parent=0 // pred_region
    _
  $region13: #{_lambda_.22} parent=0 // pred_fallthru
    _
  // Predicated region
  $region14: #{_lambda_.22} parent=0 // pred_check
    _
  $region15: #{_lambda_.22} parent=0 // pred_check_branch
    %115 = sbr.rel (0) target = $region17
  $region16: #{_lambda_.22} parent=0 // pred_region
    _
  $region17: #{_lambda_.22} parent=0 // pred_fallthru
    _

// kernel: _lambda_.23
$region0: #{_lambda_.23}
  #allocation0 [shape = 'u32[]', space=smem, size = 0x4, offset = 0x4, fixed_abs, tag = 'smem constant byte address 0x4 - core index']
  #allocation1 [shape = 'u32[144,128]{1,0:T(1,128)}', space=vmem, size = 0x12000, scoped, tag = 'internal scratch']
  %s0 = inlined_call_operand.vmem [shape: bf16[2,8,384], index: 0, kind: input, shape index: {}]
  %s1 = inlined_call_operand.vmem [shape: bf16[2,384,384], index: 1, kind: input, shape index: {}]
  %s2 = inlined_call_operand.vmem [shape: f32[2,8,384], index: 2, kind: output, shape index: {}]
  %s3 = sld [smem:[#allocation0]]
  $region41: #{_lambda_.23} parent=0
    _
  %s5 = ssub.s32 1, %s3
  %s6 = scalar_select 0, %s5, %s3
  loop: start=0, step=1, limit=4
  $region2: #{_lambda_.23} parent=0 // loop_pre_header
    _
  $region3: #{_lambda_.23} parent=0 // loop_header
    %s8 = sphi 0, %s12
    %p9 = scmp.ge.s32.totalorder %s8, 4
    %s18 = sphi 0, %s20
    %s21 = sphi 0, %s18
    %s22 = sphi 0, %s21
    %s38 = sphi 0, %s22
    %s44 = sphi 0, %s46
    %s47 = sphi 0, %s44
    %s48 = sphi 0, %s47
    %s64 = sphi 0, %s48
    %s70 = sphi 0, %s72
    %s73 = sphi 0, %s70
    %s74 = sphi 0, %s73
    %s90 = sphi 0, %s74
  $region4: #{_lambda_.23} parent=0 // loop_header_branch
    %11 = sbr.rel (%p9) target = $region8
  $region5: #{_lambda_.23} parent=0 // loop_body
    %s13 = ssub.s32 %s8, 1
    %s14 = ssub.s32 %s8, 2
    %s15 = sadd.s32 %s8, 1
    %s16 = ssub.s32 %s8, %s15
    %p17 = scmp.eq.s32.totalorder %s16, 0
    %s19 = sadd.s32 %s18, 1
    %s20 = scalar_select %p17, %s18, %s19
    %p23 = pneg %p17
    %p24 = scmp.eq.s32.totalorder %s8, 1
    %p25 = por %p23, %p24
    %p26 = scmp.ne.s32.totalorder %s18, %s21
    %p27 = scmp.eq.s32.totalorder %s8, 0
    %p28 = por %p26, %p27
    %p29 = scmp.ne.s32.totalorder %s18, %s21
    %p30 = scmp.eq.s32.totalorder %s13, 1
    %p31 = por %p29, %p30
    %p32 = scmp.ne.s32.totalorder %s21, %s22
    %p33 = scmp.eq.s32.totalorder %s13, 0
    %p34 = por %p32, %p33
    %p35 = scmp.ne.s32.totalorder %s21, %s22
    %p36 = scmp.eq.s32.totalorder %s14, 1
    %p37 = por %p35, %p36
    %p39 = scmp.ne.s32.totalorder %s22, %s38
    %p40 = scmp.eq.s32.totalorder %s14, 0
    %p41 = por %p39, %p40
    %s42 = ssub.s32 %s8, %s15
    %p43 = scmp.eq.s32.totalorder %s42, 0
    %s45 = sadd.s32 %s44, 1
    %s46 = scalar_select %p43, %s44, %s45
    %p49 = pneg %p43
    %p50 = scmp.eq.s32.totalorder %s8, 1
    %p51 = por %p49, %p50
    %p52 = scmp.ne.s32.totalorder %s44, %s47
    %p53 = scmp.eq.s32.totalorder %s8, 0
    %p54 = por %p52, %p53
    %p55 = scmp.ne.s32.totalorder %s44, %s47
    %p56 = scmp.eq.s32.totalorder %s13, 1
    %p57 = por %p55, %p56
    %p58 = scmp.ne.s32.totalorder %s47, %s48
    %p59 = scmp.eq.s32.totalorder %s13, 0
    %p60 = por %p58, %p59
    %p61 = scmp.ne.s32.totalorder %s47, %s48
    %p62 = scmp.eq.s32.totalorder %s14, 1
    %p63 = por %p61, %p62
    %p65 = scmp.ne.s32.totalorder %s48, %s64
    %p66 = scmp.eq.s32.totalorder %s14, 0
    %p67 = por %p65, %p66
    %s68 = ssub.s32 %s8, %s15
    %p69 = scmp.eq.s32.totalorder %s68, 0
    %s71 = sadd.s32 %s70, 1
    %s72 = scalar_select %p69, %s70, %s71
    %p75 = pneg %p69
    %p76 = scmp.eq.s32.totalorder %s8, 1
    %p77 = por %p75, %p76
    %p78 = scmp.ne.s32.totalorder %s70, %s73
    %p79 = scmp.eq.s32.totalorder %s8, 0
    %p80 = por %p78, %p79
    %p81 = scmp.ne.s32.totalorder %s70, %s73
    %p82 = scmp.eq.s32.totalorder %s13, 1
    %p83 = por %p81, %p82
    %p84 = scmp.ne.s32.totalorder %s73, %s74
    %p85 = scmp.eq.s32.totalorder %s13, 0
    %p86 = por %p84, %p85
    %p87 = scmp.ne.s32.totalorder %s73, %s74
    %p88 = scmp.eq.s32.totalorder %s14, 1
    %p89 = por %p87, %p88
    %p91 = scmp.ne.s32.totalorder %s74, %s90
    %p92 = scmp.eq.s32.totalorder %s14, 0
    %p93 = por %p91, %p92
    %p94 = scmp.le.s32.totalorder 1, %s8
    %p95 = scmp.lt.s32.totalorder %s8, 3
    %p96 = pnand %p94, %p95
    %p97 = pneg %p96
    // Predicated region
    $region9: #{_lambda_.23} parent=5 // pred_check
      _
    $region10: #{_lambda_.23} parent=5 // pred_check_branch
      %99 = sbr.rel (%p96) target = $region12
    $region11: #{_lambda_.23} parent=5 // pred_region
      %s100 = ssub.s32 %s8, 1
    $region12: #{_lambda_.23} parent=5 // pred_fallthru
      _
    %p101 = scmp.lt.s32.totalorder %s8, 2
    // Predicated region
    $region13: #{_lambda_.23} parent=5 // pred_check
      %p102 = pneg %p101
    $region14: #{_lambda_.23} parent=5 // pred_check_branch
      %104 = sbr.rel (%p102) target = $region16
    $region15: #{_lambda_.23} parent=5 // pred_region
      // Predicated region
      $region17: #{_lambda_.23} parent=15 // pred_check
        %p105 = pneg %p28
      $region18: #{_lambda_.23} parent=15 // pred_check_branch
        %107 = sbr.rel (%p105) target = $region20
      $region19: #{_lambda_.23} parent=15 // pred_region
        %p108 = scmp.lt.s32.totalorder %s8, 1
        %s109 = scalar_select %p108, %s8, 1
        %s110 = smul.addr %s109, 3
        %s111 = smul.addr %s110, 4
        %s112 = scalar_lea.vmem %s0, %s111
      $region20: #{_lambda_.23} parent=15 // pred_fallthru
        _
      // Predicated region
      $region21: #{_lambda_.23} parent=15 // pred_check
        %p113 = pneg %p54
      $region22: #{_lambda_.23} parent=15 // pred_check_branch
        %115 = sbr.rel (%p113) target = $region24
      $region23: #{_lambda_.23} parent=15 // pred_region
        %p116 = scmp.lt.s32.totalorder %s8, 1
        %s117 = scalar_select %p116, %s8, 1
        %s118 = smul.addr %s117, 144
        %s119 = smul.addr %s118, 4
        %s120 = scalar_lea.vmem %s1, %s119
      $region24: #{_lambda_.23} parent=15 // pred_fallthru
        _
    $region16: #{_lambda_.23} parent=5 // pred_fallthru
      _
    %p121 = scmp.le.s32.totalorder 1, %s8
    %p122 = scmp.lt.s32.totalorder %s8, 3
    %p123 = pnand %p121, %p122
    %p124 = pneg %p123
    // Predicated region
    $region25: #{_lambda_.23} parent=5 // pred_check
      _
    $region26: #{_lambda_.23} parent=5 // pred_check_branch
      %126 = sbr.rel (%p123) target = $region28
    $region27: #{_lambda_.23} parent=5 // pred_region
      %s127 = ssub.s32 %s8, 1
      %p128 = scmp.lt.s32.totalorder %s13, 1
      %s129 = scalar_select %p128, %s13, 1
      %s130 = smul.addr %s129, 3
      %s131 = smul.addr %s130, 4
      %s132 = scalar_lea.vmem %s0, %s131
      %p133 = pneg %p34
      %p134 = pneg %p31
      %p135 = scmp.lt.s32.totalorder %s13, 1
      %s136 = scalar_select %p135, %s13, 1
      %s137 = smul.addr %s136, 144
      %s138 = smul.addr %s137, 4
      %s139 = scalar_lea.vmem %s1, %s138
      %p140 = pneg %p60
      %p141 = pneg %p57
      %p142 = pneg %p86
      %p143 = pneg %p83
      %p144 = scmp.lt.s32.totalorder %s13, 1
      %s145 = scalar_select %p144, %s13, 1
      %s146 = smul.addr %s145, 3
      %s147 = smul.addr %s146, 8
      %s148 = scalar_lea.vmem %s2, %s147
      %p149 = scmp.lt.s32.totalorder %s13, 1
      %s150 = scalar_select %p149, %s13, 1
      %s151 = smul.addr %s150, 3
      %s152 = smul.addr %s151, 4
      %s153 = scalar_lea.vmem %s0, %s152
      %p154 = scmp.lt.s32.totalorder %s13, 1
      %s155 = scalar_select %p154, %s13, 1
      %s156 = smul.addr %s155, 144
      %s157 = smul.addr %s156, 4
      %s158 = scalar_lea.vmem %s1, %s157
      %p159 = scmp.lt.s32.totalorder %s13, 1
      %s160 = scalar_select %p159, %s13, 1
      %s161 = smul.addr %s160, 3
      %s162 = smul.addr %s161, 8
      %s163 = scalar_lea.vmem %s2, %s162
      %v165 = vld [vmem:[%s153] sm:$0xff]
      %v166 = vld [vmem:[%s153 + $0x8] sm:$0xf]
      %v167 = vld [vmem:[%s158] sm:$0xff]
      %v168 = vld [vmem:[%s158 + $0x8] sm:$0xf]
      %v169 = vld [vmem:[%s158 + $0xc] sm:$0xff]
      %v170 = vld [vmem:[%s158 + $0x14] sm:$0xf]
      %v171 = vld [vmem:[%s158 + $0x18] sm:$0xff]
      %v172 = vld [vmem:[%s158 + $0x20] sm:$0xf]
      %v173 = vld [vmem:[%s158 + $0x24] sm:$0xff]
      %v174 = vld [vmem:[%s158 + $0x2c] sm:$0xf]
      %v175 = vld [vmem:[%s158 + $0x30] sm:$0xff]
      %v176 = vld [vmem:[%s158 + $0x38] sm:$0xf]
      %v177 = vld [vmem:[%s158 + $0x3c] sm:$0xff]
      %v178 = vld [vmem:[%s158 + $0x44] sm:$0xf]
      %v179 = vld [vmem:[%s158 + $0x48] sm:$0xff]
      %v180 = vld [vmem:[%s158 + $0x50] sm:$0xf]
      %v181 = vld [vmem:[%s158 + $0x54] sm:$0xff]
      %v182 = vld [vmem:[%s158 + $0x5c] sm:$0xf]
      %v183 = vld [vmem:[%s158 + $0x60] sm:$0xff]
      %v184 = vld [vmem:[%s158 + $0x68] sm:$0xf]
      %v185 = vld [vmem:[%s158 + $0x6c] sm:$0xff]
      %v186 = vld [vmem:[%s158 + $0x74] sm:$0xf]
      %v187 = vld [vmem:[%s158 + $0x78] sm:$0xff]
      %v188 = vld [vmem:[%s158 + $0x80] sm:$0xf]
      %v189 = vld [vmem:[%s158 + $0x84] sm:$0xff]
      %v190 = vld [vmem:[%s158 + $0x8c] sm:$0xf]
      %v191 = vld [vmem:[%s158 + $0x90] sm:$0xff]
      %v192 = vld [vmem:[%s158 + $0x98] sm:$0xf]
      %v193 = vld [vmem:[%s158 + $0x9c] sm:$0xff]
      %v194 = vld [vmem:[%s158 + $0xa4] sm:$0xf]
      %v195 = vld [vmem:[%s158 + $0xa8] sm:$0xff]
      %v196 = vld [vmem:[%s158 + $0xb0] sm:$0xf]
      %v197 = vld [vmem:[%s158 + $0xb4] sm:$0xff]
      %v198 = vld [vmem:[%s158 + $0xbc] sm:$0xf]
      %v199 = vld [vmem:[%s158 + $0xc0] sm:$0xff]
      %v200 = vld [vmem:[%s158 + $0xc8] sm:$0xf]
      %v201 = vld [vmem:[%s158 + $0xcc] sm:$0xff]
      %v202 = vld [vmem:[%s158 + $0xd4] sm:$0xf]
      %v203 = vld [vmem:[%s158 + $0xd8] sm:$0xff]
      %v204 = vld [vmem:[%s158 + $0xe0] sm:$0xf]
      %v205 = vld [vmem:[%s158 + $0xe4] sm:$0xff]
      %v206 = vld [vmem:[%s158 + $0xec] sm:$0xf]
      %v207 = vld [vmem:[%s158 + $0xf0] sm:$0xff]
      %v208 = vld [vmem:[%s158 + $0xf8] sm:$0xf]
      %v209 = vld [vmem:[%s158 + $0xfc] sm:$0xff]
      %v210 = vld [vmem:[%s158 + $0x104] sm:$0xf]
      %v211 = vld [vmem:[%s158 + $0x108] sm:$0xff]
      %v212 = vld [vmem:[%s158 + $0x110] sm:$0xf]
      %v213 = vld [vmem:[%s158 + $0x114] sm:$0xff]
      %v214 = vld [vmem:[%s158 + $0x11c] sm:$0xf]
      %v215 = vld [vmem:[%s158 + $0x120] sm:$0xff]
      %v216 = vld [vmem:[%s158 + $0x128] sm:$0xf]
      %v217 = vld [vmem:[%s158 + $0x12c] sm:$0xff]
      %v218 = vld [vmem:[%s158 + $0x134] sm:$0xf]
      %v219 = vld [vmem:[%s158 + $0x138] sm:$0xff]
      %v220 = vld [vmem:[%s158 + $0x140] sm:$0xf]
      %v221 = vld [vmem:[%s158 + $0x144] sm:$0xff]
      %v222 = vld [vmem:[%s158 + $0x14c] sm:$0xf]
      %v223 = vld [vmem:[%s158 + $0x150] sm:$0xff]
      %v224 = vld [vmem:[%s158 + $0x158] sm:$0xf]
      %v225 = vld [vmem:[%s158 + $0x15c] sm:$0xff]
      %v226 = vld [vmem:[%s158 + $0x164] sm:$0xf]
      %v227 = vld [vmem:[%s158 + $0x168] sm:$0xff]
      %v228 = vld [vmem:[%s158 + $0x170] sm:$0xf]
      %v229 = vld [vmem:[%s158 + $0x174] sm:$0xff]
      %v230 = vld [vmem:[%s158 + $0x17c] sm:$0xf]
      %v231 = vld [vmem:[%s158 + $0x180] sm:$0xff]
      %v232 = vld [vmem:[%s158 + $0x188] sm:$0xf]
      %v233 = vld [vmem:[%s158 + $0x18c] sm:$0xff]
      %v234 = vld [vmem:[%s158 + $0x194] sm:$0xf]
      %v235 = vld [vmem:[%s158 + $0x198] sm:$0xff]
      %v236 = vld [vmem:[%s158 + $0x1a0] sm:$0xf]
      %v237 = vld [vmem:[%s158 + $0x1a4] sm:$0xff]
      %v238 = vld [vmem:[%s158 + $0x1ac] sm:$0xf]
      %v239 = vld [vmem:[%s158 + $0x1b0] sm:$0xff]
      %v240 = vld [vmem:[%s158 + $0x1b8] sm:$0xf]
      %v241 = vld [vmem:[%s158 + $0x1bc] sm:$0xff]
      %v242 = vld [vmem:[%s158 + $0x1c4] sm:$0xf]
      %v243 = vld [vmem:[%s158 + $0x1c8] sm:$0xff]
      %v244 = vld [vmem:[%s158 + $0x1d0] sm:$0xf]
      %v245 = vld [vmem:[%s158 + $0x1d4] sm:$0xff]
      %v246 = vld [vmem:[%s158 + $0x1dc] sm:$0xf]
      %v247 = vld [vmem:[%s158 + $0x1e0] sm:$0xff]
      %v248 = vld [vmem:[%s158 + $0x1e8] sm:$0xf]
      %v249 = vld [vmem:[%s158 + $0x1ec] sm:$0xff]
      %v250 = vld [vmem:[%s158 + $0x1f4] sm:$0xf]
      %v251 = vld [vmem:[%s158 + $0x1f8] sm:$0xff]
      %v252 = vld [vmem:[%s158 + $0x200] sm:$0xf]
      %v253 = vld [vmem:[%s158 + $0x204] sm:$0xff]
      %v254 = vld [vmem:[%s158 + $0x20c] sm:$0xf]
      %v255 = vld [vmem:[%s158 + $0x210] sm:$0xff]
      %v256 = vld [vmem:[%s158 + $0x218] sm:$0xf]
      %v257 = vld [vmem:[%s158 + $0x21c] sm:$0xff]
      %v258 = vld [vmem:[%s158 + $0x224] sm:$0xf]
      %v259 = vld [vmem:[%s158 + $0x228] sm:$0xff]
      %v260 = vld [vmem:[%s158 + $0x230] sm:$0xf]
      %v261 = vld [vmem:[%s158 + $0x234] sm:$0xff]
      %v262 = vld [vmem:[%s158 + $0x23c] sm:$0xf]
      %v265 = vunpack.c.l.b16 %v165
      %v266 = vunpack.c.h.b16 %v165
      %v267 = vunpack.c.l.b16 %v166
      %v268 = vpack.c.b16 %v265, %v265
      %v269 = vpack.c.b16 %v266, %v266
      %v270 = vpack.c.b16 %v267, %v267
      %v370 = vunpack.c.l.b16 %v167
      %v371 = vunpack.c.h.b16 %v167
      %v372 = vunpack.c.l.b16 %v168
      %v373 = vunpack.c.l.b16 %v169
      %v374 = vunpack.c.h.b16 %v169
      %v375 = vunpack.c.l.b16 %v170
      %v376 = vunpack.c.l.b16 %v171
      %v377 = vunpack.c.h.b16 %v171
      %v378 = vunpack.c.l.b16 %v172
      %v379 = vunpack.c.l.b16 %v173
      %v380 = vunpack.c.h.b16 %v173
      %v381 = vunpack.c.l.b16 %v174
      %v382 = vunpack.c.l.b16 %v175
      %v383 = vunpack.c.h.b16 %v175
      %v384 = vunpack.c.l.b16 %v176
      %v385 = vunpack.c.l.b16 %v177
      %v386 = vunpack.c.h.b16 %v177
      %v387 = vunpack.c.l.b16 %v178
      %v388 = vunpack.c.l.b16 %v179
      %v389 = vunpack.c.h.b16 %v179
      %v390 = vunpack.c.l.b16 %v180
      %v391 = vunpack.c.l.b16 %v181
      %v392 = vunpack.c.h.b16 %v181
      %v393 = vunpack.c.l.b16 %v182
      %v394 = vunpack.c.l.b16 %v183
      %v395 = vunpack.c.h.b16 %v183
      %v396 = vunpack.c.l.b16 %v184
      %v397 = vunpack.c.l.b16 %v185
      %v398 = vunpack.c.h.b16 %v185
      %v399 = vunpack.c.l.b16 %v186
      %v400 = vunpack.c.l.b16 %v187
      %v401 = vunpack.c.h.b16 %v187
      %v402 = vunpack.c.l.b16 %v188
      %v403 = vunpack.c.l.b16 %v189
      %v404 = vunpack.c.h.b16 %v189
      %v405 = vunpack.c.l.b16 %v190
      %v406 = vunpack.c.l.b16 %v191
      %v407 = vunpack.c.h.b16 %v191
      %v408 = vunpack.c.l.b16 %v192
      %v409 = vunpack.c.l.b16 %v193
      %v410 = vunpack.c.h.b16 %v193
      %v411 = vunpack.c.l.b16 %v194
      %v412 = vunpack.c.l.b16 %v195
      %v413 = vunpack.c.h.b16 %v195
      %v414 = vunpack.c.l.b16 %v196
      %v415 = vunpack.c.l.b16 %v197
      %v416 = vunpack.c.h.b16 %v197
      %v417 = vunpack.c.l.b16 %v198
      %v418 = vunpack.c.l.b16 %v199
      %v419 = vunpack.c.h.b16 %v199
      %v420 = vunpack.c.l.b16 %v200
      %v421 = vunpack.c.l.b16 %v201
      %v422 = vunpack.c.h.b16 %v201
      %v423 = vunpack.c.l.b16 %v202
      %v424 = vunpack.c.l.b16 %v203
      %v425 = vunpack.c.h.b16 %v203
      %v426 = vunpack.c.l.b16 %v204
      %v427 = vunpack.c.l.b16 %v205
      %v428 = vunpack.c.h.b16 %v205
      %v429 = vunpack.c.l.b16 %v206
      %v430 = vunpack.c.l.b16 %v207
      %v431 = vunpack.c.h.b16 %v207
      %v432 = vunpack.c.l.b16 %v208
      %v433 = vunpack.c.l.b16 %v209
      %v434 = vunpack.c.h.b16 %v209
      %v435 = vunpack.c.l.b16 %v210
      %v436 = vunpack.c.l.b16 %v211
      %v437 = vunpack.c.h.b16 %v211
      %v438 = vunpack.c.l.b16 %v212
      %v439 = vunpack.c.l.b16 %v213
      %v440 = vunpack.c.h.b16 %v213
      %v441 = vunpack.c.l.b16 %v214
      %v442 = vunpack.c.l.b16 %v215
      %v443 = vunpack.c.h.b16 %v215
      %v444 = vunpack.c.l.b16 %v216
      %v445 = vunpack.c.l.b16 %v217
      %v446 = vunpack.c.h.b16 %v217
      %v447 = vunpack.c.l.b16 %v218
      %v448 = vunpack.c.l.b16 %v219
      %v449 = vunpack.c.h.b16 %v219
      %v450 = vunpack.c.l.b16 %v220
      %v451 = vunpack.c.l.b16 %v221
      %v452 = vunpack.c.h.b16 %v221
      %v453 = vunpack.c.l.b16 %v222
      %v454 = vunpack.c.l.b16 %v223
      %v455 = vunpack.c.h.b16 %v223
      %v456 = vunpack.c.l.b16 %v224
      %v457 = vunpack.c.l.b16 %v225
      %v458 = vunpack.c.h.b16 %v225
      %v459 = vunpack.c.l.b16 %v226
      %v460 = vunpack.c.l.b16 %v227
      %v461 = vunpack.c.h.b16 %v227
      %v462 = vunpack.c.l.b16 %v228
      %v463 = vunpack.c.l.b16 %v229
      %v464 = vunpack.c.h.b16 %v229
      %v465 = vunpack.c.l.b16 %v230
      %v466 = vunpack.c.l.b16 %v231
      %v467 = vunpack.c.h.b16 %v231
      %v468 = vunpack.c.l.b16 %v232
      %v469 = vunpack.c.l.b16 %v233
      %v470 = vunpack.c.h.b16 %v233
      %v471 = vunpack.c.l.b16 %v234
      %v472 = vunpack.c.l.b16 %v235
      %v473 = vunpack.c.h.b16 %v235
      %v474 = vunpack.c.l.b16 %v236
      %v475 = vunpack.c.l.b16 %v237
      %v476 = vunpack.c.h.b16 %v237
      %v477 = vunpack.c.l.b16 %v238
      %v478 = vunpack.c.l.b16 %v239
      %v479 = vunpack.c.h.b16 %v239
      %v480 = vunpack.c.l.b16 %v240
      %v481 = vunpack.c.l.b16 %v241
      %v482 = vunpack.c.h.b16 %v241
      %v483 = vunpack.c.l.b16 %v242
      %v484 = vunpack.c.l.b16 %v243
      %v485 = vunpack.c.h.b16 %v243
      %v486 = vunpack.c.l.b16 %v244
      %v487 = vunpack.c.l.b16 %v245
      %v488 = vunpack.c.h.b16 %v245
      %v489 = vunpack.c.l.b16 %v246
      %v490 = vunpack.c.l.b16 %v247
      %v491 = vunpack.c.h.b16 %v247
      %v492 = vunpack.c.l.b16 %v248
      %v493 = vunpack.c.l.b16 %v249
      %v494 = vunpack.c.h.b16 %v249
      %v495 = vunpack.c.l.b16 %v250
      %v496 = vunpack.c.l.b16 %v251
      %v497 = vunpack.c.h.b16 %v251
      %v498 = vunpack.c.l.b16 %v252
      %v499 = vunpack.c.l.b16 %v253
      %v500 = vunpack.c.h.b16 %v253
      %v501 = vunpack.c.l.b16 %v254
      %v502 = vunpack.c.l.b16 %v255
      %v503 = vunpack.c.h.b16 %v255
      %v504 = vunpack.c.l.b16 %v256
      %v505 = vunpack.c.l.b16 %v257
      %v506 = vunpack.c.h.b16 %v257
      %v507 = vunpack.c.l.b16 %v258
      %v508 = vunpack.c.l.b16 %v259
      %v509 = vunpack.c.h.b16 %v259
      %v510 = vunpack.c.l.b16 %v260
      %v511 = vunpack.c.l.b16 %v261
      %v512 = vunpack.c.h.b16 %v261
      %v513 = vunpack.c.l.b16 %v262
      %v514 = vpack.c.b16 %v373, %v370
      %v515 = vpack.c.b16 %v374, %v371
      %v516 = vpack.c.b16 %v375, %v372
      %v517 = vpack.c.b16 %v379, %v376
      %v518 = vpack.c.b16 %v380, %v377
      %v519 = vpack.c.b16 %v381, %v378
      %v520 = vpack.c.b16 %v385, %v382
      %v521 = vpack.c.b16 %v386, %v383
      %v522 = vpack.c.b16 %v387, %v384
      %v523 = vpack.c.b16 %v391, %v388
      %v524 = vpack.c.b16 %v392, %v389
      %v525 = vpack.c.b16 %v393, %v390
      %v526 = vpack.c.b16 %v397, %v394
      %v527 = vpack.c.b16 %v398, %v395
      %v528 = vpack.c.b16 %v399, %v396
      %v529 = vpack.c.b16 %v403, %v400
      %v530 = vpack.c.b16 %v404, %v401
      %v531 = vpack.c.b16 %v405, %v402
      %v532 = vpack.c.b16 %v409, %v406
      %v533 = vpack.c.b16 %v410, %v407
      %v534 = vpack.c.b16 %v411, %v408
      %v535 = vpack.c.b16 %v415, %v412
      %v536 = vpack.c.b16 %v416, %v413
      %v537 = vpack.c.b16 %v417, %v414
      %v538 = vpack.c.b16 %v421, %v418
      %v539 = vpack.c.b16 %v422, %v419
      %v540 = vpack.c.b16 %v423, %v420
      %v541 = vpack.c.b16 %v427, %v424
      %v542 = vpack.c.b16 %v428, %v425
      %v543 = vpack.c.b16 %v429, %v426
      %v544 = vpack.c.b16 %v433, %v430
      %v545 = vpack.c.b16 %v434, %v431
      %v546 = vpack.c.b16 %v435, %v432
      %v547 = vpack.c.b16 %v439, %v436
      %v548 = vpack.c.b16 %v440, %v437
      %v549 = vpack.c.b16 %v441, %v438
      %v550 = vpack.c.b16 %v445, %v442
      %v551 = vpack.c.b16 %v446, %v443
      %v552 = vpack.c.b16 %v447, %v444
      %v553 = vpack.c.b16 %v451, %v448
      %v554 = vpack.c.b16 %v452, %v449
      %v555 = vpack.c.b16 %v453, %v450
      %v556 = vpack.c.b16 %v457, %v454
      %v557 = vpack.c.b16 %v458, %v455
      %v558 = vpack.c.b16 %v459, %v456
      %v559 = vpack.c.b16 %v463, %v460
      %v560 = vpack.c.b16 %v464, %v461
      %v561 = vpack.c.b16 %v465, %v462
      %v562 = vpack.c.b16 %v469, %v466
      %v563 = vpack.c.b16 %v470, %v467
      %v564 = vpack.c.b16 %v471, %v468
      %v565 = vpack.c.b16 %v475, %v472
      %v566 = vpack.c.b16 %v476, %v473
      %v567 = vpack.c.b16 %v477, %v474
      %v568 = vpack.c.b16 %v481, %v478
      %v569 = vpack.c.b16 %v482, %v479
      %v570 = vpack.c.b16 %v483, %v480
      %v571 = vpack.c.b16 %v487, %v484
      %v572 = vpack.c.b16 %v488, %v485
      %v573 = vpack.c.b16 %v489, %v486
      %v574 = vpack.c.b16 %v493, %v490
      %v575 = vpack.c.b16 %v494, %v491
      %v576 = vpack.c.b16 %v495, %v492
      %v577 = vpack.c.b16 %v499, %v496
      %v578 = vpack.c.b16 %v500, %v497
      %v579 = vpack.c.b16 %v501, %v498
      %v580 = vpack.c.b16 %v505, %v502
      %v581 = vpack.c.b16 %v506, %v503
      %v582 = vpack.c.b16 %v507, %v504
      %v583 = vpack.c.b16 %v511, %v508
      %v584 = vpack.c.b16 %v512, %v509
      %v585 = vpack.c.b16 %v513, %v510
      %658 = vmatprep.subr.bf16.mxu0 %v515
      %659 = vmatpush1.bf16.msra.mxu0 %v514
      %660 = vmatprep.subr.bf16.mxu0 %v518
      %661 = vmatpush1.bf16.msra.mxu0 %v517
      %662 = vmatprep.subr.bf16.mxu0 %v521
      %663 = vmatpush1.bf16.msra.mxu0 %v520
      %664 = vmatprep.subr.bf16.mxu0 %v524
      %665 = vmatpush1.bf16.msra.mxu0 %v523
      %666 = vmatprep.subr.bf16.mxu0 %v527
      %667 = vmatpush1.bf16.msra.mxu0 %v526
      %668 = vmatprep.subr.bf16.mxu0 %v530
      %669 = vmatpush1.bf16.msra.mxu0 %v529
      %670 = vmatprep.subr.bf16.mxu0 %v533
      %671 = vmatpush1.bf16.msra.mxu0 %v532
      %672 = vmatprep.subr.bf16.mxu0 %v536
      %673 = vmatpush1.bf16.msra.mxu0 %v535
      %674 = vmatprep.subr.bf16.mxu0 %v539
      %675 = vmatpush1.bf16.msra.mxu0 %v538
      %676 = vmatprep.subr.bf16.mxu0 %v542
      %677 = vmatpush1.bf16.msra.mxu0 %v541
      %678 = vmatprep.subr.bf16.mxu0 %v545
      %679 = vmatpush1.bf16.msra.mxu0 %v544
      %680 = vmatprep.subr.bf16.mxu0 %v548
      %681 = vmatpush1.bf16.msra.mxu0 %v547
      %682 = vmatprep.subr.bf16.mxu0 %v551
      %683 = vmatpush1.bf16.msra.mxu0 %v550
      %684 = vmatprep.subr.bf16.mxu0 %v554
      %685 = vmatpush1.bf16.msra.mxu0 %v553
      %686 = vmatprep.subr.bf16.mxu0 %v557
      %687 = vmatpush1.bf16.msra.mxu0 %v556
      %688 = vmatprep.subr.bf16.mxu0 %v560
      %689 = vmatpush1.bf16.msra.mxu0 %v559
      %690 = vmatprep.mubr.bf16.mxu0 %v269
      %691 = vmatmul.mubr.bf16.gmra.mrb[0].mxu0 %v268
      %v692 = vpop.f32.mrb[0].mxu0
      %v693 = vadd.f32 0.0, %v692
      %v694 = vpop.f32.mrb[0].mxu0
      %v695 = vadd.f32 0.0, %v694
      %v696 = vpop.f32.mrb[0].mxu0
      %v697 = vpop.f32.mrb[0].mxu0
      %698 = vdwg.mxu0
      %699 = vmatprep.subr.bf16.mxu0 %v563
      %700 = vmatpush1.bf16.msra.mxu0 %v562
      %701 = vmatprep.subr.bf16.mxu0 %v566
      %702 = vmatpush1.bf16.msra.mxu0 %v565
      %703 = vmatprep.subr.bf16.mxu0 %v569
      %704 = vmatpush1.bf16.msra.mxu0 %v568
      %705 = vmatprep.subr.bf16.mxu0 %v572
      %706 = vmatpush1.bf16.msra.mxu0 %v571
      %707 = vmatprep.subr.bf16.mxu0 %v575
      %708 = vmatpush1.bf16.msra.mxu0 %v574
      %709 = vmatprep.subr.bf16.mxu0 %v578
      %710 = vmatpush1.bf16.msra.mxu0 %v577
      %711 = vmatprep.subr.bf16.mxu0 %v581
      %712 = vmatpush1.bf16.msra.mxu0 %v580
      %713 = vmatprep.subr.bf16.mxu0 %v584
      %714 = vmatpush1.bf16.msra.mxu0 %v583
      %715 = vmatprep.subr.bf16.mxu0 0
      %716 = vmatpush1.bf16.msra.mxu0 0
      %717 = vmatprep.subr.bf16.mxu0 0
      %718 = vmatpush1.bf16.msra.mxu0 0
      %719 = vmatprep.subr.bf16.mxu0 0
      %720 = vmatpush1.bf16.msra.mxu0 0
      %721 = vmatprep.subr.bf16.mxu0 0
      %722 = vmatpush1.bf16.msra.mxu0 0
      %723 = vmatprep.subr.bf16.mxu0 0
      %724 = vmatpush1.bf16.msra.mxu0 0
      %725 = vmatprep.subr.bf16.mxu0 0
      %726 = vmatpush1.bf16.msra.mxu0 0
      %727 = vmatprep.subr.bf16.mxu0 0
      %728 = vmatpush1.bf16.msra.mxu0 0
      %729 = vmatprep.subr.bf16.mxu0 0
      %730 = vmatpush1.bf16.msra.mxu0 0
      %731 = vmatprep.mubr.bf16.mxu0 0
      %732 = vmatmul.mubr.bf16.gmra.mrb[0].mxu0 %v270
      %v733 = vpop.f32.mrb[0].mxu0
      %v734 = vadd.f32 %v693, %v733
      %v735 = vpop.f32.mrb[0].mxu0
      %v736 = vadd.f32 %v695, %v735
      %v737 = vpop.f32.mrb[0].mxu0
      %v738 = vpop.f32.mrb[0].mxu0
      %739 = vdwg.mxu0
      %740 = vmatprep.subr.bf16.mxu0 0
      %741 = vmatpush1.bf16.msra.mxu0 %v516
      %742 = vmatprep.subr.bf16.mxu0 0
      %743 = vmatpush1.bf16.msra.mxu0 %v519
      %744 = vmatprep.subr.bf16.mxu0 0
      %745 = vmatpush1.bf16.msra.mxu0 %v522
      %746 = vmatprep.subr.bf16.mxu0 0
      %747 = vmatpush1.bf16.msra.mxu0 %v525
      %748 = vmatprep.subr.bf16.mxu0 0
      %749 = vmatpush1.bf16.msra.mxu0 %v528
      %750 = vmatprep.subr.bf16.mxu0 0
      %751 = vmatpush1.bf16.msra.mxu0 %v531
      %752 = vmatprep.subr.bf16.mxu0 0
      %753 = vmatpush1.bf16.msra.mxu0 %v534
      %754 = vmatprep.subr.bf16.mxu0 0
      %755 = vmatpush1.bf16.msra.mxu0 %v537
      %756 = vmatprep.subr.bf16.mxu0 0
      %757 = vmatpush1.bf16.msra.mxu0 %v540
      %758 = vmatprep.subr.bf16.mxu0 0
      %759 = vmatpush1.bf16.msra.mxu0 %v543
      %760 = vmatprep.subr.bf16.mxu0 0
      %761 = vmatpush1.bf16.msra.mxu0 %v546
      %762 = vmatprep.subr.bf16.mxu0 0
      %763 = vmatpush1.bf16.msra.mxu0 %v549
      %764 = vmatprep.subr.bf16.mxu0 0
      %765 = vmatpush1.bf16.msra.mxu0 %v552
      %766 = vmatprep.subr.bf16.mxu0 0
      %767 = vmatpush1.bf16.msra.mxu0 %v555
      %768 = vmatprep.subr.bf16.mxu0 0
      %769 = vmatpush1.bf16.msra.mxu0 %v558
      %770 = vmatprep.subr.bf16.mxu0 0
      %771 = vmatpush1.bf16.msra.mxu0 %v561
      %772 = vmatprep.mubr.bf16.mxu0 %v269
      %773 = vmatmul.mubr.bf16.gmra.mrb[0].mxu0 %v268
      %v774 = vpop.f32.mrb[0].mxu0
      %v775 = vadd.f32 0.0, %v774
      %v776 = vpop.f32.mrb[0].mxu0
      %v777 = vpop.f32.mrb[0].mxu0
      %v778 = vpop.f32.mrb[0].mxu0
      %779 = vdwg.mxu0
      %780 = vmatprep.subr.bf16.mxu0 0
      %781 = vmatpush1.bf16.msra.mxu0 %v564
      %782 = vmatprep.subr.bf16.mxu0 0
      %783 = vmatpush1.bf16.msra.mxu0 %v567
      %784 = vmatprep.subr.bf16.mxu0 0
      %785 = vmatpush1.bf16.msra.mxu0 %v570
      %786 = vmatprep.subr.bf16.mxu0 0
      %787 = vmatpush1.bf16.msra.mxu0 %v573
      %788 = vmatprep.subr.bf16.mxu0 0
      %789 = vmatpush1.bf16.msra.mxu0 %v576
      %790 = vmatprep.subr.bf16.mxu0 0
      %791 = vmatpush1.bf16.msra.mxu0 %v579
      %792 = vmatprep.subr.bf16.mxu0 0
      %793 = vmatpush1.bf16.msra.mxu0 %v582
      %794 = vmatprep.subr.bf16.mxu0 0
      %795 = vmatpush1.bf16.msra.mxu0 %v585
      %796 = vmatprep.subr.bf16.mxu0 0
      %797 = vmatpush1.bf16.msra.mxu0 0
      %798 = vmatprep.subr.bf16.mxu0 0
      %799 = vmatpush1.bf16.msra.mxu0 0
      %800 = vmatprep.subr.bf16.mxu0 0
      %801 = vmatpush1.bf16.msra.mxu0 0
      %802 = vmatprep.subr.bf16.mxu0 0
      %803 = vmatpush1.bf16.msra.mxu0 0
      %804 = vmatprep.subr.bf16.mxu0 0
      %805 = vmatpush1.bf16.msra.mxu0 0
      %806 = vmatprep.subr.bf16.mxu0 0
      %807 = vmatpush1.bf16.msra.mxu0 0
      %808 = vmatprep.subr.bf16.mxu0 0
      %809 = vmatpush1.bf16.msra.mxu0 0
      %810 = vmatprep.subr.bf16.mxu0 0
      %811 = vmatpush1.bf16.msra.mxu0 0
      %812 = vmatprep.mubr.bf16.mxu0 0
      %813 = vmatmul.mubr.bf16.gmra.mrb[0].mxu0 %v270
      %v814 = vpop.f32.mrb[0].mxu0
      %v815 = vadd.f32 %v775, %v814
      %v816 = vpop.f32.mrb[0].mxu0
      %v817 = vpop.f32.mrb[0].mxu0
      %v818 = vpop.f32.mrb[0].mxu0
      %819 = vdwg.mxu0
      %820 = vst [vmem:[%s163] sm:$0xff] %v734
      %821 = vst [vmem:[%s163 + $0x8] sm:$0xff] %v736
      %822 = vst [vmem:[%s163 + $0x10] sm:$0xff] %v815
      %p823 = scmp.lt.s32.totalorder %s13, 1
      %s824 = scalar_select %p823, %s13, 1
      %s825 = smul.addr %s824, 3
      %s826 = smul.addr %s825, 8
      %s827 = scalar_lea.vmem %s2, %s826
      // Predicated region
      $region29: #{_lambda_.23} parent=27 // pred_check
        %p828 = pneg %p83
      $region30: #{_lambda_.23} parent=27 // pred_check_branch
        %830 = sbr.rel (%p828) target = $region32
      $region31: #{_lambda_.23} parent=27 // pred_region
        _
      $region32: #{_lambda_.23} parent=27 // pred_fallthru
        _
    $region28: #{_lambda_.23} parent=5 // pred_fallthru
      _
    %p831 = scmp.le.s32.totalorder 2, %s8
    // Predicated region
    $region33: #{_lambda_.23} parent=5 // pred_check
      %p832 = pneg %p831
    $region34: #{_lambda_.23} parent=5 // pred_check_branch
      %834 = sbr.rel (%p832) target = $region36
    $region35: #{_lambda_.23} parent=5 // pred_region
      %s835 = ssub.s32 %s8, 2
      // Predicated region
      $region37: #{_lambda_.23} parent=35 // pred_check
        %p836 = pneg %p89
      $region38: #{_lambda_.23} parent=35 // pred_check_branch
        %838 = sbr.rel (%p836) target = $region40
      $region39: #{_lambda_.23} parent=35 // pred_region
        %p839 = scmp.lt.s32.totalorder %s14, 1
        %s840 = scalar_select %p839, %s14, 1
        %s841 = smul.addr %s840, 3
        %s842 = smul.addr %s841, 8
        %s843 = scalar_lea.vmem %s2, %s842
      $region40: #{_lambda_.23} parent=35 // pred_fallthru
        _
    $region36: #{_lambda_.23} parent=5 // pred_fallthru
      _
  $region6: #{_lambda_.23} parent=0 // loop_footer
    %s12 = sadd.s32 1, %s8
  $region7: #{_lambda_.23} parent=0 // loop_footer_branch
    %7 = sbr.rel target = $region3
  $region8: #{_lambda_.23} parent=0 // loop_exit
    _

// kernel: _lambda_.25
$region0: #{_lambda_.25}
  #allocation0 [shape = 'u32[]', space=smem, size = 0x4, offset = 0x4, fixed_abs, tag = 'smem constant byte address 0x4 - core index']
  #allocation1 [shape = 'u32[144,128]{1,0:T(1,128)}', space=vmem, size = 0x12000, scoped, tag = 'internal scratch']
  %s0 = inlined_call_operand.vmem [shape: bf16[1,8,128], index: 0, kind: input, shape index: {}]
  %s1 = inlined_call_operand.vmem [shape: bf16[1,128,128], index: 1, kind: input, shape index: {}]
  %s2 = inlined_call_operand.vmem [shape: f32[1,8,128], index: 2, kind: output, shape index: {}]
  %s3 = sld [smem:[#allocation0]]
  $region18: #{_lambda_.25} parent=0
    _
  %s5 = ssub.s32 1, %s3
  %s6 = scalar_select 0, %s5, %s3
  // Predicated region
  $region2: #{_lambda_.25} parent=0 // pred_check
    _
  $region3: #{_lambda_.25} parent=0 // pred_check_branch
    %8 = sbr.rel (0) target = $region5
  $region4: #{_lambda_.25} parent=0 // pred_region
    _
  $region5: #{_lambda_.25} parent=0 // pred_fallthru
    _
  // Predicated region
  $region6: #{_lambda_.25} parent=0 // pred_check
    _
  $region7: #{_lambda_.25} parent=0 // pred_check_branch
    %10 = sbr.rel (0) target = $region9
  $region8: #{_lambda_.25} parent=0 // pred_region
    _
  $region9: #{_lambda_.25} parent=0 // pred_fallthru
    _
  %v12 = vld [vmem:[%s0] sm:$0xf]
  %v13 = vld [vmem:[%s1] sm:$0xf]
  %v14 = vld [vmem:[%s1 + $0x4] sm:$0xf]
  %v15 = vld [vmem:[%s1 + $0x8] sm:$0xf]
  %v16 = vld [vmem:[%s1 + $0xc] sm:$0xf]
  %v17 = vld [vmem:[%s1 + $0x10] sm:$0xf]
  %v18 = vld [vmem:[%s1 + $0x14] sm:$0xf]
  %v19 = vld [vmem:[%s1 + $0x18] sm:$0xf]
  %v20 = vld [vmem:[%s1 + $0x1c] sm:$0xf]
  %v21 = vld [vmem:[%s1 + $0x20] sm:$0xf]
  %v22 = vld [vmem:[%s1 + $0x24] sm:$0xf]
  %v23 = vld [vmem:[%s1 + $0x28] sm:$0xf]
  %v24 = vld [vmem:[%s1 + $0x2c] sm:$0xf]
  %v25 = vld [vmem:[%s1 + $0x30] sm:$0xf]
  %v26 = vld [vmem:[%s1 + $0x34] sm:$0xf]
  %v27 = vld [vmem:[%s1 + $0x38] sm:$0xf]
  %v28 = vld [vmem:[%s1 + $0x3c] sm:$0xf]
  %v45 = vunpack.c.l.b16 %v13
  %v46 = vunpack.c.l.b16 %v14
  %v47 = vunpack.c.l.b16 %v15
  %v48 = vunpack.c.l.b16 %v16
  %v49 = vunpack.c.l.b16 %v17
  %v50 = vunpack.c.l.b16 %v18
  %v51 = vunpack.c.l.b16 %v19
  %v52 = vunpack.c.l.b16 %v20
  %v53 = vunpack.c.l.b16 %v21
  %v54 = vunpack.c.l.b16 %v22
  %v55 = vunpack.c.l.b16 %v23
  %v56 = vunpack.c.l.b16 %v24
  %v57 = vunpack.c.l.b16 %v25
  %v58 = vunpack.c.l.b16 %v26
  %v59 = vunpack.c.l.b16 %v27
  %v60 = vunpack.c.l.b16 %v28
  %v61 = vpack.c.b16 %v46, %v45
  %v62 = vpack.c.b16 %v48, %v47
  %v63 = vpack.c.b16 %v50, %v49
  %v64 = vpack.c.b16 %v52, %v51
  %v65 = vpack.c.b16 %v54, %v53
  %v66 = vpack.c.b16 %v56, %v55
  %v67 = vpack.c.b16 %v58, %v57
  %v68 = vpack.c.b16 %v60, %v59
  %77 = vmatprep.subr.bf16.mxu0 0
  %78 = vmatpush1.bf16.msra.mxu0 %v61
  %79 = vmatprep.subr.bf16.mxu0 0
  %80 = vmatpush1.bf16.msra.mxu0 %v62
  %81 = vmatprep.subr.bf16.mxu0 0
  %82 = vmatpush1.bf16.msra.mxu0 %v63
  %83 = vmatprep.subr.bf16.mxu0 0
  %84 = vmatpush1.bf16.msra.mxu0 %v64
  %85 = vmatprep.subr.bf16.mxu0 0
  %86 = vmatpush1.bf16.msra.mxu0 %v65
  %87 = vmatprep.subr.bf16.mxu0 0
  %88 = vmatpush1.bf16.msra.mxu0 %v66
  %89 = vmatprep.subr.bf16.mxu0 0
  %90 = vmatpush1.bf16.msra.mxu0 %v67
  %91 = vmatprep.subr.bf16.mxu0 0
  %92 = vmatpush1.bf16.msra.mxu0 %v68
  %93 = vmatprep.subr.bf16.mxu0 0
  %94 = vmatpush1.bf16.msra.mxu0 0
  %95 = vmatprep.subr.bf16.mxu0 0
  %96 = vmatpush1.bf16.msra.mxu0 0
  %97 = vmatprep.subr.bf16.mxu0 0
  %98 = vmatpush1.bf16.msra.mxu0 0
  %99 = vmatprep.subr.bf16.mxu0 0
  %100 = vmatpush1.bf16.msra.mxu0 0
  %101 = vmatprep.subr.bf16.mxu0 0
  %102 = vmatpush1.bf16.msra.mxu0 0
  %103 = vmatprep.subr.bf16.mxu0 0
  %104 = vmatpush1.bf16.msra.mxu0 0
  %105 = vmatprep.subr.bf16.mxu0 0
  %106 = vmatpush1.bf16.msra.mxu0 0
  %107 = vmatprep.subr.bf16.mxu0 0
  %108 = vmatpush1.bf16.msra.mxu0 0
  %109 = vmatprep.mubr.bf16.mxu0 0
  %110 = vmatmul.mubr.bf16.gmra.mrb[0].mxu0 %v12
  %v111 = vpop.f32.mrb[0].mxu0
  %v112 = vadd.f32 0.0, %v111
  %v113 = vpop.f32.mrb[0].mxu0
  %v114 = vpop.f32.mrb[0].mxu0
  %v115 = vpop.f32.mrb[0].mxu0
  %116 = vdwg.mxu0
  %117 = vst [vmem:[%s2] sm:$0xff] %v112
  // Predicated region
  $region10: #{_lambda_.25} parent=0 // pred_check
    _
  $region11: #{_lambda_.25} parent=0 // pred_check_branch
    %119 = sbr.rel (0) target = $region13
  $region12: #{_lambda_.25} parent=0 // pred_region
    _
  $region13: #{_lambda_.25} parent=0 // pred_fallthru
    _
  // Predicated region
  $region14: #{_lambda_.25} parent=0 // pred_check
    _
  $region15: #{_lambda_.25} parent=0 // pred_check_branch
    %121 = sbr.rel (0) target = $region17
  $region16: #{_lambda_.25} parent=0 // pred_region
    _
  $region17: #{_lambda_.25} parent=0 // pred_fallthru
    _

// kernel: _lambda_.26
$region0: #{_lambda_.26}
  #allocation0 [shape = 'u32[]', space=smem, size = 0x4, offset = 0x4, fixed_abs, tag = 'smem constant byte address 0x4 - core index']
  #allocation1 [shape = 'u32[144,128]{1,0:T(1,128)}', space=vmem, size = 0x12000, scoped, tag = 'internal scratch']
  %s0 = inlined_call_operand.vmem [shape: f32[2,64,8], index: 0, kind: input, shape index: {}]
  %s1 = inlined_call_operand.vmem [shape: f32[1,64], index: 1, kind: input, shape index: {}]
  %s2 = inlined_call_operand.vmem [shape: f32[2,64,8], index: 2, kind: output, shape index: {}]
  %s3 = sld [smem:[#allocation0]]
  $region18: #{_lambda_.26} parent=0
    _
  %s5 = ssub.s32 1, %s3
  %s6 = scalar_select 0, %s5, %s3
  // Predicated region
  $region2: #{_lambda_.26} parent=0 // pred_check
    _
  $region3: #{_lambda_.26} parent=0 // pred_check_branch
    %8 = sbr.rel (0) target = $region5
  $region4: #{_lambda_.26} parent=0 // pred_region
    _
  $region5: #{_lambda_.26} parent=0 // pred_fallthru
    _
  // Predicated region
  $region6: #{_lambda_.26} parent=0 // pred_check
    _
  $region7: #{_lambda_.26} parent=0 // pred_check_branch
    %10 = sbr.rel (0) target = $region9
  $region8: #{_lambda_.26} parent=0 // pred_region
    _
  $region9: #{_lambda_.26} parent=0 // pred_fallthru
    _
  %v11 = vld [vmem:[%s0] sm:$0xff]
  %v12 = vld [vmem:[%s0 + $0x8] sm:$0xff]
  %v13 = vld [vmem:[%s0 + $0x10] sm:$0xff]
  %v14 = vld [vmem:[%s0 + $0x18] sm:$0xff]
  %v15 = vld [vmem:[%s0 + $0x20] sm:$0xff]
  %v16 = vld [vmem:[%s0 + $0x28] sm:$0xff]
  %v17 = vld [vmem:[%s0 + $0x30] sm:$0xff]
  %v18 = vld [vmem:[%s0 + $0x38] sm:$0xff]
  %v19 = vld [vmem:[%s0 + $0x40] sm:$0xff]
  %v20 = vld [vmem:[%s0 + $0x48] sm:$0xff]
  %v21 = vld [vmem:[%s0 + $0x50] sm:$0xff]
  %v22 = vld [vmem:[%s0 + $0x58] sm:$0xff]
  %v23 = vld [vmem:[%s0 + $0x60] sm:$0xff]
  %v24 = vld [vmem:[%s0 + $0x68] sm:$0xff]
  %v25 = vld [vmem:[%s0 + $0x70] sm:$0xff]
  %v26 = vld [vmem:[%s0 + $0x78] sm:$0xff]
  %v27 = vld [vmem:[%s1] sm:$0x1]
  %v28 = vlaneseq
  %v29 = vshrl.u32 %v28, 7
  %v30 = vsub.s32 0, %v29
  %v31 = vrot.slane %v27, %v30
  %33 = vbcast.lane.b32.xlu0 %v31, 256
  %v34 = vpop.permute.xlu0 %33
  %s36 = sor.u32 256, 8
  %37 = vbcast.lane.b32.xlu0 %v31, %s36
  %v38 = vpop.permute.xlu0 %37
  %s40 = sor.u32 256, 16
  %41 = vbcast.lane.b32.xlu0 %v31, %s40
  %v42 = vpop.permute.xlu0 %41
  %s44 = sor.u32 256, 24
  %45 = vbcast.lane.b32.xlu0 %v31, %s44
  %v46 = vpop.permute.xlu0 %45
  %s48 = sor.u32 256, 32
  %49 = vbcast.lane.b32.xlu0 %v31, %s48
  %v50 = vpop.permute.xlu0 %49
  %s52 = sor.u32 256, 40
  %53 = vbcast.lane.b32.xlu0 %v31, %s52
  %v54 = vpop.permute.xlu0 %53
  %s56 = sor.u32 256, 48
  %57 = vbcast.lane.b32.xlu0 %v31, %s56
  %v58 = vpop.permute.xlu0 %57
  %s60 = sor.u32 256, 56
  %61 = vbcast.lane.b32.xlu0 %v31, %s60
  %v62 = vpop.permute.xlu0 %61
  %v63 = vadd.f32 %v11, %v34
  %v64 = vadd.f32 %v12, %v38
  %v65 = vadd.f32 %v13, %v42
  %v66 = vadd.f32 %v14, %v46
  %v67 = vadd.f32 %v15, %v50
  %v68 = vadd.f32 %v16, %v54
  %v69 = vadd.f32 %v17, %v58
  %v70 = vadd.f32 %v18, %v62
  %v71 = vadd.f32 %v19, %v34
  %v72 = vadd.f32 %v20, %v38
  %v73 = vadd.f32 %v21, %v42
  %v74 = vadd.f32 %v22, %v46
  %v75 = vadd.f32 %v23, %v50
  %v76 = vadd.f32 %v24, %v54
  %v77 = vadd.f32 %v25, %v58
  %v78 = vadd.f32 %v26, %v62
  %v79 = vmax.f32 %v63, 0.0
  %v80 = vmax.f32 %v64, 0.0
  %v81 = vmax.f32 %v65, 0.0
  %v82 = vmax.f32 %v66, 0.0
  %v83 = vmax.f32 %v67, 0.0
  %v84 = vmax.f32 %v68, 0.0
  %v85 = vmax.f32 %v69, 0.0
  %v86 = vmax.f32 %v70, 0.0
  %v87 = vmax.f32 %v71, 0.0
  %v88 = vmax.f32 %v72, 0.0
  %v89 = vmax.f32 %v73, 0.0
  %v90 = vmax.f32 %v74, 0.0
  %v91 = vmax.f32 %v75, 0.0
  %v92 = vmax.f32 %v76, 0.0
  %v93 = vmax.f32 %v77, 0.0
  %v94 = vmax.f32 %v78, 0.0
  %vm95 = vcmask 64512
  %96 = vst.msk [vmem:[%s2] sm:$0xff] %vm95, %v79
  %97 = vst.msk [vmem:[%s2 + $0x8] sm:$0xff] %vm95, %v80
  %98 = vst.msk [vmem:[%s2 + $0x10] sm:$0xff] %vm95, %v81
  %99 = vst.msk [vmem:[%s2 + $0x18] sm:$0xff] %vm95, %v82
  %100 = vst.msk [vmem:[%s2 + $0x20] sm:$0xff] %vm95, %v83
  %101 = vst.msk [vmem:[%s2 + $0x28] sm:$0xff] %vm95, %v84
  %102 = vst.msk [vmem:[%s2 + $0x30] sm:$0xff] %vm95, %v85
  %103 = vst.msk [vmem:[%s2 + $0x38] sm:$0xff] %vm95, %v86
  %104 = vst.msk [vmem:[%s2 + $0x40] sm:$0xff] %vm95, %v87
  %105 = vst.msk [vmem:[%s2 + $0x48] sm:$0xff] %vm95, %v88
  %106 = vst.msk [vmem:[%s2 + $0x50] sm:$0xff] %vm95, %v89
  %107 = vst.msk [vmem:[%s2 + $0x58] sm:$0xff] %vm95, %v90
  %108 = vst.msk [vmem:[%s2 + $0x60] sm:$0xff] %vm95, %v91
  %109 = vst.msk [vmem:[%s2 + $0x68] sm:$0xff] %vm95, %v92
  %110 = vst.msk [vmem:[%s2 + $0x70] sm:$0xff] %vm95, %v93
  %111 = vst.msk [vmem:[%s2 + $0x78] sm:$0xff] %vm95, %v94
  // Predicated region
  $region10: #{_lambda_.26} parent=0 // pred_check
    _
  $region11: #{_lambda_.26} parent=0 // pred_check_branch
    %113 = sbr.rel (0) target = $region13
  $region12: #{_lambda_.26} parent=0 // pred_region
    _
  $region13: #{_lambda_.26} parent=0 // pred_fallthru
    _
  // Predicated region
  $region14: #{_lambda_.26} parent=0 // pred_check
    _
  $region15: #{_lambda_.26} parent=0 // pred_check_branch
    %115 = sbr.rel (0) target = $region17
  $region16: #{_lambda_.26} parent=0 // pred_region
    _
  $region17: #{_lambda_.26} parent=0 // pred_fallthru
    _

// kernel: _lambda_.27
$region0: #{_lambda_.27}
  #allocation0 [shape = 'u32[]', space=smem, size = 0x4, offset = 0x4, fixed_abs, tag = 'smem constant byte address 0x4 - core index']
  #allocation1 [shape = 'u32[144,128]{1,0:T(1,128)}', space=vmem, size = 0x12000, scoped, tag = 'internal scratch']
  %s0 = inlined_call_operand.vmem [shape: bf16[1,8,128], index: 0, kind: input, shape index: {}]
  %s1 = inlined_call_operand.vmem [shape: bf16[1,128,256], index: 1, kind: input, shape index: {}]
  %s2 = inlined_call_operand.vmem [shape: f32[1,8,256], index: 2, kind: output, shape index: {}]
  %s3 = sld [smem:[#allocation0]]
  $region18: #{_lambda_.27} parent=0
    _
  %s5 = ssub.s32 1, %s3
  %s6 = scalar_select 0, %s5, %s3
  // Predicated region
  $region2: #{_lambda_.27} parent=0 // pred_check
    _
  $region3: #{_lambda_.27} parent=0 // pred_check_branch
    %8 = sbr.rel (0) target = $region5
  $region4: #{_lambda_.27} parent=0 // pred_region
    _
  $region5: #{_lambda_.27} parent=0 // pred_fallthru
    _
  // Predicated region
  $region6: #{_lambda_.27} parent=0 // pred_check
    _
  $region7: #{_lambda_.27} parent=0 // pred_check_branch
    %10 = sbr.rel (0) target = $region9
  $region8: #{_lambda_.27} parent=0 // pred_region
    _
  $region9: #{_lambda_.27} parent=0 // pred_fallthru
    _
  %v12 = vld [vmem:[%s0] sm:$0xf]
  %v13 = vld [vmem:[%s1] sm:$0xff]
  %v14 = vld [vmem:[%s1 + $0x8] sm:$0xff]
  %v15 = vld [vmem:[%s1 + $0x10] sm:$0xff]
  %v16 = vld [vmem:[%s1 + $0x18] sm:$0xff]
  %v17 = vld [vmem:[%s1 + $0x20] sm:$0xff]
  %v18 = vld [vmem:[%s1 + $0x28] sm:$0xff]
  %v19 = vld [vmem:[%s1 + $0x30] sm:$0xff]
  %v20 = vld [vmem:[%s1 + $0x38] sm:$0xff]
  %v21 = vld [vmem:[%s1 + $0x40] sm:$0xff]
  %v22 = vld [vmem:[%s1 + $0x48] sm:$0xff]
  %v23 = vld [vmem:[%s1 + $0x50] sm:$0xff]
  %v24 = vld [vmem:[%s1 + $0x58] sm:$0xff]
  %v25 = vld [vmem:[%s1 + $0x60] sm:$0xff]
  %v26 = vld [vmem:[%s1 + $0x68] sm:$0xff]
  %v27 = vld [vmem:[%s1 + $0x70] sm:$0xff]
  %v28 = vld [vmem:[%s1 + $0x78] sm:$0xff]
  %v45 = vunpack.c.l.b16 %v13
  %v46 = vunpack.c.h.b16 %v13
  %v47 = vunpack.c.l.b16 %v14
  %v48 = vunpack.c.h.b16 %v14
  %v49 = vunpack.c.l.b16 %v15
  %v50 = vunpack.c.h.b16 %v15
  %v51 = vunpack.c.l.b16 %v16
  %v52 = vunpack.c.h.b16 %v16
  %v53 = vunpack.c.l.b16 %v17
  %v54 = vunpack.c.h.b16 %v17
  %v55 = vunpack.c.l.b16 %v18
  %v56 = vunpack.c.h.b16 %v18
  %v57 = vunpack.c.l.b16 %v19
  %v58 = vunpack.c.h.b16 %v19
  %v59 = vunpack.c.l.b16 %v20
  %v60 = vunpack.c.h.b16 %v20
  %v61 = vunpack.c.l.b16 %v21
  %v62 = vunpack.c.h.b16 %v21
  %v63 = vunpack.c.l.b16 %v22
  %v64 = vunpack.c.h.b16 %v22
  %v65 = vunpack.c.l.b16 %v23
  %v66 = vunpack.c.h.b16 %v23
  %v67 = vunpack.c.l.b16 %v24
  %v68 = vunpack.c.h.b16 %v24
  %v69 = vunpack.c.l.b16 %v25
  %v70 = vunpack.c.h.b16 %v25
  %v71 = vunpack.c.l.b16 %v26
  %v72 = vunpack.c.h.b16 %v26
  %v73 = vunpack.c.l.b16 %v27
  %v74 = vunpack.c.h.b16 %v27
  %v75 = vunpack.c.l.b16 %v28
  %v76 = vunpack.c.h.b16 %v28
  %v77 = vpack.c.b16 %v47, %v45
  %v78 = vpack.c.b16 %v48, %v46
  %v79 = vpack.c.b16 %v51, %v49
  %v80 = vpack.c.b16 %v52, %v50
  %v81 = vpack.c.b16 %v55, %v53
  %v82 = vpack.c.b16 %v56, %v54
  %v83 = vpack.c.b16 %v59, %v57
  %v84 = vpack.c.b16 %v60, %v58
  %v85 = vpack.c.b16 %v63, %v61
  %v86 = vpack.c.b16 %v64, %v62
  %v87 = vpack.c.b16 %v67, %v65
  %v88 = vpack.c.b16 %v68, %v66
  %v89 = vpack.c.b16 %v71, %v69
  %v90 = vpack.c.b16 %v72, %v70
  %v91 = vpack.c.b16 %v75, %v73
  %v92 = vpack.c.b16 %v76, %v74
  %109 = vmatprep.subr.bf16.mxu0 %v78
  %110 = vmatpush1.bf16.msra.mxu0 %v77
  %111 = vmatprep.subr.bf16.mxu0 %v80
  %112 = vmatpush1.bf16.msra.mxu0 %v79
  %113 = vmatprep.subr.bf16.mxu0 %v82
  %114 = vmatpush1.bf16.msra.mxu0 %v81
  %115 = vmatprep.subr.bf16.mxu0 %v84
  %116 = vmatpush1.bf16.msra.mxu0 %v83
  %117 = vmatprep.subr.bf16.mxu0 %v86
  %118 = vmatpush1.bf16.msra.mxu0 %v85
  %119 = vmatprep.subr.bf16.mxu0 %v88
  %120 = vmatpush1.bf16.msra.mxu0 %v87
  %121 = vmatprep.subr.bf16.mxu0 %v90
  %122 = vmatpush1.bf16.msra.mxu0 %v89
  %123 = vmatprep.subr.bf16.mxu0 %v92
  %124 = vmatpush1.bf16.msra.mxu0 %v91
  %125 = vmatprep.subr.bf16.mxu0 0
  %126 = vmatpush1.bf16.msra.mxu0 0
  %127 = vmatprep.subr.bf16.mxu0 0
  %128 = vmatpush1.bf16.msra.mxu0 0
  %129 = vmatprep.subr.bf16.mxu0 0
  %130 = vmatpush1.bf16.msra.mxu0 0
  %131 = vmatprep.subr.bf16.mxu0 0
  %132 = vmatpush1.bf16.msra.mxu0 0
  %133 = vmatprep.subr.bf16.mxu0 0
  %134 = vmatpush1.bf16.msra.mxu0 0
  %135 = vmatprep.subr.bf16.mxu0 0
  %136 = vmatpush1.bf16.msra.mxu0 0
  %137 = vmatprep.subr.bf16.mxu0 0
  %138 = vmatpush1.bf16.msra.mxu0 0
  %139 = vmatprep.subr.bf16.mxu0 0
  %140 = vmatpush1.bf16.msra.mxu0 0
  %141 = vmatprep.mubr.bf16.mxu0 0
  %142 = vmatmul.mubr.bf16.gmra.mrb[0].mxu0 %v12
  %v143 = vpop.f32.mrb[0].mxu0
  %v144 = vadd.f32 0.0, %v143
  %v145 = vpop.f32.mrb[0].mxu0
  %v146 = vadd.f32 0.0, %v145
  %v147 = vpop.f32.mrb[0].mxu0
  %v148 = vpop.f32.mrb[0].mxu0
  %149 = vdwg.mxu0
  %150 = vst [vmem:[%s2] sm:$0xff] %v144
  %151 = vst [vmem:[%s2 + $0x8] sm:$0xff] %v146
  // Predicated region
  $region10: #{_lambda_.27} parent=0 // pred_check
    _
  $region11: #{_lambda_.27} parent=0 // pred_check_branch
    %153 = sbr.rel (0) target = $region13
  $region12: #{_lambda_.27} parent=0 // pred_region
    _
  $region13: #{_lambda_.27} parent=0 // pred_fallthru
    _
  // Predicated region
  $region14: #{_lambda_.27} parent=0 // pred_check
    _
  $region15: #{_lambda_.27} parent=0 // pred_check_branch
    %155 = sbr.rel (0) target = $region17
  $region16: #{_lambda_.27} parent=0 // pred_region
    _
  $region17: #{_lambda_.27} parent=0 // pred_fallthru
    _

// kernel: _lambda_.29
$region0: #{_lambda_.29}
  #allocation0 [shape = 'u32[]', space=smem, size = 0x4, offset = 0x4, fixed_abs, tag = 'smem constant byte address 0x4 - core index']
  #allocation1 [shape = 'u32[144,128]{1,0:T(1,128)}', space=vmem, size = 0x12000, scoped, tag = 'internal scratch']
  #allocation2 [shape = 'f32[1,1]{1,0:T(1,128)S(1)}', space=vmem, size = 0x200, scoped, tag = 'scoped memory for _lambda_.29']
  %s0 = inlined_call_operand.vmem [shape: f32[2,8,128], index: 0, kind: input, shape index: {}]
  %s1 = inlined_call_operand.vmem [shape: f32[1,8,1], index: 1, kind: input, shape index: {}]
  %s2 = inlined_call_operand.vmem [shape: f32[1,128], index: 2, kind: input, shape index: {}]
  %s3 = inlined_call_operand.vmem [shape: f32[1,128], index: 3, kind: input, shape index: {}]
  %s4 = inlined_call_operand.vmem [shape: f32[1,128], index: 4, kind: input, shape index: {}]
  %s5 = inlined_call_operand.<no memory space> [shape: f32[1,1], index: 5, kind: input, shape index: {}]
  %s6 = inlined_call_operand.vmem [shape: f32[2,1], index: 6, kind: output, shape index: {}]
  %s7 = sld [smem:[#allocation0]]
  $region34: #{_lambda_.29} parent=0
    _
  %s9 = ssub.s32 1, %s7
  %s10 = scalar_select 0, %s9, %s7
  %v11 = vstv %s5
  %12 = vst [vmem:[#allocation2] sm:$0x1] %v11
  // Predicated region
  $region2: #{_lambda_.29} parent=0 // pred_check
    _
  $region3: #{_lambda_.29} parent=0 // pred_check_branch
    %14 = sbr.rel (0) target = $region5
  $region4: #{_lambda_.29} parent=0 // pred_region
    _
  $region5: #{_lambda_.29} parent=0 // pred_fallthru
    _
  // Predicated region
  $region6: #{_lambda_.29} parent=0 // pred_check
    _
  $region7: #{_lambda_.29} parent=0 // pred_check_branch
    %16 = sbr.rel (0) target = $region9
  $region8: #{_lambda_.29} parent=0 // pred_region
    _
  $region9: #{_lambda_.29} parent=0 // pred_fallthru
    _
  // Predicated region
  $region10: #{_lambda_.29} parent=0 // pred_check
    _
  $region11: #{_lambda_.29} parent=0 // pred_check_branch
    %18 = sbr.rel (0) target = $region13
  $region12: #{_lambda_.29} parent=0 // pred_region
    _
  $region13: #{_lambda_.29} parent=0 // pred_fallthru
    _
  // Predicated region
  $region14: #{_lambda_.29} parent=0 // pred_check
    _
  $region15: #{_lambda_.29} parent=0 // pred_check_branch
    %20 = sbr.rel (0) target = $region17
  $region16: #{_lambda_.29} parent=0 // pred_region
    _
  $region17: #{_lambda_.29} parent=0 // pred_fallthru
    _
  // Predicated region
  $region18: #{_lambda_.29} parent=0 // pred_check
    _
  $region19: #{_lambda_.29} parent=0 // pred_check_branch
    %22 = sbr.rel (0) target = $region21
  $region20: #{_lambda_.29} parent=0 // pred_region
    _
  $region21: #{_lambda_.29} parent=0 // pred_fallthru
    _
  // Predicated region
  $region22: #{_lambda_.29} parent=0 // pred_check
    _
  $region23: #{_lambda_.29} parent=0 // pred_check_branch
    %24 = sbr.rel (0) target = $region25
  $region24: #{_lambda_.29} parent=0 // pred_region
    _
  $region25: #{_lambda_.29} parent=0 // pred_fallthru
    _
  %v25 = vld [vmem:[%s0] sm:$0xff]
  %v26 = vld [vmem:[%s0 + $0x8] sm:$0xff]
  %v27 = vld [vmem:[%s1] sm:$0xff]
  %29 = vset.pattern.permute.xlu0 0
  %30 = vperm.xlu0 %29, %v27
  %v31 = vpop.permute.xlu0 %30
  %v33 = vmul.f32 %v25, %v31
  %v34 = vmul.f32 %v26, %v31
  %v35 = vrot.slane %v33, 4
  %v36 = vadd.f32 %v33, %v35
  %v37 = vrot.slane %v36, 2
  %v38 = vadd.f32 %v36, %v37
  %v39 = vrot.slane %v38, 1
  %v40 = vadd.f32 %v38, %v39
  %v41 = vrot.slane %v34, 4
  %v42 = vadd.f32 %v34, %v41
  %v43 = vrot.slane %v42, 2
  %v44 = vadd.f32 %v42, %v43
  %v45 = vrot.slane %v44, 1
  %v46 = vadd.f32 %v44, %v45
  %v47 = vld [vmem:[%s2] sm:$0x1]
  %v49 = vlaneseq
  %v50 = vshrl.u32 %v49, 7
  %v51 = vsub.s32 0, %v50
  %v52 = vrot.slane %v47, %v51
  %v54 = vmul.f32 %v40, %v52
  %v55 = vmul.f32 %v46, %v52
  %v56 = vld [vmem:[%s3] sm:$0x1]
  %v58 = vlaneseq
  %v59 = vshrl.u32 %v58, 7
  %v60 = vsub.s32 0, %v59
  %v61 = vrot.slane %v56, %v60
  %v63 = vadd.f32 %v54, %v61
  %v64 = vadd.f32 %v55, %v61
  %v65 = vld [vmem:[%s4] sm:$0x1]
  %v67 = vlaneseq
  %v68 = vshrl.u32 %v67, 7
  %v69 = vsub.s32 0, %v68
  %v70 = vrot.slane %v65, %v69
  %v72 = vmul.f32 %v63, %v70
  %v73 = vmul.f32 %v64, %v70
  %v76 = vrot.slane %v73, 7
  %vm77 = vcmask 1041409
  %v78 = vsel %vm77, %v76, %v72
  %vm80 = vcmask 1041408
  %v81 = vsel %vm80, %v78, 0.0
  %82 = vadd.xlane.f32.xlu0 %v81
  %v83 = vpop.xlane.xlu0 %82
  %v84 = vld [vmem:[#allocation2] sm:$0x1]
  %v86 = vlaneseq
  %v87 = vshrl.u32 %v86, 7
  %v88 = vsub.s32 0, %v87
  %v89 = vrot.slane %v84, %v88
  %v91 = vadd.f32 %v83, %v89
  %vm92 = vcmask 1024
  %93 = vst.msk [vmem:[%s6] sm:$0x3] %vm92, %v91
  // Predicated region
  $region26: #{_lambda_.29} parent=0 // pred_check
    _
  $region27: #{_lambda_.29} parent=0 // pred_check_branch
    %95 = sbr.rel (0) target = $region29
  $region28: #{_lambda_.29} parent=0 // pred_region
    _
  $region29: #{_lambda_.29} parent=0 // pred_fallthru
    _
  // Predicated region
  $region30: #{_lambda_.29} parent=0 // pred_check
    _
  $region31: #{_lambda_.29} parent=0 // pred_check_branch
    %97 = sbr.rel (0) target = $region33
  $region32: #{_lambda_.29} parent=0 // pred_region
    _
  $region33: #{_lambda_.29} parent=0 // pred_fallthru
    _

// kernel: _lambda_.28
$region0: #{_lambda_.28}
  #allocation0 [shape = 'u32[]', space=smem, size = 0x4, offset = 0x4, fixed_abs, tag = 'smem constant byte address 0x4 - core index']
  #allocation1 [shape = 'u32[144,128]{1,0:T(1,128)}', space=vmem, size = 0x12000, scoped, tag = 'internal scratch']
  %s0 = inlined_call_operand.vmem [shape: f32[2,128,8], index: 0, kind: input, shape index: {}]
  %s1 = inlined_call_operand.vmem [shape: f32[1,128], index: 1, kind: input, shape index: {}]
  %s2 = inlined_call_operand.vmem [shape: f32[2,128,8], index: 2, kind: output, shape index: {}]
  %s3 = sld [smem:[#allocation0]]
  $region18: #{_lambda_.28} parent=0
    _
  %s5 = ssub.s32 1, %s3
  %s6 = scalar_select 0, %s5, %s3
  // Predicated region
  $region2: #{_lambda_.28} parent=0 // pred_check
    _
  $region3: #{_lambda_.28} parent=0 // pred_check_branch
    %8 = sbr.rel (0) target = $region5
  $region4: #{_lambda_.28} parent=0 // pred_region
    _
  $region5: #{_lambda_.28} parent=0 // pred_fallthru
    _
  // Predicated region
  $region6: #{_lambda_.28} parent=0 // pred_check
    _
  $region7: #{_lambda_.28} parent=0 // pred_check_branch
    %10 = sbr.rel (0) target = $region9
  $region8: #{_lambda_.28} parent=0 // pred_region
    _
  $region9: #{_lambda_.28} parent=0 // pred_fallthru
    _
  %v11 = vld [vmem:[%s0] sm:$0xff]
  %v12 = vld [vmem:[%s0 + $0x8] sm:$0xff]
  %v13 = vld [vmem:[%s0 + $0x10] sm:$0xff]
  %v14 = vld [vmem:[%s0 + $0x18] sm:$0xff]
  %v15 = vld [vmem:[%s0 + $0x20] sm:$0xff]
  %v16 = vld [vmem:[%s0 + $0x28] sm:$0xff]
  %v17 = vld [vmem:[%s0 + $0x30] sm:$0xff]
  %v18 = vld [vmem:[%s0 + $0x38] sm:$0xff]
  %v19 = vld [vmem:[%s0 + $0x40] sm:$0xff]
  %v20 = vld [vmem:[%s0 + $0x48] sm:$0xff]
  %v21 = vld [vmem:[%s0 + $0x50] sm:$0xff]
  %v22 = vld [vmem:[%s0 + $0x58] sm:$0xff]
  %v23 = vld [vmem:[%s0 + $0x60] sm:$0xff]
  %v24 = vld [vmem:[%s0 + $0x68] sm:$0xff]
  %v25 = vld [vmem:[%s0 + $0x70] sm:$0xff]
  %v26 = vld [vmem:[%s0 + $0x78] sm:$0xff]
  %v27 = vld [vmem:[%s0 + $0x80] sm:$0xff]
  %v28 = vld [vmem:[%s0 + $0x88] sm:$0xff]
  %v29 = vld [vmem:[%s0 + $0x90] sm:$0xff]
  %v30 = vld [vmem:[%s0 + $0x98] sm:$0xff]
  %v31 = vld [vmem:[%s0 + $0xa0] sm:$0xff]
  %v32 = vld [vmem:[%s0 + $0xa8] sm:$0xff]
  %v33 = vld [vmem:[%s0 + $0xb0] sm:$0xff]
  %v34 = vld [vmem:[%s0 + $0xb8] sm:$0xff]
  %v35 = vld [vmem:[%s0 + $0xc0] sm:$0xff]
  %v36 = vld [vmem:[%s0 + $0xc8] sm:$0xff]
  %v37 = vld [vmem:[%s0 + $0xd0] sm:$0xff]
  %v38 = vld [vmem:[%s0 + $0xd8] sm:$0xff]
  %v39 = vld [vmem:[%s0 + $0xe0] sm:$0xff]
  %v40 = vld [vmem:[%s0 + $0xe8] sm:$0xff]
  %v41 = vld [vmem:[%s0 + $0xf0] sm:$0xff]
  %v42 = vld [vmem:[%s0 + $0xf8] sm:$0xff]
  %v43 = vld [vmem:[%s1] sm:$0x1]
  %v44 = vlaneseq
  %v45 = vshrl.u32 %v44, 7
  %v46 = vsub.s32 0, %v45
  %v47 = vrot.slane %v43, %v46
  %49 = vbcast.lane.b32.xlu0 %v47, 256
  %v50 = vpop.permute.xlu0 %49
  %s52 = sor.u32 256, 8
  %53 = vbcast.lane.b32.xlu0 %v47, %s52
  %v54 = vpop.permute.xlu0 %53
  %s56 = sor.u32 256, 16
  %57 = vbcast.lane.b32.xlu0 %v47, %s56
  %v58 = vpop.permute.xlu0 %57
  %s60 = sor.u32 256, 24
  %61 = vbcast.lane.b32.xlu0 %v47, %s60
  %v62 = vpop.permute.xlu0 %61
  %s64 = sor.u32 256, 32
  %65 = vbcast.lane.b32.xlu0 %v47, %s64
  %v66 = vpop.permute.xlu0 %65
  %s68 = sor.u32 256, 40
  %69 = vbcast.lane.b32.xlu0 %v47, %s68
  %v70 = vpop.permute.xlu0 %69
  %s72 = sor.u32 256, 48
  %73 = vbcast.lane.b32.xlu0 %v47, %s72
  %v74 = vpop.permute.xlu0 %73
  %s76 = sor.u32 256, 56
  %77 = vbcast.lane.b32.xlu0 %v47, %s76
  %v78 = vpop.permute.xlu0 %77
  %s80 = sor.u32 256, 64
  %81 = vbcast.lane.b32.xlu0 %v47, %s80
  %v82 = vpop.permute.xlu0 %81
  %s84 = sor.u32 256, 72
  %85 = vbcast.lane.b32.xlu0 %v47, %s84
  %v86 = vpop.permute.xlu0 %85
  %s88 = sor.u32 256, 80
  %89 = vbcast.lane.b32.xlu0 %v47, %s88
  %v90 = vpop.permute.xlu0 %89
  %s92 = sor.u32 256, 88
  %93 = vbcast.lane.b32.xlu0 %v47, %s92
  %v94 = vpop.permute.xlu0 %93
  %s96 = sor.u32 256, 96
  %97 = vbcast.lane.b32.xlu0 %v47, %s96
  %v98 = vpop.permute.xlu0 %97
  %s100 = sor.u32 256, 104
  %101 = vbcast.lane.b32.xlu0 %v47, %s100
  %v102 = vpop.permute.xlu0 %101
  %s104 = sor.u32 256, 112
  %105 = vbcast.lane.b32.xlu0 %v47, %s104
  %v106 = vpop.permute.xlu0 %105
  %s108 = sor.u32 256, 120
  %109 = vbcast.lane.b32.xlu0 %v47, %s108
  %v110 = vpop.permute.xlu0 %109
  %v111 = vadd.f32 %v11, %v50
  %v112 = vadd.f32 %v12, %v54
  %v113 = vadd.f32 %v13, %v58
  %v114 = vadd.f32 %v14, %v62
  %v115 = vadd.f32 %v15, %v66
  %v116 = vadd.f32 %v16, %v70
  %v117 = vadd.f32 %v17, %v74
  %v118 = vadd.f32 %v18, %v78
  %v119 = vadd.f32 %v19, %v82
  %v120 = vadd.f32 %v20, %v86
  %v121 = vadd.f32 %v21, %v90
  %v122 = vadd.f32 %v22, %v94
  %v123 = vadd.f32 %v23, %v98
  %v124 = vadd.f32 %v24, %v102
  %v125 = vadd.f32 %v25, %v106
  %v126 = vadd.f32 %v26, %v110
  %v127 = vadd.f32 %v27, %v50
  %v128 = vadd.f32 %v28, %v54
  %v129 = vadd.f32 %v29, %v58
  %v130 = vadd.f32 %v30, %v62
  %v131 = vadd.f32 %v31, %v66
  %v132 = vadd.f32 %v32, %v70
  %v133 = vadd.f32 %v33, %v74
  %v134 = vadd.f32 %v34, %v78
  %v135 = vadd.f32 %v35, %v82
  %v136 = vadd.f32 %v36, %v86
  %v137 = vadd.f32 %v37, %v90
  %v138 = vadd.f32 %v38, %v94
  %v139 = vadd.f32 %v39, %v98
  %v140 = vadd.f32 %v40, %v102
  %v141 = vadd.f32 %v41, %v106
  %v142 = vadd.f32 %v42, %v110
  %v143 = vmax.f32 %v111, 0.0
  %v144 = vmax.f32 %v112, 0.0
  %v145 = vmax.f32 %v113, 0.0
  %v146 = vmax.f32 %v114, 0.0
  %v147 = vmax.f32 %v115, 0.0
  %v148 = vmax.f32 %v116, 0.0
  %v149 = vmax.f32 %v117, 0.0
  %v150 = vmax.f32 %v118, 0.0
  %v151 = vmax.f32 %v119, 0.0
  %v152 = vmax.f32 %v120, 0.0
  %v153 = vmax.f32 %v121, 0.0
  %v154 = vmax.f32 %v122, 0.0
  %v155 = vmax.f32 %v123, 0.0
  %v156 = vmax.f32 %v124, 0.0
  %v157 = vmax.f32 %v125, 0.0
  %v158 = vmax.f32 %v126, 0.0
  %v159 = vmax.f32 %v127, 0.0
  %v160 = vmax.f32 %v128, 0.0
  %v161 = vmax.f32 %v129, 0.0
  %v162 = vmax.f32 %v130, 0.0
  %v163 = vmax.f32 %v131, 0.0
  %v164 = vmax.f32 %v132, 0.0
  %v165 = vmax.f32 %v133, 0.0
  %v166 = vmax.f32 %v134, 0.0
  %v167 = vmax.f32 %v135, 0.0
  %v168 = vmax.f32 %v136, 0.0
  %v169 = vmax.f32 %v137, 0.0
  %v170 = vmax.f32 %v138, 0.0
  %v171 = vmax.f32 %v139, 0.0
  %v172 = vmax.f32 %v140, 0.0
  %v173 = vmax.f32 %v141, 0.0
  %v174 = vmax.f32 %v142, 0.0
  %vm175 = vcmask 64512
  %176 = vst.msk [vmem:[%s2] sm:$0xff] %vm175, %v143
  %177 = vst.msk [vmem:[%s2 + $0x8] sm:$0xff] %vm175, %v144
  %178 = vst.msk [vmem:[%s2 + $0x10] sm:$0xff] %vm175, %v145
  %179 = vst.msk [vmem:[%s2 + $0x18] sm:$0xff] %vm175, %v146
  %180 = vst.msk [vmem:[%s2 + $0x20] sm:$0xff] %vm175, %v147
  %181 = vst.msk [vmem:[%s2 + $0x28] sm:$0xff] %vm175, %v148
  %182 = vst.msk [vmem:[%s2 + $0x30] sm:$0xff] %vm175, %v149
  %183 = vst.msk [vmem:[%s2 + $0x38] sm:$0xff] %vm175, %v150
  %184 = vst.msk [vmem:[%s2 + $0x40] sm:$0xff] %vm175, %v151
  %185 = vst.msk [vmem:[%s2 + $0x48] sm:$0xff] %vm175, %v152
  %186 = vst.msk [vmem:[%s2 + $0x50] sm:$0xff] %vm175, %v153
  %187 = vst.msk [vmem:[%s2 + $0x58] sm:$0xff] %vm175, %v154
  %188 = vst.msk [vmem:[%s2 + $0x60] sm:$0xff] %vm175, %v155
  %189 = vst.msk [vmem:[%s2 + $0x68] sm:$0xff] %vm175, %v156
  %190 = vst.msk [vmem:[%s2 + $0x70] sm:$0xff] %vm175, %v157
  %191 = vst.msk [vmem:[%s2 + $0x78] sm:$0xff] %vm175, %v158
  %192 = vst.msk [vmem:[%s2 + $0x80] sm:$0xff] %vm175, %v159
  %193 = vst.msk [vmem:[%s2 + $0x88] sm:$0xff] %vm175, %v160
  %194 = vst.msk [vmem:[%s2 + $0x90] sm:$0xff] %vm175, %v161
  %195 = vst.msk [vmem:[%s2 + $0x98] sm:$0xff] %vm175, %v162
  %196 = vst.msk [vmem:[%s2 + $0xa0] sm:$0xff] %vm175, %v163
  %197 = vst.msk [vmem:[%s2 + $0xa8] sm:$0xff] %vm175, %v164
  %198 = vst.msk [vmem:[%s2 + $0xb0] sm:$0xff] %vm175, %v165
  %199 = vst.msk [vmem:[%s2 + $0xb8] sm:$0xff] %vm175, %v166
  %200 = vst.msk [vmem:[%s2 + $0xc0] sm:$0xff] %vm175, %v167
  %201 = vst.msk [vmem:[%s2 + $0xc8] sm:$0xff] %vm175, %v168
  %202 = vst.msk [vmem:[%s2 + $0xd0] sm:$0xff] %vm175, %v169
  %203 = vst.msk [vmem:[%s2 + $0xd8] sm:$0xff] %vm175, %v170
  %204 = vst.msk [vmem:[%s2 + $0xe0] sm:$0xff] %vm175, %v171
  %205 = vst.msk [vmem:[%s2 + $0xe8] sm:$0xff] %vm175, %v172
  %206 = vst.msk [vmem:[%s2 + $0xf0] sm:$0xff] %vm175, %v173
  %207 = vst.msk [vmem:[%s2 + $0xf8] sm:$0xff] %vm175, %v174
  // Predicated region
  $region10: #{_lambda_.28} parent=0 // pred_check
    _
  $region11: #{_lambda_.28} parent=0 // pred_check_branch
    %209 = sbr.rel (0) target = $region13
  $region12: #{_lambda_.28} parent=0 // pred_region
    _
  $region13: #{_lambda_.28} parent=0 // pred_fallthru
    _
  // Predicated region
  $region14: #{_lambda_.28} parent=0 // pred_check
    _
  $region15: #{_lambda_.28} parent=0 // pred_check_branch
    %211 = sbr.rel (0) target = $region17
  $region16: #{_lambda_.28} parent=0 // pred_region
    _
  $region17: #{_lambda_.28} parent=0 // pred_fallthru
    _

</llo_original>
